<compile_context>
chip_gen: v5e
topology: v5e:2x2
jax: 0.10.0
libtpu: 0.0.40
codegen_flags: <defaults>
</compile_context>

<pallas_src>
import math

import jax
import jax.numpy as jnp
from jax import lax
from jax.experimental import pallas as pl
from jax.experimental.pallas import tpu as pltpu

# ---- hyperparameters implied by the module / standard tutorial config ----
INPUT_DIM = 50      # src vocab size
OUTPUT_DIM = 50     # trg vocab size
HID_DIM = 32
N_LAYERS = 2
N_HEADS = 4
HEAD_DIM = HID_DIM // N_HEADS
PF_DIM = 64
MAX_LEN = 16
SRC_PAD_IDX = 0
TRG_PAD_IDX = 0
LN_EPS = 1e-5
OUT_PAD = 64        # fc_out lane-padded output width (sliced back to OUTPUT_DIM)


# ------------------------------ in-kernel helpers ------------------------------

def _mha(x_q, x_kv, w, b, mask):
    """Multi-head attention on register values.

    x_q: (Lq, H), x_kv: (Lk, H); w: (4, H, H) [q,k,v,o]; b: (4, H);
    mask: bool, broadcastable to (Lq, Lk).  Returns ((Lq, H), (NH, Lq, Lk)).
    """
    q = jnp.dot(x_q, w[0], preferred_element_type=jnp.float32) + b[0:1]
    k = jnp.dot(x_kv, w[1], preferred_element_type=jnp.float32) + b[1:2]
    v = jnp.dot(x_kv, w[2], preferred_element_type=jnp.float32) + b[2:3]

    # split heads along lanes, stack into a leading head axis -> (NH, L, hd)
    qh = jnp.stack([q[:, h * HEAD_DIM:(h + 1) * HEAD_DIM] for h in range(N_HEADS)], axis=0)
    kh = jnp.stack([k[:, h * HEAD_DIM:(h + 1) * HEAD_DIM] for h in range(N_HEADS)], axis=0)
    vh = jnp.stack([v[:, h * HEAD_DIM:(h + 1) * HEAD_DIM] for h in range(N_HEADS)], axis=0)

    scale = jnp.float32(1.0 / math.sqrt(HEAD_DIM))
    # energy[h] = Qh @ Kh^T / sqrt(hd)   (batched over heads)
    energy = lax.dot_general(qh, kh, (((2,), (2,)), ((0,), (0,))),
                             preferred_element_type=jnp.float32) * scale   # (NH, Lq, Lk)
    energy = jnp.where(mask[None], energy, jnp.float32(-1e10))
    energy = energy - jnp.max(energy, axis=-1, keepdims=True)
    p = jnp.exp(energy)
    attn = p * pl.reciprocal(jnp.sum(p, axis=-1, keepdims=True), approx=True)

    ctx = lax.dot_general(attn, vh, (((2,), (1,)), ((0,), (0,))),
                          preferred_element_type=jnp.float32)              # (NH, Lq, hd)
    cat = jnp.concatenate([ctx[h] for h in range(N_HEADS)], axis=-1)       # (Lq, H)
    out = jnp.dot(cat, w[3], preferred_element_type=jnp.float32) + b[3:4]
    return out, attn


def _add_ln(x_new, residual, g, b):
    """LayerNorm(x_new + residual) over the last axis; g/b are (1, H)."""
    x = x_new + residual
    mean = jnp.mean(x, axis=-1, keepdims=True)
    var = jnp.mean(jnp.square(x - mean), axis=-1, keepdims=True)
    return (x - mean) * lax.rsqrt(var + jnp.float32(LN_EPS)) * g + b


def _ffn(x, w1, b1, w2, b2):
    h = jnp.maximum(jnp.dot(x, w1, preferred_element_type=jnp.float32) + b1, 0.0)
    return jnp.dot(h, w2, preferred_element_type=jnp.float32) + b2


# ------------------------------ fused seq2seq kernel ------------------------------

def _seq2seq_kernel(
    enc_x_ref, dec_x_ref, src_keep_ref, trg_keep_ref,
    enc_attn_w_ref, enc_attn_b_ref, enc_ln_g_ref, enc_ln_b_ref,
    enc_ffn_w1_ref, enc_ffn_b1_ref, enc_ffn_w2_ref, enc_ffn_b2_ref,
    dec_self_w_ref, dec_self_b_ref, dec_cross_w_ref, dec_cross_b_ref,
    dec_ln_g_ref, dec_ln_b_ref,
    dec_ffn_w1_ref, dec_ffn_b1_ref, dec_ffn_w2_ref, dec_ffn_b2_ref,
    fc_w_ref, fc_b_ref,
    out_ref, attn_ref,
):
    """One batch element per grid step: full encoder + decoder + fc_out."""
    Lt = dec_x_ref.shape[0]

    # src mask: keep over key positions (broadcast over queries / heads)
    src_mask = src_keep_ref[...] != 0.0                      # (1, Ls) bool

    # ----------------- encoder -----------------
    x = enc_x_ref[...]                                       # (Ls, H)
    for l in range(N_LAYERS):
        ln_g = enc_ln_g_ref[l]
        ln_b = enc_ln_b_ref[l]
        sa, _ = _mha(x, x, enc_attn_w_ref[l], enc_attn_b_ref[l], src_mask)
        x = _add_ln(sa, x, ln_g[0:1], ln_b[0:1])
        ff = _ffn(x, enc_ffn_w1_ref[l], enc_ffn_b1_ref[l],
                  enc_ffn_w2_ref[l], enc_ffn_b2_ref[l])
        x = _add_ln(ff, x, ln_g[1:2], ln_b[1:2])
    enc_src = x                                              # (Ls, H)

    # ----------------- decoder -----------------
    rows = lax.broadcasted_iota(jnp.int32, (Lt, Lt), 0)
    cols = lax.broadcasted_iota(jnp.int32, (Lt, Lt), 1)
    trg_mask = (trg_keep_ref[...] != 0.0) & (rows >= cols)   # (Lt, Lt) bool

    y = dec_x_ref[...]                                       # (Lt, H)
    attention = None
    for l in range(N_LAYERS):
        ln_g = dec_ln_g_ref[l]
        ln_b = dec_ln_b_ref[l]
        sa, _ = _mha(y, y, dec_self_w_ref[l], dec_self_b_ref[l], trg_mask)
        y = _add_ln(sa, y, ln_g[0:1], ln_b[0:1])
        ca, attention = _mha(y, enc_src, dec_cross_w_ref[l], dec_cross_b_ref[l], src_mask)
        y = _add_ln(ca, y, ln_g[1:2], ln_b[1:2])
        ff = _ffn(y, dec_ffn_w1_ref[l], dec_ffn_b1_ref[l],
                  dec_ffn_w2_ref[l], dec_ffn_b2_ref[l])
        y = _add_ln(ff, y, ln_g[2:3], ln_b[2:3])

    # output projection (lane-padded) + final cross-attention map
    out_ref[...] = jnp.dot(y, fc_w_ref[...],
                           preferred_element_type=jnp.float32) + fc_b_ref[...]
    attn_ref[...] = attention


# ------------------------------ pallas_call wrapper ------------------------------

def _batch_spec(shape):
    nd = len(shape)
    return pl.BlockSpec((None,) + tuple(shape[1:]),
                        lambda b, _nd=nd: (b,) + (0,) * (_nd - 1))


def _const_spec(shape):
    nd = len(shape)
    return pl.BlockSpec(tuple(shape), lambda b, _nd=nd: (0,) * _nd)


def seq2seq_forward(src, trg, params):
    B, Ls = src.shape
    Lt = trg.shape[1]

    # TODO(synk): token/positional embedding gathers stay in plain JAX glue
    # (data-dependent gather; tiny at these shapes).
    scale = jnp.sqrt(jnp.float32(HID_DIM))
    enc_x = params["enc_tok_emb"][src] * scale + params["enc_pos_emb"][:Ls][None]
    dec_x = params["dec_tok_emb"][trg] * scale + params["dec_pos_emb"][:Lt][None]

    src_keep = (src != SRC_PAD_IDX).astype(jnp.float32).reshape(B, 1, Ls)
    trg_keep = (trg != TRG_PAD_IDX).astype(jnp.float32).reshape(B, 1, Lt)

    inputs = (
        enc_x, dec_x, src_keep, trg_keep,
        params["enc_attn_w"], params["enc_attn_b"],
        params["enc_ln_g"], params["enc_ln_b"],
        params["enc_ffn_w1"], params["enc_ffn_b1"],
        params["enc_ffn_w2"], params["enc_ffn_b2"],
        params["dec_self_w"], params["dec_self_b"],
        params["dec_cross_w"], params["dec_cross_b"],
        params["dec_ln_g"], params["dec_ln_b"],
        params["dec_ffn_w1"], params["dec_ffn_b1"],
        params["dec_ffn_w2"], params["dec_ffn_b2"],
        params["fc_w"], params["fc_b"],
    )

    in_specs = [_batch_spec(enc_x.shape), _batch_spec(dec_x.shape),
                _batch_spec(src_keep.shape), _batch_spec(trg_keep.shape)]
    in_specs += [_const_spec(a.shape) for a in inputs[4:]]

    out_pad, attn = pl.pallas_call(
        _seq2seq_kernel,
        out_shape=(jax.ShapeDtypeStruct((B, Lt, OUT_PAD), jnp.float32),
                   jax.ShapeDtypeStruct((B, N_HEADS, Lt, Ls), jnp.float32)),
        grid=(B,),
        in_specs=in_specs,
        out_specs=(_batch_spec((B, Lt, OUT_PAD)),
                   _batch_spec((B, N_HEADS, Lt, Ls))),
        compiler_params=pltpu.CompilerParams(dimension_semantics=("parallel",)),
    )(*inputs)

    return out_pad[:, :, :OUTPUT_DIM], attn


# ------------------------------ parameters ------------------------------

def _lin(key, din, dout, scale=0.05):
    kw, kb = jax.random.split(key)
    w = jax.random.normal(kw, (din, dout), jnp.float32) * scale
    b = jax.random.normal(kb, (dout,), jnp.float32) * scale
    return w, b


def _mha_params(key):
    ks = jax.random.split(key, 4)
    ws, bs = zip(*[_lin(k, HID_DIM, HID_DIM) for k in ks])   # q, k, v, o
    return jnp.stack(ws), jnp.stack(bs)                      # (4,H,H), (4,H)


def init_params(key):
    keys = jax.random.split(key, 7)
    p = {
        "enc_tok_emb": jax.random.normal(keys[0], (INPUT_DIM, HID_DIM), jnp.float32) * 0.05,
        "enc_pos_emb": jax.random.normal(keys[1], (MAX_LEN, HID_DIM), jnp.float32) * 0.05,
        "dec_tok_emb": jax.random.normal(keys[2], (OUTPUT_DIM, HID_DIM), jnp.float32) * 0.05,
        "dec_pos_emb": jax.random.normal(keys[3], (MAX_LEN, HID_DIM), jnp.float32) * 0.05,
    }

    # ----- encoder layers (stacked along a leading layer axis) -----
    eaw, eab, elg, elb = [], [], [], []
    ew1, eb1, ew2, eb2 = [], [], [], []
    for lk in jax.random.split(keys[4], N_LAYERS):
        k1, k2, k3 = jax.random.split(lk, 3)
        aw, ab = _mha_params(k1)
        eaw.append(aw); eab.append(ab)
        elg.append(jnp.ones((2, HID_DIM), jnp.float32))
        elb.append(jnp.zeros((2, HID_DIM), jnp.float32))
        w1, b1 = _lin(k2, HID_DIM, PF_DIM)
        w2, b2 = _lin(k3, PF_DIM, HID_DIM)
        ew1.append(w1); eb1.append(b1.reshape(1, PF_DIM))
        ew2.append(w2); eb2.append(b2.reshape(1, HID_DIM))
    p.update(enc_attn_w=jnp.stack(eaw), enc_attn_b=jnp.stack(eab),
             enc_ln_g=jnp.stack(elg), enc_ln_b=jnp.stack(elb),
             enc_ffn_w1=jnp.stack(ew1), enc_ffn_b1=jnp.stack(eb1),
             enc_ffn_w2=jnp.stack(ew2), enc_ffn_b2=jnp.stack(eb2))

    # ----- decoder layers -----
    dsw, dsb, dcw, dcb, dlg, dlb = [], [], [], [], [], []
    dw1, db1, dw2, db2 = [], [], [], []
    for lk in jax.random.split(keys[5], N_LAYERS):
        k1, k2, k3, k4 = jax.random.split(lk, 4)
        aw, ab = _mha_params(k1); dsw.append(aw); dsb.append(ab)
        cw, cb = _mha_params(k2); dcw.append(cw); dcb.append(cb)
        dlg.append(jnp.ones((3, HID_DIM), jnp.float32))
        dlb.append(jnp.zeros((3, HID_DIM), jnp.float32))
        w1, b1 = _lin(k3, HID_DIM, PF_DIM)
        w2, b2 = _lin(k4, PF_DIM, HID_DIM)
        dw1.append(w1); db1.append(b1.reshape(1, PF_DIM))
        dw2.append(w2); db2.append(b2.reshape(1, HID_DIM))
    p.update(dec_self_w=jnp.stack(dsw), dec_self_b=jnp.stack(dsb),
             dec_cross_w=jnp.stack(dcw), dec_cross_b=jnp.stack(dcb),
             dec_ln_g=jnp.stack(dlg), dec_ln_b=jnp.stack(dlb),
             dec_ffn_w1=jnp.stack(dw1), dec_ffn_b1=jnp.stack(db1),
             dec_ffn_w2=jnp.stack(dw2), dec_ffn_b2=jnp.stack(db2))

    # output projection, zero-padded from OUTPUT_DIM(=50) to OUT_PAD(=64) lanes
    fw, fb = _lin(keys[6], HID_DIM, OUTPUT_DIM)
    p["fc_w"] = jnp.zeros((HID_DIM, OUT_PAD), jnp.float32).at[:, :OUTPUT_DIM].set(fw)
    p["fc_b"] = jnp.zeros((1, OUT_PAD), jnp.float32).at[0, :OUTPUT_DIM].set(fb)
    return p


# ------------------------------ main ------------------------------

if __name__ == "__main__":
    key = jax.random.PRNGKey(0)
    pkey, skey, tkey = jax.random.split(key, 3)
    params = init_params(pkey)

    B, Ls, Lt = 2, 8, 8
    src = jax.random.randint(skey, (B, Ls), 1, INPUT_DIM, dtype=jnp.int32)
    trg = jax.random.randint(tkey, (B, Lt), 1, OUTPUT_DIM, dtype=jnp.int32)
    # add some padding tokens at sequence tails
    src = src.at[1, 6:].set(SRC_PAD_IDX)
    trg = trg.at[0, 7:].set(TRG_PAD_IDX)

    fwd = jax.jit(seq2seq_forward)
    output, attention = fwd(src, trg, params)
    jax.block_until_ready((output, attention))

    assert output.shape == (B, Lt, OUTPUT_DIM)
    assert attention.shape == (B, N_HEADS, Lt, Ls)
    assert bool(jnp.all(jnp.isfinite(output)))
    assert bool(jnp.all(jnp.isfinite(attention)))
    print("KERNEL_OK")
</pallas_src>

<mosaic_0001>
module attributes {stable_mosaic.version = 11 : i64} {
  func.func @_seq2seq_kernel(%arg0: i32, %arg1: memref<1x8x32xf32, #tpu.memory_space<vmem>>, %arg2: memref<1x8x32xf32, #tpu.memory_space<vmem>>, %arg3: memref<1x1x8xf32, #tpu.memory_space<vmem>>, %arg4: memref<1x1x8xf32, #tpu.memory_space<vmem>>, %arg5: memref<2x4x32x32xf32, #tpu.memory_space<vmem>>, %arg6: memref<2x4x32xf32, #tpu.memory_space<vmem>>, %arg7: memref<2x2x32xf32, #tpu.memory_space<vmem>>, %arg8: memref<2x2x32xf32, #tpu.memory_space<vmem>>, %arg9: memref<2x32x64xf32, #tpu.memory_space<vmem>>, %arg10: memref<2x1x64xf32, #tpu.memory_space<vmem>>, %arg11: memref<2x64x32xf32, #tpu.memory_space<vmem>>, %arg12: memref<2x1x32xf32, #tpu.memory_space<vmem>>, %arg13: memref<2x4x32x32xf32, #tpu.memory_space<vmem>>, %arg14: memref<2x4x32xf32, #tpu.memory_space<vmem>>, %arg15: memref<2x4x32x32xf32, #tpu.memory_space<vmem>>, %arg16: memref<2x4x32xf32, #tpu.memory_space<vmem>>, %arg17: memref<2x3x32xf32, #tpu.memory_space<vmem>>, %arg18: memref<2x3x32xf32, #tpu.memory_space<vmem>>, %arg19: memref<2x32x64xf32, #tpu.memory_space<vmem>>, %arg20: memref<2x1x64xf32, #tpu.memory_space<vmem>>, %arg21: memref<2x64x32xf32, #tpu.memory_space<vmem>>, %arg22: memref<2x1x32xf32, #tpu.memory_space<vmem>>, %arg23: memref<32x64xf32, #tpu.memory_space<vmem>>, %arg24: memref<1x64xf32, #tpu.memory_space<vmem>>, %arg25: memref<1x8x64xf32, #tpu.memory_space<vmem>>, %arg26: memref<1x4x8x8xf32, #tpu.memory_space<vmem>>) attributes {dimension_semantics = [#tpu.dimension_semantics<parallel>], iteration_bounds = array<i64: 2>, scalar_prefetch = 0 : i64, scratch_operands = 0 : i64, tpu.core_type = #tpu.core_type<tc>, window_params = [{transform_indices = @transform_0, window_bounds = array<i64: 1, 8, 32>}, {transform_indices = @transform_1, window_bounds = array<i64: 1, 8, 32>}, {transform_indices = @transform_2, window_bounds = array<i64: 1, 1, 8>}, {transform_indices = @transform_3, window_bounds = array<i64: 1, 1, 8>}, {pipeline_mode = #tpu.pipeline_mode<synchronous>, transform_indices = @transform_4, window_bounds = array<i64: 2, 4, 32, 32>}, {pipeline_mode = #tpu.pipeline_mode<synchronous>, transform_indices = @transform_5, window_bounds = array<i64: 2, 4, 32>}, {pipeline_mode = #tpu.pipeline_mode<synchronous>, transform_indices = @transform_6, window_bounds = array<i64: 2, 2, 32>}, {pipeline_mode = #tpu.pipeline_mode<synchronous>, transform_indices = @transform_7, window_bounds = array<i64: 2, 2, 32>}, {pipeline_mode = #tpu.pipeline_mode<synchronous>, transform_indices = @transform_8, window_bounds = array<i64: 2, 32, 64>}, {pipeline_mode = #tpu.pipeline_mode<synchronous>, transform_indices = @transform_9, window_bounds = array<i64: 2, 1, 64>}, {pipeline_mode = #tpu.pipeline_mode<synchronous>, transform_indices = @transform_10, window_bounds = array<i64: 2, 64, 32>}, {pipeline_mode = #tpu.pipeline_mode<synchronous>, transform_indices = @transform_11, window_bounds = array<i64: 2, 1, 32>}, {pipeline_mode = #tpu.pipeline_mode<synchronous>, transform_indices = @transform_12, window_bounds = array<i64: 2, 4, 32, 32>}, {pipeline_mode = #tpu.pipeline_mode<synchronous>, transform_indices = @transform_13, window_bounds = array<i64: 2, 4, 32>}, {pipeline_mode = #tpu.pipeline_mode<synchronous>, transform_indices = @transform_14, window_bounds = array<i64: 2, 4, 32, 32>}, {pipeline_mode = #tpu.pipeline_mode<synchronous>, transform_indices = @transform_15, window_bounds = array<i64: 2, 4, 32>}, {pipeline_mode = #tpu.pipeline_mode<synchronous>, transform_indices = @transform_16, window_bounds = array<i64: 2, 3, 32>}, {pipeline_mode = #tpu.pipeline_mode<synchronous>, transform_indices = @transform_17, window_bounds = array<i64: 2, 3, 32>}, {pipeline_mode = #tpu.pipeline_mode<synchronous>, transform_indices = @transform_18, window_bounds = array<i64: 2, 32, 64>}, {pipeline_mode = #tpu.pipeline_mode<synchronous>, transform_indices = @transform_19, window_bounds = array<i64: 2, 1, 64>}, {pipeline_mode = #tpu.pipeline_mode<synchronous>, transform_indices = @transform_20, window_bounds = array<i64: 2, 64, 32>}, {pipeline_mode = #tpu.pipeline_mode<synchronous>, transform_indices = @transform_21, window_bounds = array<i64: 2, 1, 32>}, {pipeline_mode = #tpu.pipeline_mode<synchronous>, transform_indices = @transform_22, window_bounds = array<i64: 32, 64>}, {pipeline_mode = #tpu.pipeline_mode<synchronous>, transform_indices = @transform_23, window_bounds = array<i64: 1, 64>}, {transform_indices = @transform_24, window_bounds = array<i64: 1, 8, 64>}, {transform_indices = @transform_25, window_bounds = array<i64: 1, 4, 8, 8>}]} {
    %c0 = arith.constant 0 : index
    %c0_0 = arith.constant 0 : index
    %c0_1 = arith.constant 0 : index
    %0 = vector.load %arg3[%c0, %c0_0, %c0_1] : memref<1x1x8xf32, #tpu.memory_space<vmem>>, vector<1x1x8xf32>
    %1 = vector.shape_cast %0 : vector<1x1x8xf32> to vector<1x8xf32>
    %cst = arith.constant 0.000000e+00 : f32
    %2 = vector.broadcast %cst : f32 to vector<1x8xf32>
    %3 = arith.cmpf one, %1, %2 : vector<1x8xf32>
    %c0_2 = arith.constant 0 : index
    %c0_3 = arith.constant 0 : index
    %c0_4 = arith.constant 0 : index
    %4 = vector.load %arg1[%c0_2, %c0_3, %c0_4] : memref<1x8x32xf32, #tpu.memory_space<vmem>>, vector<1x8x32xf32>
    %5 = vector.shape_cast %4 : vector<1x8x32xf32> to vector<8x32xf32>
    %c0_5 = arith.constant 0 : index
    %c0_6 = arith.constant 0 : index
    %c0_7 = arith.constant 0 : index
    %6 = vector.load %arg7[%c0_5, %c0_6, %c0_7] : memref<2x2x32xf32, #tpu.memory_space<vmem>>, vector<1x2x32xf32>
    %7 = vector.shape_cast %6 : vector<1x2x32xf32> to vector<2x32xf32>
    %c0_8 = arith.constant 0 : index
    %c0_9 = arith.constant 0 : index
    %c0_10 = arith.constant 0 : index
    %8 = vector.load %arg8[%c0_8, %c0_9, %c0_10] : memref<2x2x32xf32, #tpu.memory_space<vmem>>, vector<1x2x32xf32>
    %9 = vector.shape_cast %8 : vector<1x2x32xf32> to vector<2x32xf32>
    %c0_11 = arith.constant 0 : index
    %c0_12 = arith.constant 0 : index
    %c0_13 = arith.constant 0 : index
    %c0_14 = arith.constant 0 : index
    %10 = vector.load %arg5[%c0_11, %c0_12, %c0_13, %c0_14] : memref<2x4x32x32xf32, #tpu.memory_space<vmem>>, vector<1x4x32x32xf32>
    %11 = vector.shape_cast %10 : vector<1x4x32x32xf32> to vector<4x32x32xf32>
    %c0_15 = arith.constant 0 : index
    %c0_16 = arith.constant 0 : index
    %c0_17 = arith.constant 0 : index
    %12 = vector.load %arg6[%c0_15, %c0_16, %c0_17] : memref<2x4x32xf32, #tpu.memory_space<vmem>>, vector<1x4x32xf32>
    %13 = vector.shape_cast %12 : vector<1x4x32xf32> to vector<4x32xf32>
    %14 = vector.extract_strided_slice %11 {offsets = [0, 0, 0], sizes = [1, 32, 32], strides = [1, 1, 1]} : vector<4x32x32xf32> to vector<1x32x32xf32>
    %15 = vector.shape_cast %14 : vector<1x32x32xf32> to vector<32x32xf32>
    %cst_18 = arith.constant dense<0.000000e+00> : vector<8x32xf32>
    %16 = tpu.matmul %5, %15, %cst_18 {dimension_numbers = #tpu.dot_dimension_numbers<[1], [0], [0], [1], [0, 0, 1, 1], [], []>} : vector<8x32xf32>, vector<32x32xf32>, vector<8x32xf32> -> vector<8x32xf32>
    %17 = vector.extract_strided_slice %13 {offsets = [0, 0], sizes = [1, 32], strides = [1, 1]} : vector<4x32xf32> to vector<1x32xf32>
    %18 = vector.broadcast %17 : vector<1x32xf32> to vector<8x32xf32>
    %19 = arith.addf %16, %18 : vector<8x32xf32>
    %20 = vector.extract_strided_slice %11 {offsets = [1, 0, 0], sizes = [1, 32, 32], strides = [1, 1, 1]} : vector<4x32x32xf32> to vector<1x32x32xf32>
    %21 = vector.shape_cast %20 : vector<1x32x32xf32> to vector<32x32xf32>
    %cst_19 = arith.constant dense<0.000000e+00> : vector<8x32xf32>
    %22 = tpu.matmul %5, %21, %cst_19 {dimension_numbers = #tpu.dot_dimension_numbers<[1], [0], [0], [1], [0, 0, 1, 1], [], []>} : vector<8x32xf32>, vector<32x32xf32>, vector<8x32xf32> -> vector<8x32xf32>
    %23 = vector.extract_strided_slice %13 {offsets = [1, 0], sizes = [1, 32], strides = [1, 1]} : vector<4x32xf32> to vector<1x32xf32>
    %24 = vector.broadcast %23 : vector<1x32xf32> to vector<8x32xf32>
    %25 = arith.addf %22, %24 : vector<8x32xf32>
    %26 = vector.extract_strided_slice %11 {offsets = [2, 0, 0], sizes = [1, 32, 32], strides = [1, 1, 1]} : vector<4x32x32xf32> to vector<1x32x32xf32>
    %27 = vector.shape_cast %26 : vector<1x32x32xf32> to vector<32x32xf32>
    %cst_20 = arith.constant dense<0.000000e+00> : vector<8x32xf32>
    %28 = tpu.matmul %5, %27, %cst_20 {dimension_numbers = #tpu.dot_dimension_numbers<[1], [0], [0], [1], [0, 0, 1, 1], [], []>} : vector<8x32xf32>, vector<32x32xf32>, vector<8x32xf32> -> vector<8x32xf32>
    %29 = vector.extract_strided_slice %13 {offsets = [2, 0], sizes = [1, 32], strides = [1, 1]} : vector<4x32xf32> to vector<1x32xf32>
    %30 = vector.broadcast %29 : vector<1x32xf32> to vector<8x32xf32>
    %31 = arith.addf %28, %30 : vector<8x32xf32>
    %32 = vector.extract_strided_slice %19 {offsets = [0, 0], sizes = [8, 8], strides = [1, 1]} : vector<8x32xf32> to vector<8x8xf32>
    %33 = vector.extract_strided_slice %19 {offsets = [0, 8], sizes = [8, 8], strides = [1, 1]} : vector<8x32xf32> to vector<8x8xf32>
    %34 = vector.extract_strided_slice %19 {offsets = [0, 16], sizes = [8, 8], strides = [1, 1]} : vector<8x32xf32> to vector<8x8xf32>
    %35 = vector.extract_strided_slice %19 {offsets = [0, 24], sizes = [8, 8], strides = [1, 1]} : vector<8x32xf32> to vector<8x8xf32>
    %36 = vector.shape_cast %32 : vector<8x8xf32> to vector<1x8x8xf32>
    %37 = vector.shape_cast %33 : vector<8x8xf32> to vector<1x8x8xf32>
    %38 = vector.shape_cast %34 : vector<8x8xf32> to vector<1x8x8xf32>
    %39 = vector.shape_cast %35 : vector<8x8xf32> to vector<1x8x8xf32>
    %40 = tpu.concatenate %36, %37, %38, %39 in 0 : vector<1x8x8xf32>, vector<1x8x8xf32>, vector<1x8x8xf32>, vector<1x8x8xf32> -> vector<4x8x8xf32>
    %41 = vector.extract_strided_slice %25 {offsets = [0, 0], sizes = [8, 8], strides = [1, 1]} : vector<8x32xf32> to vector<8x8xf32>
    %42 = vector.extract_strided_slice %25 {offsets = [0, 8], sizes = [8, 8], strides = [1, 1]} : vector<8x32xf32> to vector<8x8xf32>
    %43 = vector.extract_strided_slice %25 {offsets = [0, 16], sizes = [8, 8], strides = [1, 1]} : vector<8x32xf32> to vector<8x8xf32>
    %44 = vector.extract_strided_slice %25 {offsets = [0, 24], sizes = [8, 8], strides = [1, 1]} : vector<8x32xf32> to vector<8x8xf32>
    %45 = vector.shape_cast %41 : vector<8x8xf32> to vector<1x8x8xf32>
    %46 = vector.shape_cast %42 : vector<8x8xf32> to vector<1x8x8xf32>
    %47 = vector.shape_cast %43 : vector<8x8xf32> to vector<1x8x8xf32>
    %48 = vector.shape_cast %44 : vector<8x8xf32> to vector<1x8x8xf32>
    %49 = tpu.concatenate %45, %46, %47, %48 in 0 : vector<1x8x8xf32>, vector<1x8x8xf32>, vector<1x8x8xf32>, vector<1x8x8xf32> -> vector<4x8x8xf32>
    %50 = vector.extract_strided_slice %31 {offsets = [0, 0], sizes = [8, 8], strides = [1, 1]} : vector<8x32xf32> to vector<8x8xf32>
    %51 = vector.extract_strided_slice %31 {offsets = [0, 8], sizes = [8, 8], strides = [1, 1]} : vector<8x32xf32> to vector<8x8xf32>
    %52 = vector.extract_strided_slice %31 {offsets = [0, 16], sizes = [8, 8], strides = [1, 1]} : vector<8x32xf32> to vector<8x8xf32>
    %53 = vector.extract_strided_slice %31 {offsets = [0, 24], sizes = [8, 8], strides = [1, 1]} : vector<8x32xf32> to vector<8x8xf32>
    %54 = vector.shape_cast %50 : vector<8x8xf32> to vector<1x8x8xf32>
    %55 = vector.shape_cast %51 : vector<8x8xf32> to vector<1x8x8xf32>
    %56 = vector.shape_cast %52 : vector<8x8xf32> to vector<1x8x8xf32>
    %57 = vector.shape_cast %53 : vector<8x8xf32> to vector<1x8x8xf32>
    %58 = tpu.concatenate %54, %55, %56, %57 in 0 : vector<1x8x8xf32>, vector<1x8x8xf32>, vector<1x8x8xf32>, vector<1x8x8xf32> -> vector<4x8x8xf32>
    %cst_21 = arith.constant dense<0.000000e+00> : vector<4x8x8xf32>
    %59 = tpu.matmul %40, %49, %cst_21 {dimension_numbers = #tpu.dot_dimension_numbers<[2], [2], [1], [1], [0, 0, 0, 1, 1, 1], [0], [0]>} : vector<4x8x8xf32>, vector<4x8x8xf32>, vector<4x8x8xf32> -> vector<4x8x8xf32>
    %cst_22 = arith.constant 0.353553385 : f32
    %60 = vector.broadcast %cst_22 : f32 to vector<4x8x8xf32>
    %61 = arith.mulf %59, %60 : vector<4x8x8xf32>
    %62 = vector.shape_cast %3 : vector<1x8xi1> to vector<1x1x8xi1>
    %cst_23 = arith.constant -1.000000e+10 : f32
    %63 = vector.shape_cast %62 : vector<1x1x8xi1> to vector<1x1x8xi1>
    %64 = vector.broadcast %63 : vector<1x1x8xi1> to vector<4x8x8xi1>
    %65 = vector.broadcast %cst_23 : f32 to vector<4x8x8xf32>
    %66 = arith.select %64, %61, %65 : vector<4x8x8xi1>, vector<4x8x8xf32>
    %cst_24 = arith.constant dense<0xFF800000> : vector<4x8xf32>
    %67 = vector.multi_reduction <maximumf>, %66, %cst_24 [2] : vector<4x8x8xf32> to vector<4x8xf32>
    %68 = vector.shape_cast %67 : vector<4x8xf32> to vector<4x8x1xf32>
    %69 = vector.broadcast %68 : vector<4x8x1xf32> to vector<4x8x8xf32>
    %70 = arith.subf %66, %69 : vector<4x8x8xf32>
    %71 = math.exp %70 : vector<4x8x8xf32>
    %cst_25 = arith.constant dense<0.000000e+00> : vector<4x8xf32>
    %72 = vector.multi_reduction <add>, %71, %cst_25 [2] : vector<4x8x8xf32> to vector<4x8xf32>
    %73 = vector.shape_cast %72 : vector<4x8xf32> to vector<4x8x1xf32>
    %74 = tpu.reciprocal %73 {approx = true} : vector<4x8x1xf32> -> vector<4x8x1xf32>
    %75 = vector.broadcast %74 : vector<4x8x1xf32> to vector<4x8x8xf32>
    %76 = arith.mulf %71, %75 : vector<4x8x8xf32>
    %cst_26 = arith.constant dense<0.000000e+00> : vector<4x8x8xf32>
    %77 = tpu.matmul %76, %58, %cst_26 {dimension_numbers = #tpu.dot_dimension_numbers<[2], [1], [1], [2], [0, 0, 0, 1, 1, 2], [0], [0]>} : vector<4x8x8xf32>, vector<4x8x8xf32>, vector<4x8x8xf32> -> vector<4x8x8xf32>
    %78 = vector.extract_strided_slice %77 {offsets = [0, 0, 0], sizes = [1, 8, 8], strides = [1, 1, 1]} : vector<4x8x8xf32> to vector<1x8x8xf32>
    %79 = vector.shape_cast %78 : vector<1x8x8xf32> to vector<8x8xf32>
    %80 = vector.extract_strided_slice %77 {offsets = [1, 0, 0], sizes = [1, 8, 8], strides = [1, 1, 1]} : vector<4x8x8xf32> to vector<1x8x8xf32>
    %81 = vector.shape_cast %80 : vector<1x8x8xf32> to vector<8x8xf32>
    %82 = vector.extract_strided_slice %77 {offsets = [2, 0, 0], sizes = [1, 8, 8], strides = [1, 1, 1]} : vector<4x8x8xf32> to vector<1x8x8xf32>
    %83 = vector.shape_cast %82 : vector<1x8x8xf32> to vector<8x8xf32>
    %84 = vector.extract_strided_slice %77 {offsets = [3, 0, 0], sizes = [1, 8, 8], strides = [1, 1, 1]} : vector<4x8x8xf32> to vector<1x8x8xf32>
    %85 = vector.shape_cast %84 : vector<1x8x8xf32> to vector<8x8xf32>
    %86 = tpu.concatenate %79, %81, %83, %85 in 1 : vector<8x8xf32>, vector<8x8xf32>, vector<8x8xf32>, vector<8x8xf32> -> vector<8x32xf32>
    %87 = vector.extract_strided_slice %11 {offsets = [3, 0, 0], sizes = [1, 32, 32], strides = [1, 1, 1]} : vector<4x32x32xf32> to vector<1x32x32xf32>
    %88 = vector.shape_cast %87 : vector<1x32x32xf32> to vector<32x32xf32>
    %cst_27 = arith.constant dense<0.000000e+00> : vector<8x32xf32>
    %89 = tpu.matmul %86, %88, %cst_27 {dimension_numbers = #tpu.dot_dimension_numbers<[1], [0], [0], [1], [0, 0, 1, 1], [], []>} : vector<8x32xf32>, vector<32x32xf32>, vector<8x32xf32> -> vector<8x32xf32>
    %90 = vector.extract_strided_slice %13 {offsets = [3, 0], sizes = [1, 32], strides = [1, 1]} : vector<4x32xf32> to vector<1x32xf32>
    %91 = vector.broadcast %90 : vector<1x32xf32> to vector<8x32xf32>
    %92 = arith.addf %89, %91 : vector<8x32xf32>
    %93 = vector.extract_strided_slice %7 {offsets = [0, 0], sizes = [1, 32], strides = [1, 1]} : vector<2x32xf32> to vector<1x32xf32>
    %94 = vector.extract_strided_slice %9 {offsets = [0, 0], sizes = [1, 32], strides = [1, 1]} : vector<2x32xf32> to vector<1x32xf32>
    %95 = arith.addf %92, %5 : vector<8x32xf32>
    %cst_28 = arith.constant dense<0.000000e+00> : vector<8xf32>
    %96 = vector.multi_reduction <add>, %95, %cst_28 [1] : vector<8x32xf32> to vector<8xf32>
    %97 = vector.shape_cast %96 : vector<8xf32> to vector<8x1xf32>
    %cst_29 = arith.constant 3.200000e+01 : f32
    %98 = vector.broadcast %cst_29 : f32 to vector<8x1xf32>
    %99 = arith.divf %97, %98 : vector<8x1xf32>
    %100 = vector.broadcast %99 : vector<8x1xf32> to vector<8x32xf32>
    %101 = arith.subf %95, %100 : vector<8x32xf32>
    %102 = arith.mulf %101, %101 : vector<8x32xf32>
    %cst_30 = arith.constant dense<0.000000e+00> : vector<8xf32>
    %103 = vector.multi_reduction <add>, %102, %cst_30 [1] : vector<8x32xf32> to vector<8xf32>
    %104 = vector.shape_cast %103 : vector<8xf32> to vector<8x1xf32>
    %cst_31 = arith.constant 3.200000e+01 : f32
    %105 = vector.broadcast %cst_31 : f32 to vector<8x1xf32>
    %106 = arith.divf %104, %105 : vector<8x1xf32>
    %107 = vector.broadcast %99 : vector<8x1xf32> to vector<8x32xf32>
    %108 = arith.subf %95, %107 : vector<8x32xf32>
    %cst_32 = arith.constant 9.99999974E-6 : f32
    %109 = vector.broadcast %cst_32 : f32 to vector<8x1xf32>
    %110 = arith.addf %106, %109 : vector<8x1xf32>
    %111 = math.rsqrt %110 : vector<8x1xf32>
    %112 = vector.broadcast %111 : vector<8x1xf32> to vector<8x32xf32>
    %113 = arith.mulf %108, %112 : vector<8x32xf32>
    %114 = vector.broadcast %93 : vector<1x32xf32> to vector<8x32xf32>
    %115 = arith.mulf %113, %114 : vector<8x32xf32>
    %116 = vector.broadcast %94 : vector<1x32xf32> to vector<8x32xf32>
    %117 = arith.addf %115, %116 : vector<8x32xf32>
    %c0_33 = arith.constant 0 : index
    %c0_34 = arith.constant 0 : index
    %c0_35 = arith.constant 0 : index
    %118 = vector.load %arg9[%c0_33, %c0_34, %c0_35] : memref<2x32x64xf32, #tpu.memory_space<vmem>>, vector<1x32x64xf32>
    %119 = vector.shape_cast %118 : vector<1x32x64xf32> to vector<32x64xf32>
    %c0_36 = arith.constant 0 : index
    %c0_37 = arith.constant 0 : index
    %c0_38 = arith.constant 0 : index
    %120 = vector.load %arg10[%c0_36, %c0_37, %c0_38] : memref<2x1x64xf32, #tpu.memory_space<vmem>>, vector<1x1x64xf32>
    %121 = vector.shape_cast %120 : vector<1x1x64xf32> to vector<1x64xf32>
    %c0_39 = arith.constant 0 : index
    %c0_40 = arith.constant 0 : index
    %c0_41 = arith.constant 0 : index
    %122 = vector.load %arg11[%c0_39, %c0_40, %c0_41] : memref<2x64x32xf32, #tpu.memory_space<vmem>>, vector<1x64x32xf32>
    %123 = vector.shape_cast %122 : vector<1x64x32xf32> to vector<64x32xf32>
    %c0_42 = arith.constant 0 : index
    %c0_43 = arith.constant 0 : index
    %c0_44 = arith.constant 0 : index
    %124 = vector.load %arg12[%c0_42, %c0_43, %c0_44] : memref<2x1x32xf32, #tpu.memory_space<vmem>>, vector<1x1x32xf32>
    %125 = vector.shape_cast %124 : vector<1x1x32xf32> to vector<1x32xf32>
    %cst_45 = arith.constant dense<0.000000e+00> : vector<8x64xf32>
    %126 = tpu.matmul %117, %119, %cst_45 {dimension_numbers = #tpu.dot_dimension_numbers<[1], [0], [0], [1], [0, 0, 1, 1], [], []>} : vector<8x32xf32>, vector<32x64xf32>, vector<8x64xf32> -> vector<8x64xf32>
    %127 = vector.broadcast %121 : vector<1x64xf32> to vector<8x64xf32>
    %128 = arith.addf %126, %127 : vector<8x64xf32>
    %cst_46 = arith.constant 0.000000e+00 : f32
    %129 = vector.broadcast %cst_46 : f32 to vector<8x64xf32>
    %130 = arith.maximumf %128, %129 : vector<8x64xf32>
    %cst_47 = arith.constant dense<0.000000e+00> : vector<8x32xf32>
    %131 = tpu.matmul %130, %123, %cst_47 {dimension_numbers = #tpu.dot_dimension_numbers<[1], [0], [0], [1], [0, 0, 1, 1], [], []>} : vector<8x64xf32>, vector<64x32xf32>, vector<8x32xf32> -> vector<8x32xf32>
    %132 = vector.broadcast %125 : vector<1x32xf32> to vector<8x32xf32>
    %133 = arith.addf %131, %132 : vector<8x32xf32>
    %134 = vector.extract_strided_slice %7 {offsets = [1, 0], sizes = [1, 32], strides = [1, 1]} : vector<2x32xf32> to vector<1x32xf32>
    %135 = vector.extract_strided_slice %9 {offsets = [1, 0], sizes = [1, 32], strides = [1, 1]} : vector<2x32xf32> to vector<1x32xf32>
    %136 = arith.addf %133, %117 : vector<8x32xf32>
    %cst_48 = arith.constant dense<0.000000e+00> : vector<8xf32>
    %137 = vector.multi_reduction <add>, %136, %cst_48 [1] : vector<8x32xf32> to vector<8xf32>
    %138 = vector.shape_cast %137 : vector<8xf32> to vector<8x1xf32>
    %cst_49 = arith.constant 3.200000e+01 : f32
    %139 = vector.broadcast %cst_49 : f32 to vector<8x1xf32>
    %140 = arith.divf %138, %139 : vector<8x1xf32>
    %141 = vector.broadcast %140 : vector<8x1xf32> to vector<8x32xf32>
    %142 = arith.subf %136, %141 : vector<8x32xf32>
    %143 = arith.mulf %142, %142 : vector<8x32xf32>
    %cst_50 = arith.constant dense<0.000000e+00> : vector<8xf32>
    %144 = vector.multi_reduction <add>, %143, %cst_50 [1] : vector<8x32xf32> to vector<8xf32>
    %145 = vector.shape_cast %144 : vector<8xf32> to vector<8x1xf32>
    %cst_51 = arith.constant 3.200000e+01 : f32
    %146 = vector.broadcast %cst_51 : f32 to vector<8x1xf32>
    %147 = arith.divf %145, %146 : vector<8x1xf32>
    %148 = vector.broadcast %140 : vector<8x1xf32> to vector<8x32xf32>
    %149 = arith.subf %136, %148 : vector<8x32xf32>
    %cst_52 = arith.constant 9.99999974E-6 : f32
    %150 = vector.broadcast %cst_52 : f32 to vector<8x1xf32>
    %151 = arith.addf %147, %150 : vector<8x1xf32>
    %152 = math.rsqrt %151 : vector<8x1xf32>
    %153 = vector.broadcast %152 : vector<8x1xf32> to vector<8x32xf32>
    %154 = arith.mulf %149, %153 : vector<8x32xf32>
    %155 = vector.broadcast %134 : vector<1x32xf32> to vector<8x32xf32>
    %156 = arith.mulf %154, %155 : vector<8x32xf32>
    %157 = vector.broadcast %135 : vector<1x32xf32> to vector<8x32xf32>
    %158 = arith.addf %156, %157 : vector<8x32xf32>
    %c1 = arith.constant 1 : index
    %c0_53 = arith.constant 0 : index
    %c0_54 = arith.constant 0 : index
    %159 = vector.load %arg7[%c1, %c0_53, %c0_54] : memref<2x2x32xf32, #tpu.memory_space<vmem>>, vector<1x2x32xf32>
    %160 = vector.shape_cast %159 : vector<1x2x32xf32> to vector<2x32xf32>
    %c1_55 = arith.constant 1 : index
    %c0_56 = arith.constant 0 : index
    %c0_57 = arith.constant 0 : index
    %161 = vector.load %arg8[%c1_55, %c0_56, %c0_57] : memref<2x2x32xf32, #tpu.memory_space<vmem>>, vector<1x2x32xf32>
    %162 = vector.shape_cast %161 : vector<1x2x32xf32> to vector<2x32xf32>
    %c1_58 = arith.constant 1 : index
    %c0_59 = arith.constant 0 : index
    %c0_60 = arith.constant 0 : index
    %c0_61 = arith.constant 0 : index
    %163 = vector.load %arg5[%c1_58, %c0_59, %c0_60, %c0_61] : memref<2x4x32x32xf32, #tpu.memory_space<vmem>>, vector<1x4x32x32xf32>
    %164 = vector.shape_cast %163 : vector<1x4x32x32xf32> to vector<4x32x32xf32>
    %c1_62 = arith.constant 1 : index
    %c0_63 = arith.constant 0 : index
    %c0_64 = arith.constant 0 : index
    %165 = vector.load %arg6[%c1_62, %c0_63, %c0_64] : memref<2x4x32xf32, #tpu.memory_space<vmem>>, vector<1x4x32xf32>
    %166 = vector.shape_cast %165 : vector<1x4x32xf32> to vector<4x32xf32>
    %167 = vector.extract_strided_slice %164 {offsets = [0, 0, 0], sizes = [1, 32, 32], strides = [1, 1, 1]} : vector<4x32x32xf32> to vector<1x32x32xf32>
    %168 = vector.shape_cast %167 : vector<1x32x32xf32> to vector<32x32xf32>
    %cst_65 = arith.constant dense<0.000000e+00> : vector<8x32xf32>
    %169 = tpu.matmul %158, %168, %cst_65 {dimension_numbers = #tpu.dot_dimension_numbers<[1], [0], [0], [1], [0, 0, 1, 1], [], []>} : vector<8x32xf32>, vector<32x32xf32>, vector<8x32xf32> -> vector<8x32xf32>
    %170 = vector.extract_strided_slice %166 {offsets = [0, 0], sizes = [1, 32], strides = [1, 1]} : vector<4x32xf32> to vector<1x32xf32>
    %171 = vector.broadcast %170 : vector<1x32xf32> to vector<8x32xf32>
    %172 = arith.addf %169, %171 : vector<8x32xf32>
    %173 = vector.extract_strided_slice %164 {offsets = [1, 0, 0], sizes = [1, 32, 32], strides = [1, 1, 1]} : vector<4x32x32xf32> to vector<1x32x32xf32>
    %174 = vector.shape_cast %173 : vector<1x32x32xf32> to vector<32x32xf32>
    %cst_66 = arith.constant dense<0.000000e+00> : vector<8x32xf32>
    %175 = tpu.matmul %158, %174, %cst_66 {dimension_numbers = #tpu.dot_dimension_numbers<[1], [0], [0], [1], [0, 0, 1, 1], [], []>} : vector<8x32xf32>, vector<32x32xf32>, vector<8x32xf32> -> vector<8x32xf32>
    %176 = vector.extract_strided_slice %166 {offsets = [1, 0], sizes = [1, 32], strides = [1, 1]} : vector<4x32xf32> to vector<1x32xf32>
    %177 = vector.broadcast %176 : vector<1x32xf32> to vector<8x32xf32>
    %178 = arith.addf %175, %177 : vector<8x32xf32>
    %179 = vector.extract_strided_slice %164 {offsets = [2, 0, 0], sizes = [1, 32, 32], strides = [1, 1, 1]} : vector<4x32x32xf32> to vector<1x32x32xf32>
    %180 = vector.shape_cast %179 : vector<1x32x32xf32> to vector<32x32xf32>
    %cst_67 = arith.constant dense<0.000000e+00> : vector<8x32xf32>
    %181 = tpu.matmul %158, %180, %cst_67 {dimension_numbers = #tpu.dot_dimension_numbers<[1], [0], [0], [1], [0, 0, 1, 1], [], []>} : vector<8x32xf32>, vector<32x32xf32>, vector<8x32xf32> -> vector<8x32xf32>
    %182 = vector.extract_strided_slice %166 {offsets = [2, 0], sizes = [1, 32], strides = [1, 1]} : vector<4x32xf32> to vector<1x32xf32>
    %183 = vector.broadcast %182 : vector<1x32xf32> to vector<8x32xf32>
    %184 = arith.addf %181, %183 : vector<8x32xf32>
    %185 = vector.extract_strided_slice %172 {offsets = [0, 0], sizes = [8, 8], strides = [1, 1]} : vector<8x32xf32> to vector<8x8xf32>
    %186 = vector.extract_strided_slice %172 {offsets = [0, 8], sizes = [8, 8], strides = [1, 1]} : vector<8x32xf32> to vector<8x8xf32>
    %187 = vector.extract_strided_slice %172 {offsets = [0, 16], sizes = [8, 8], strides = [1, 1]} : vector<8x32xf32> to vector<8x8xf32>
    %188 = vector.extract_strided_slice %172 {offsets = [0, 24], sizes = [8, 8], strides = [1, 1]} : vector<8x32xf32> to vector<8x8xf32>
    %189 = vector.shape_cast %185 : vector<8x8xf32> to vector<1x8x8xf32>
    %190 = vector.shape_cast %186 : vector<8x8xf32> to vector<1x8x8xf32>
    %191 = vector.shape_cast %187 : vector<8x8xf32> to vector<1x8x8xf32>
    %192 = vector.shape_cast %188 : vector<8x8xf32> to vector<1x8x8xf32>
    %193 = tpu.concatenate %189, %190, %191, %192 in 0 : vector<1x8x8xf32>, vector<1x8x8xf32>, vector<1x8x8xf32>, vector<1x8x8xf32> -> vector<4x8x8xf32>
    %194 = vector.extract_strided_slice %178 {offsets = [0, 0], sizes = [8, 8], strides = [1, 1]} : vector<8x32xf32> to vector<8x8xf32>
    %195 = vector.extract_strided_slice %178 {offsets = [0, 8], sizes = [8, 8], strides = [1, 1]} : vector<8x32xf32> to vector<8x8xf32>
    %196 = vector.extract_strided_slice %178 {offsets = [0, 16], sizes = [8, 8], strides = [1, 1]} : vector<8x32xf32> to vector<8x8xf32>
    %197 = vector.extract_strided_slice %178 {offsets = [0, 24], sizes = [8, 8], strides = [1, 1]} : vector<8x32xf32> to vector<8x8xf32>
    %198 = vector.shape_cast %194 : vector<8x8xf32> to vector<1x8x8xf32>
    %199 = vector.shape_cast %195 : vector<8x8xf32> to vector<1x8x8xf32>
    %200 = vector.shape_cast %196 : vector<8x8xf32> to vector<1x8x8xf32>
    %201 = vector.shape_cast %197 : vector<8x8xf32> to vector<1x8x8xf32>
    %202 = tpu.concatenate %198, %199, %200, %201 in 0 : vector<1x8x8xf32>, vector<1x8x8xf32>, vector<1x8x8xf32>, vector<1x8x8xf32> -> vector<4x8x8xf32>
    %203 = vector.extract_strided_slice %184 {offsets = [0, 0], sizes = [8, 8], strides = [1, 1]} : vector<8x32xf32> to vector<8x8xf32>
    %204 = vector.extract_strided_slice %184 {offsets = [0, 8], sizes = [8, 8], strides = [1, 1]} : vector<8x32xf32> to vector<8x8xf32>
    %205 = vector.extract_strided_slice %184 {offsets = [0, 16], sizes = [8, 8], strides = [1, 1]} : vector<8x32xf32> to vector<8x8xf32>
    %206 = vector.extract_strided_slice %184 {offsets = [0, 24], sizes = [8, 8], strides = [1, 1]} : vector<8x32xf32> to vector<8x8xf32>
    %207 = vector.shape_cast %203 : vector<8x8xf32> to vector<1x8x8xf32>
    %208 = vector.shape_cast %204 : vector<8x8xf32> to vector<1x8x8xf32>
    %209 = vector.shape_cast %205 : vector<8x8xf32> to vector<1x8x8xf32>
    %210 = vector.shape_cast %206 : vector<8x8xf32> to vector<1x8x8xf32>
    %211 = tpu.concatenate %207, %208, %209, %210 in 0 : vector<1x8x8xf32>, vector<1x8x8xf32>, vector<1x8x8xf32>, vector<1x8x8xf32> -> vector<4x8x8xf32>
    %cst_68 = arith.constant dense<0.000000e+00> : vector<4x8x8xf32>
    %212 = tpu.matmul %193, %202, %cst_68 {dimension_numbers = #tpu.dot_dimension_numbers<[2], [2], [1], [1], [0, 0, 0, 1, 1, 1], [0], [0]>} : vector<4x8x8xf32>, vector<4x8x8xf32>, vector<4x8x8xf32> -> vector<4x8x8xf32>
    %cst_69 = arith.constant 0.353553385 : f32
    %213 = vector.broadcast %cst_69 : f32 to vector<4x8x8xf32>
    %214 = arith.mulf %212, %213 : vector<4x8x8xf32>
    %215 = vector.shape_cast %3 : vector<1x8xi1> to vector<1x1x8xi1>
    %cst_70 = arith.constant -1.000000e+10 : f32
    %216 = vector.shape_cast %215 : vector<1x1x8xi1> to vector<1x1x8xi1>
    %217 = vector.broadcast %216 : vector<1x1x8xi1> to vector<4x8x8xi1>
    %218 = vector.broadcast %cst_70 : f32 to vector<4x8x8xf32>
    %219 = arith.select %217, %214, %218 : vector<4x8x8xi1>, vector<4x8x8xf32>
    %cst_71 = arith.constant dense<0xFF800000> : vector<4x8xf32>
    %220 = vector.multi_reduction <maximumf>, %219, %cst_71 [2] : vector<4x8x8xf32> to vector<4x8xf32>
    %221 = vector.shape_cast %220 : vector<4x8xf32> to vector<4x8x1xf32>
    %222 = vector.broadcast %221 : vector<4x8x1xf32> to vector<4x8x8xf32>
    %223 = arith.subf %219, %222 : vector<4x8x8xf32>
    %224 = math.exp %223 : vector<4x8x8xf32>
    %cst_72 = arith.constant dense<0.000000e+00> : vector<4x8xf32>
    %225 = vector.multi_reduction <add>, %224, %cst_72 [2] : vector<4x8x8xf32> to vector<4x8xf32>
    %226 = vector.shape_cast %225 : vector<4x8xf32> to vector<4x8x1xf32>
    %227 = tpu.reciprocal %226 {approx = true} : vector<4x8x1xf32> -> vector<4x8x1xf32>
    %228 = vector.broadcast %227 : vector<4x8x1xf32> to vector<4x8x8xf32>
    %229 = arith.mulf %224, %228 : vector<4x8x8xf32>
    %cst_73 = arith.constant dense<0.000000e+00> : vector<4x8x8xf32>
    %230 = tpu.matmul %229, %211, %cst_73 {dimension_numbers = #tpu.dot_dimension_numbers<[2], [1], [1], [2], [0, 0, 0, 1, 1, 2], [0], [0]>} : vector<4x8x8xf32>, vector<4x8x8xf32>, vector<4x8x8xf32> -> vector<4x8x8xf32>
    %231 = vector.extract_strided_slice %230 {offsets = [0, 0, 0], sizes = [1, 8, 8], strides = [1, 1, 1]} : vector<4x8x8xf32> to vector<1x8x8xf32>
    %232 = vector.shape_cast %231 : vector<1x8x8xf32> to vector<8x8xf32>
    %233 = vector.extract_strided_slice %230 {offsets = [1, 0, 0], sizes = [1, 8, 8], strides = [1, 1, 1]} : vector<4x8x8xf32> to vector<1x8x8xf32>
    %234 = vector.shape_cast %233 : vector<1x8x8xf32> to vector<8x8xf32>
    %235 = vector.extract_strided_slice %230 {offsets = [2, 0, 0], sizes = [1, 8, 8], strides = [1, 1, 1]} : vector<4x8x8xf32> to vector<1x8x8xf32>
    %236 = vector.shape_cast %235 : vector<1x8x8xf32> to vector<8x8xf32>
    %237 = vector.extract_strided_slice %230 {offsets = [3, 0, 0], sizes = [1, 8, 8], strides = [1, 1, 1]} : vector<4x8x8xf32> to vector<1x8x8xf32>
    %238 = vector.shape_cast %237 : vector<1x8x8xf32> to vector<8x8xf32>
    %239 = tpu.concatenate %232, %234, %236, %238 in 1 : vector<8x8xf32>, vector<8x8xf32>, vector<8x8xf32>, vector<8x8xf32> -> vector<8x32xf32>
    %240 = vector.extract_strided_slice %164 {offsets = [3, 0, 0], sizes = [1, 32, 32], strides = [1, 1, 1]} : vector<4x32x32xf32> to vector<1x32x32xf32>
    %241 = vector.shape_cast %240 : vector<1x32x32xf32> to vector<32x32xf32>
    %cst_74 = arith.constant dense<0.000000e+00> : vector<8x32xf32>
    %242 = tpu.matmul %239, %241, %cst_74 {dimension_numbers = #tpu.dot_dimension_numbers<[1], [0], [0], [1], [0, 0, 1, 1], [], []>} : vector<8x32xf32>, vector<32x32xf32>, vector<8x32xf32> -> vector<8x32xf32>
    %243 = vector.extract_strided_slice %166 {offsets = [3, 0], sizes = [1, 32], strides = [1, 1]} : vector<4x32xf32> to vector<1x32xf32>
    %244 = vector.broadcast %243 : vector<1x32xf32> to vector<8x32xf32>
    %245 = arith.addf %242, %244 : vector<8x32xf32>
    %246 = vector.extract_strided_slice %160 {offsets = [0, 0], sizes = [1, 32], strides = [1, 1]} : vector<2x32xf32> to vector<1x32xf32>
    %247 = vector.extract_strided_slice %162 {offsets = [0, 0], sizes = [1, 32], strides = [1, 1]} : vector<2x32xf32> to vector<1x32xf32>
    %248 = arith.addf %245, %158 : vector<8x32xf32>
    %cst_75 = arith.constant dense<0.000000e+00> : vector<8xf32>
    %249 = vector.multi_reduction <add>, %248, %cst_75 [1] : vector<8x32xf32> to vector<8xf32>
    %250 = vector.shape_cast %249 : vector<8xf32> to vector<8x1xf32>
    %cst_76 = arith.constant 3.200000e+01 : f32
    %251 = vector.broadcast %cst_76 : f32 to vector<8x1xf32>
    %252 = arith.divf %250, %251 : vector<8x1xf32>
    %253 = vector.broadcast %252 : vector<8x1xf32> to vector<8x32xf32>
    %254 = arith.subf %248, %253 : vector<8x32xf32>
    %255 = arith.mulf %254, %254 : vector<8x32xf32>
    %cst_77 = arith.constant dense<0.000000e+00> : vector<8xf32>
    %256 = vector.multi_reduction <add>, %255, %cst_77 [1] : vector<8x32xf32> to vector<8xf32>
    %257 = vector.shape_cast %256 : vector<8xf32> to vector<8x1xf32>
    %cst_78 = arith.constant 3.200000e+01 : f32
    %258 = vector.broadcast %cst_78 : f32 to vector<8x1xf32>
    %259 = arith.divf %257, %258 : vector<8x1xf32>
    %260 = vector.broadcast %252 : vector<8x1xf32> to vector<8x32xf32>
    %261 = arith.subf %248, %260 : vector<8x32xf32>
    %cst_79 = arith.constant 9.99999974E-6 : f32
    %262 = vector.broadcast %cst_79 : f32 to vector<8x1xf32>
    %263 = arith.addf %259, %262 : vector<8x1xf32>
    %264 = math.rsqrt %263 : vector<8x1xf32>
    %265 = vector.broadcast %264 : vector<8x1xf32> to vector<8x32xf32>
    %266 = arith.mulf %261, %265 : vector<8x32xf32>
    %267 = vector.broadcast %246 : vector<1x32xf32> to vector<8x32xf32>
    %268 = arith.mulf %266, %267 : vector<8x32xf32>
    %269 = vector.broadcast %247 : vector<1x32xf32> to vector<8x32xf32>
    %270 = arith.addf %268, %269 : vector<8x32xf32>
    %c1_80 = arith.constant 1 : index
    %c0_81 = arith.constant 0 : index
    %c0_82 = arith.constant 0 : index
    %271 = vector.load %arg9[%c1_80, %c0_81, %c0_82] : memref<2x32x64xf32, #tpu.memory_space<vmem>>, vector<1x32x64xf32>
    %272 = vector.shape_cast %271 : vector<1x32x64xf32> to vector<32x64xf32>
    %c1_83 = arith.constant 1 : index
    %c0_84 = arith.constant 0 : index
    %c0_85 = arith.constant 0 : index
    %273 = vector.load %arg10[%c1_83, %c0_84, %c0_85] : memref<2x1x64xf32, #tpu.memory_space<vmem>>, vector<1x1x64xf32>
    %274 = vector.shape_cast %273 : vector<1x1x64xf32> to vector<1x64xf32>
    %c1_86 = arith.constant 1 : index
    %c0_87 = arith.constant 0 : index
    %c0_88 = arith.constant 0 : index
    %275 = vector.load %arg11[%c1_86, %c0_87, %c0_88] : memref<2x64x32xf32, #tpu.memory_space<vmem>>, vector<1x64x32xf32>
    %276 = vector.shape_cast %275 : vector<1x64x32xf32> to vector<64x32xf32>
    %c1_89 = arith.constant 1 : index
    %c0_90 = arith.constant 0 : index
    %c0_91 = arith.constant 0 : index
    %277 = vector.load %arg12[%c1_89, %c0_90, %c0_91] : memref<2x1x32xf32, #tpu.memory_space<vmem>>, vector<1x1x32xf32>
    %278 = vector.shape_cast %277 : vector<1x1x32xf32> to vector<1x32xf32>
    %cst_92 = arith.constant dense<0.000000e+00> : vector<8x64xf32>
    %279 = tpu.matmul %270, %272, %cst_92 {dimension_numbers = #tpu.dot_dimension_numbers<[1], [0], [0], [1], [0, 0, 1, 1], [], []>} : vector<8x32xf32>, vector<32x64xf32>, vector<8x64xf32> -> vector<8x64xf32>
    %280 = vector.broadcast %274 : vector<1x64xf32> to vector<8x64xf32>
    %281 = arith.addf %279, %280 : vector<8x64xf32>
    %cst_93 = arith.constant 0.000000e+00 : f32
    %282 = vector.broadcast %cst_93 : f32 to vector<8x64xf32>
    %283 = arith.maximumf %281, %282 : vector<8x64xf32>
    %cst_94 = arith.constant dense<0.000000e+00> : vector<8x32xf32>
    %284 = tpu.matmul %283, %276, %cst_94 {dimension_numbers = #tpu.dot_dimension_numbers<[1], [0], [0], [1], [0, 0, 1, 1], [], []>} : vector<8x64xf32>, vector<64x32xf32>, vector<8x32xf32> -> vector<8x32xf32>
    %285 = vector.broadcast %278 : vector<1x32xf32> to vector<8x32xf32>
    %286 = arith.addf %284, %285 : vector<8x32xf32>
    %287 = vector.extract_strided_slice %160 {offsets = [1, 0], sizes = [1, 32], strides = [1, 1]} : vector<2x32xf32> to vector<1x32xf32>
    %288 = vector.extract_strided_slice %162 {offsets = [1, 0], sizes = [1, 32], strides = [1, 1]} : vector<2x32xf32> to vector<1x32xf32>
    %289 = arith.addf %286, %270 : vector<8x32xf32>
    %cst_95 = arith.constant dense<0.000000e+00> : vector<8xf32>
    %290 = vector.multi_reduction <add>, %289, %cst_95 [1] : vector<8x32xf32> to vector<8xf32>
    %291 = vector.shape_cast %290 : vector<8xf32> to vector<8x1xf32>
    %cst_96 = arith.constant 3.200000e+01 : f32
    %292 = vector.broadcast %cst_96 : f32 to vector<8x1xf32>
    %293 = arith.divf %291, %292 : vector<8x1xf32>
    %294 = vector.broadcast %293 : vector<8x1xf32> to vector<8x32xf32>
    %295 = arith.subf %289, %294 : vector<8x32xf32>
    %296 = arith.mulf %295, %295 : vector<8x32xf32>
    %cst_97 = arith.constant dense<0.000000e+00> : vector<8xf32>
    %297 = vector.multi_reduction <add>, %296, %cst_97 [1] : vector<8x32xf32> to vector<8xf32>
    %298 = vector.shape_cast %297 : vector<8xf32> to vector<8x1xf32>
    %cst_98 = arith.constant 3.200000e+01 : f32
    %299 = vector.broadcast %cst_98 : f32 to vector<8x1xf32>
    %300 = arith.divf %298, %299 : vector<8x1xf32>
    %301 = vector.broadcast %293 : vector<8x1xf32> to vector<8x32xf32>
    %302 = arith.subf %289, %301 : vector<8x32xf32>
    %cst_99 = arith.constant 9.99999974E-6 : f32
    %303 = vector.broadcast %cst_99 : f32 to vector<8x1xf32>
    %304 = arith.addf %300, %303 : vector<8x1xf32>
    %305 = math.rsqrt %304 : vector<8x1xf32>
    %306 = vector.broadcast %305 : vector<8x1xf32> to vector<8x32xf32>
    %307 = arith.mulf %302, %306 : vector<8x32xf32>
    %308 = vector.broadcast %287 : vector<1x32xf32> to vector<8x32xf32>
    %309 = arith.mulf %307, %308 : vector<8x32xf32>
    %310 = vector.broadcast %288 : vector<1x32xf32> to vector<8x32xf32>
    %311 = arith.addf %309, %310 : vector<8x32xf32>
    %312 = tpu.iota {dimensions = array<i32: 0>} : vector<8x8xi32>
    %313 = tpu.iota {dimensions = array<i32: 1>} : vector<8x8xi32>
    %c0_100 = arith.constant 0 : index
    %c0_101 = arith.constant 0 : index
    %c0_102 = arith.constant 0 : index
    %314 = vector.load %arg4[%c0_100, %c0_101, %c0_102] : memref<1x1x8xf32, #tpu.memory_space<vmem>>, vector<1x1x8xf32>
    %315 = vector.shape_cast %314 : vector<1x1x8xf32> to vector<1x8xf32>
    %cst_103 = arith.constant 0.000000e+00 : f32
    %316 = vector.broadcast %cst_103 : f32 to vector<1x8xf32>
    %317 = arith.cmpf one, %315, %316 : vector<1x8xf32>
    %318 = arith.cmpi sge, %312, %313 : vector<8x8xi32>
    %319 = vector.broadcast %317 : vector<1x8xi1> to vector<8x8xi1>
    %320 = arith.andi %319, %318 : vector<8x8xi1>
    %c0_104 = arith.constant 0 : index
    %c0_105 = arith.constant 0 : index
    %c0_106 = arith.constant 0 : index
    %321 = vector.load %arg2[%c0_104, %c0_105, %c0_106] : memref<1x8x32xf32, #tpu.memory_space<vmem>>, vector<1x8x32xf32>
    %322 = vector.shape_cast %321 : vector<1x8x32xf32> to vector<8x32xf32>
    %c0_107 = arith.constant 0 : index
    %c0_108 = arith.constant 0 : index
    %c0_109 = arith.constant 0 : index
    %323 = vector.load %arg17[%c0_107, %c0_108, %c0_109] : memref<2x3x32xf32, #tpu.memory_space<vmem>>, vector<1x3x32xf32>
    %324 = vector.shape_cast %323 : vector<1x3x32xf32> to vector<3x32xf32>
    %c0_110 = arith.constant 0 : index
    %c0_111 = arith.constant 0 : index
    %c0_112 = arith.constant 0 : index
    %325 = vector.load %arg18[%c0_110, %c0_111, %c0_112] : memref<2x3x32xf32, #tpu.memory_space<vmem>>, vector<1x3x32xf32>
    %326 = vector.shape_cast %325 : vector<1x3x32xf32> to vector<3x32xf32>
    %c0_113 = arith.constant 0 : index
    %c0_114 = arith.constant 0 : index
    %c0_115 = arith.constant 0 : index
    %c0_116 = arith.constant 0 : index
    %327 = vector.load %arg13[%c0_113, %c0_114, %c0_115, %c0_116] : memref<2x4x32x32xf32, #tpu.memory_space<vmem>>, vector<1x4x32x32xf32>
    %328 = vector.shape_cast %327 : vector<1x4x32x32xf32> to vector<4x32x32xf32>
    %c0_117 = arith.constant 0 : index
    %c0_118 = arith.constant 0 : index
    %c0_119 = arith.constant 0 : index
    %329 = vector.load %arg14[%c0_117, %c0_118, %c0_119] : memref<2x4x32xf32, #tpu.memory_space<vmem>>, vector<1x4x32xf32>
    %330 = vector.shape_cast %329 : vector<1x4x32xf32> to vector<4x32xf32>
    %331 = vector.extract_strided_slice %328 {offsets = [0, 0, 0], sizes = [1, 32, 32], strides = [1, 1, 1]} : vector<4x32x32xf32> to vector<1x32x32xf32>
    %332 = vector.shape_cast %331 : vector<1x32x32xf32> to vector<32x32xf32>
    %cst_120 = arith.constant dense<0.000000e+00> : vector<8x32xf32>
    %333 = tpu.matmul %322, %332, %cst_120 {dimension_numbers = #tpu.dot_dimension_numbers<[1], [0], [0], [1], [0, 0, 1, 1], [], []>} : vector<8x32xf32>, vector<32x32xf32>, vector<8x32xf32> -> vector<8x32xf32>
    %334 = vector.extract_strided_slice %330 {offsets = [0, 0], sizes = [1, 32], strides = [1, 1]} : vector<4x32xf32> to vector<1x32xf32>
    %335 = vector.broadcast %334 : vector<1x32xf32> to vector<8x32xf32>
    %336 = arith.addf %333, %335 : vector<8x32xf32>
    %337 = vector.extract_strided_slice %328 {offsets = [1, 0, 0], sizes = [1, 32, 32], strides = [1, 1, 1]} : vector<4x32x32xf32> to vector<1x32x32xf32>
    %338 = vector.shape_cast %337 : vector<1x32x32xf32> to vector<32x32xf32>
    %cst_121 = arith.constant dense<0.000000e+00> : vector<8x32xf32>
    %339 = tpu.matmul %322, %338, %cst_121 {dimension_numbers = #tpu.dot_dimension_numbers<[1], [0], [0], [1], [0, 0, 1, 1], [], []>} : vector<8x32xf32>, vector<32x32xf32>, vector<8x32xf32> -> vector<8x32xf32>
    %340 = vector.extract_strided_slice %330 {offsets = [1, 0], sizes = [1, 32], strides = [1, 1]} : vector<4x32xf32> to vector<1x32xf32>
    %341 = vector.broadcast %340 : vector<1x32xf32> to vector<8x32xf32>
    %342 = arith.addf %339, %341 : vector<8x32xf32>
    %343 = vector.extract_strided_slice %328 {offsets = [2, 0, 0], sizes = [1, 32, 32], strides = [1, 1, 1]} : vector<4x32x32xf32> to vector<1x32x32xf32>
    %344 = vector.shape_cast %343 : vector<1x32x32xf32> to vector<32x32xf32>
    %cst_122 = arith.constant dense<0.000000e+00> : vector<8x32xf32>
    %345 = tpu.matmul %322, %344, %cst_122 {dimension_numbers = #tpu.dot_dimension_numbers<[1], [0], [0], [1], [0, 0, 1, 1], [], []>} : vector<8x32xf32>, vector<32x32xf32>, vector<8x32xf32> -> vector<8x32xf32>
    %346 = vector.extract_strided_slice %330 {offsets = [2, 0], sizes = [1, 32], strides = [1, 1]} : vector<4x32xf32> to vector<1x32xf32>
    %347 = vector.broadcast %346 : vector<1x32xf32> to vector<8x32xf32>
    %348 = arith.addf %345, %347 : vector<8x32xf32>
    %349 = vector.extract_strided_slice %336 {offsets = [0, 0], sizes = [8, 8], strides = [1, 1]} : vector<8x32xf32> to vector<8x8xf32>
    %350 = vector.extract_strided_slice %336 {offsets = [0, 8], sizes = [8, 8], strides = [1, 1]} : vector<8x32xf32> to vector<8x8xf32>
    %351 = vector.extract_strided_slice %336 {offsets = [0, 16], sizes = [8, 8], strides = [1, 1]} : vector<8x32xf32> to vector<8x8xf32>
    %352 = vector.extract_strided_slice %336 {offsets = [0, 24], sizes = [8, 8], strides = [1, 1]} : vector<8x32xf32> to vector<8x8xf32>
    %353 = vector.shape_cast %349 : vector<8x8xf32> to vector<1x8x8xf32>
    %354 = vector.shape_cast %350 : vector<8x8xf32> to vector<1x8x8xf32>
    %355 = vector.shape_cast %351 : vector<8x8xf32> to vector<1x8x8xf32>
    %356 = vector.shape_cast %352 : vector<8x8xf32> to vector<1x8x8xf32>
    %357 = tpu.concatenate %353, %354, %355, %356 in 0 : vector<1x8x8xf32>, vector<1x8x8xf32>, vector<1x8x8xf32>, vector<1x8x8xf32> -> vector<4x8x8xf32>
    %358 = vector.extract_strided_slice %342 {offsets = [0, 0], sizes = [8, 8], strides = [1, 1]} : vector<8x32xf32> to vector<8x8xf32>
    %359 = vector.extract_strided_slice %342 {offsets = [0, 8], sizes = [8, 8], strides = [1, 1]} : vector<8x32xf32> to vector<8x8xf32>
    %360 = vector.extract_strided_slice %342 {offsets = [0, 16], sizes = [8, 8], strides = [1, 1]} : vector<8x32xf32> to vector<8x8xf32>
    %361 = vector.extract_strided_slice %342 {offsets = [0, 24], sizes = [8, 8], strides = [1, 1]} : vector<8x32xf32> to vector<8x8xf32>
    %362 = vector.shape_cast %358 : vector<8x8xf32> to vector<1x8x8xf32>
    %363 = vector.shape_cast %359 : vector<8x8xf32> to vector<1x8x8xf32>
    %364 = vector.shape_cast %360 : vector<8x8xf32> to vector<1x8x8xf32>
    %365 = vector.shape_cast %361 : vector<8x8xf32> to vector<1x8x8xf32>
    %366 = tpu.concatenate %362, %363, %364, %365 in 0 : vector<1x8x8xf32>, vector<1x8x8xf32>, vector<1x8x8xf32>, vector<1x8x8xf32> -> vector<4x8x8xf32>
    %367 = vector.extract_strided_slice %348 {offsets = [0, 0], sizes = [8, 8], strides = [1, 1]} : vector<8x32xf32> to vector<8x8xf32>
    %368 = vector.extract_strided_slice %348 {offsets = [0, 8], sizes = [8, 8], strides = [1, 1]} : vector<8x32xf32> to vector<8x8xf32>
    %369 = vector.extract_strided_slice %348 {offsets = [0, 16], sizes = [8, 8], strides = [1, 1]} : vector<8x32xf32> to vector<8x8xf32>
    %370 = vector.extract_strided_slice %348 {offsets = [0, 24], sizes = [8, 8], strides = [1, 1]} : vector<8x32xf32> to vector<8x8xf32>
    %371 = vector.shape_cast %367 : vector<8x8xf32> to vector<1x8x8xf32>
    %372 = vector.shape_cast %368 : vector<8x8xf32> to vector<1x8x8xf32>
    %373 = vector.shape_cast %369 : vector<8x8xf32> to vector<1x8x8xf32>
    %374 = vector.shape_cast %370 : vector<8x8xf32> to vector<1x8x8xf32>
    %375 = tpu.concatenate %371, %372, %373, %374 in 0 : vector<1x8x8xf32>, vector<1x8x8xf32>, vector<1x8x8xf32>, vector<1x8x8xf32> -> vector<4x8x8xf32>
    %cst_123 = arith.constant dense<0.000000e+00> : vector<4x8x8xf32>
    %376 = tpu.matmul %357, %366, %cst_123 {dimension_numbers = #tpu.dot_dimension_numbers<[2], [2], [1], [1], [0, 0, 0, 1, 1, 1], [0], [0]>} : vector<4x8x8xf32>, vector<4x8x8xf32>, vector<4x8x8xf32> -> vector<4x8x8xf32>
    %cst_124 = arith.constant 0.353553385 : f32
    %377 = vector.broadcast %cst_124 : f32 to vector<4x8x8xf32>
    %378 = arith.mulf %376, %377 : vector<4x8x8xf32>
    %379 = vector.shape_cast %320 : vector<8x8xi1> to vector<1x8x8xi1>
    %cst_125 = arith.constant -1.000000e+10 : f32
    %380 = vector.shape_cast %379 : vector<1x8x8xi1> to vector<1x8x8xi1>
    %381 = vector.broadcast %380 : vector<1x8x8xi1> to vector<4x8x8xi1>
    %382 = vector.broadcast %cst_125 : f32 to vector<4x8x8xf32>
    %383 = arith.select %381, %378, %382 : vector<4x8x8xi1>, vector<4x8x8xf32>
    %cst_126 = arith.constant dense<0xFF800000> : vector<4x8xf32>
    %384 = vector.multi_reduction <maximumf>, %383, %cst_126 [2] : vector<4x8x8xf32> to vector<4x8xf32>
    %385 = vector.shape_cast %384 : vector<4x8xf32> to vector<4x8x1xf32>
    %386 = vector.broadcast %385 : vector<4x8x1xf32> to vector<4x8x8xf32>
    %387 = arith.subf %383, %386 : vector<4x8x8xf32>
    %388 = math.exp %387 : vector<4x8x8xf32>
    %cst_127 = arith.constant dense<0.000000e+00> : vector<4x8xf32>
    %389 = vector.multi_reduction <add>, %388, %cst_127 [2] : vector<4x8x8xf32> to vector<4x8xf32>
    %390 = vector.shape_cast %389 : vector<4x8xf32> to vector<4x8x1xf32>
    %391 = tpu.reciprocal %390 {approx = true} : vector<4x8x1xf32> -> vector<4x8x1xf32>
    %392 = vector.broadcast %391 : vector<4x8x1xf32> to vector<4x8x8xf32>
    %393 = arith.mulf %388, %392 : vector<4x8x8xf32>
    %cst_128 = arith.constant dense<0.000000e+00> : vector<4x8x8xf32>
    %394 = tpu.matmul %393, %375, %cst_128 {dimension_numbers = #tpu.dot_dimension_numbers<[2], [1], [1], [2], [0, 0, 0, 1, 1, 2], [0], [0]>} : vector<4x8x8xf32>, vector<4x8x8xf32>, vector<4x8x8xf32> -> vector<4x8x8xf32>
    %395 = vector.extract_strided_slice %394 {offsets = [0, 0, 0], sizes = [1, 8, 8], strides = [1, 1, 1]} : vector<4x8x8xf32> to vector<1x8x8xf32>
    %396 = vector.shape_cast %395 : vector<1x8x8xf32> to vector<8x8xf32>
    %397 = vector.extract_strided_slice %394 {offsets = [1, 0, 0], sizes = [1, 8, 8], strides = [1, 1, 1]} : vector<4x8x8xf32> to vector<1x8x8xf32>
    %398 = vector.shape_cast %397 : vector<1x8x8xf32> to vector<8x8xf32>
    %399 = vector.extract_strided_slice %394 {offsets = [2, 0, 0], sizes = [1, 8, 8], strides = [1, 1, 1]} : vector<4x8x8xf32> to vector<1x8x8xf32>
    %400 = vector.shape_cast %399 : vector<1x8x8xf32> to vector<8x8xf32>
    %401 = vector.extract_strided_slice %394 {offsets = [3, 0, 0], sizes = [1, 8, 8], strides = [1, 1, 1]} : vector<4x8x8xf32> to vector<1x8x8xf32>
    %402 = vector.shape_cast %401 : vector<1x8x8xf32> to vector<8x8xf32>
    %403 = tpu.concatenate %396, %398, %400, %402 in 1 : vector<8x8xf32>, vector<8x8xf32>, vector<8x8xf32>, vector<8x8xf32> -> vector<8x32xf32>
    %404 = vector.extract_strided_slice %328 {offsets = [3, 0, 0], sizes = [1, 32, 32], strides = [1, 1, 1]} : vector<4x32x32xf32> to vector<1x32x32xf32>
    %405 = vector.shape_cast %404 : vector<1x32x32xf32> to vector<32x32xf32>
    %cst_129 = arith.constant dense<0.000000e+00> : vector<8x32xf32>
    %406 = tpu.matmul %403, %405, %cst_129 {dimension_numbers = #tpu.dot_dimension_numbers<[1], [0], [0], [1], [0, 0, 1, 1], [], []>} : vector<8x32xf32>, vector<32x32xf32>, vector<8x32xf32> -> vector<8x32xf32>
    %407 = vector.extract_strided_slice %330 {offsets = [3, 0], sizes = [1, 32], strides = [1, 1]} : vector<4x32xf32> to vector<1x32xf32>
    %408 = vector.broadcast %407 : vector<1x32xf32> to vector<8x32xf32>
    %409 = arith.addf %406, %408 : vector<8x32xf32>
    %410 = vector.extract_strided_slice %324 {offsets = [0, 0], sizes = [1, 32], strides = [1, 1]} : vector<3x32xf32> to vector<1x32xf32>
    %411 = vector.extract_strided_slice %326 {offsets = [0, 0], sizes = [1, 32], strides = [1, 1]} : vector<3x32xf32> to vector<1x32xf32>
    %412 = arith.addf %409, %322 : vector<8x32xf32>
    %cst_130 = arith.constant dense<0.000000e+00> : vector<8xf32>
    %413 = vector.multi_reduction <add>, %412, %cst_130 [1] : vector<8x32xf32> to vector<8xf32>
    %414 = vector.shape_cast %413 : vector<8xf32> to vector<8x1xf32>
    %cst_131 = arith.constant 3.200000e+01 : f32
    %415 = vector.broadcast %cst_131 : f32 to vector<8x1xf32>
    %416 = arith.divf %414, %415 : vector<8x1xf32>
    %417 = vector.broadcast %416 : vector<8x1xf32> to vector<8x32xf32>
    %418 = arith.subf %412, %417 : vector<8x32xf32>
    %419 = arith.mulf %418, %418 : vector<8x32xf32>
    %cst_132 = arith.constant dense<0.000000e+00> : vector<8xf32>
    %420 = vector.multi_reduction <add>, %419, %cst_132 [1] : vector<8x32xf32> to vector<8xf32>
    %421 = vector.shape_cast %420 : vector<8xf32> to vector<8x1xf32>
    %cst_133 = arith.constant 3.200000e+01 : f32
    %422 = vector.broadcast %cst_133 : f32 to vector<8x1xf32>
    %423 = arith.divf %421, %422 : vector<8x1xf32>
    %424 = vector.broadcast %416 : vector<8x1xf32> to vector<8x32xf32>
    %425 = arith.subf %412, %424 : vector<8x32xf32>
    %cst_134 = arith.constant 9.99999974E-6 : f32
    %426 = vector.broadcast %cst_134 : f32 to vector<8x1xf32>
    %427 = arith.addf %423, %426 : vector<8x1xf32>
    %428 = math.rsqrt %427 : vector<8x1xf32>
    %429 = vector.broadcast %428 : vector<8x1xf32> to vector<8x32xf32>
    %430 = arith.mulf %425, %429 : vector<8x32xf32>
    %431 = vector.broadcast %410 : vector<1x32xf32> to vector<8x32xf32>
    %432 = arith.mulf %430, %431 : vector<8x32xf32>
    %433 = vector.broadcast %411 : vector<1x32xf32> to vector<8x32xf32>
    %434 = arith.addf %432, %433 : vector<8x32xf32>
    %c0_135 = arith.constant 0 : index
    %c0_136 = arith.constant 0 : index
    %c0_137 = arith.constant 0 : index
    %c0_138 = arith.constant 0 : index
    %435 = vector.load %arg15[%c0_135, %c0_136, %c0_137, %c0_138] : memref<2x4x32x32xf32, #tpu.memory_space<vmem>>, vector<1x4x32x32xf32>
    %436 = vector.shape_cast %435 : vector<1x4x32x32xf32> to vector<4x32x32xf32>
    %c0_139 = arith.constant 0 : index
    %c0_140 = arith.constant 0 : index
    %c0_141 = arith.constant 0 : index
    %437 = vector.load %arg16[%c0_139, %c0_140, %c0_141] : memref<2x4x32xf32, #tpu.memory_space<vmem>>, vector<1x4x32xf32>
    %438 = vector.shape_cast %437 : vector<1x4x32xf32> to vector<4x32xf32>
    %439 = vector.extract_strided_slice %436 {offsets = [0, 0, 0], sizes = [1, 32, 32], strides = [1, 1, 1]} : vector<4x32x32xf32> to vector<1x32x32xf32>
    %440 = vector.shape_cast %439 : vector<1x32x32xf32> to vector<32x32xf32>
    %cst_142 = arith.constant dense<0.000000e+00> : vector<8x32xf32>
    %441 = tpu.matmul %434, %440, %cst_142 {dimension_numbers = #tpu.dot_dimension_numbers<[1], [0], [0], [1], [0, 0, 1, 1], [], []>} : vector<8x32xf32>, vector<32x32xf32>, vector<8x32xf32> -> vector<8x32xf32>
    %442 = vector.extract_strided_slice %438 {offsets = [0, 0], sizes = [1, 32], strides = [1, 1]} : vector<4x32xf32> to vector<1x32xf32>
    %443 = vector.broadcast %442 : vector<1x32xf32> to vector<8x32xf32>
    %444 = arith.addf %441, %443 : vector<8x32xf32>
    %445 = vector.extract_strided_slice %436 {offsets = [1, 0, 0], sizes = [1, 32, 32], strides = [1, 1, 1]} : vector<4x32x32xf32> to vector<1x32x32xf32>
    %446 = vector.shape_cast %445 : vector<1x32x32xf32> to vector<32x32xf32>
    %cst_143 = arith.constant dense<0.000000e+00> : vector<8x32xf32>
    %447 = tpu.matmul %311, %446, %cst_143 {dimension_numbers = #tpu.dot_dimension_numbers<[1], [0], [0], [1], [0, 0, 1, 1], [], []>} : vector<8x32xf32>, vector<32x32xf32>, vector<8x32xf32> -> vector<8x32xf32>
    %448 = vector.extract_strided_slice %438 {offsets = [1, 0], sizes = [1, 32], strides = [1, 1]} : vector<4x32xf32> to vector<1x32xf32>
    %449 = vector.broadcast %448 : vector<1x32xf32> to vector<8x32xf32>
    %450 = arith.addf %447, %449 : vector<8x32xf32>
    %451 = vector.extract_strided_slice %436 {offsets = [2, 0, 0], sizes = [1, 32, 32], strides = [1, 1, 1]} : vector<4x32x32xf32> to vector<1x32x32xf32>
    %452 = vector.shape_cast %451 : vector<1x32x32xf32> to vector<32x32xf32>
    %cst_144 = arith.constant dense<0.000000e+00> : vector<8x32xf32>
    %453 = tpu.matmul %311, %452, %cst_144 {dimension_numbers = #tpu.dot_dimension_numbers<[1], [0], [0], [1], [0, 0, 1, 1], [], []>} : vector<8x32xf32>, vector<32x32xf32>, vector<8x32xf32> -> vector<8x32xf32>
    %454 = vector.extract_strided_slice %438 {offsets = [2, 0], sizes = [1, 32], strides = [1, 1]} : vector<4x32xf32> to vector<1x32xf32>
    %455 = vector.broadcast %454 : vector<1x32xf32> to vector<8x32xf32>
    %456 = arith.addf %453, %455 : vector<8x32xf32>
    %457 = vector.extract_strided_slice %444 {offsets = [0, 0], sizes = [8, 8], strides = [1, 1]} : vector<8x32xf32> to vector<8x8xf32>
    %458 = vector.extract_strided_slice %444 {offsets = [0, 8], sizes = [8, 8], strides = [1, 1]} : vector<8x32xf32> to vector<8x8xf32>
    %459 = vector.extract_strided_slice %444 {offsets = [0, 16], sizes = [8, 8], strides = [1, 1]} : vector<8x32xf32> to vector<8x8xf32>
    %460 = vector.extract_strided_slice %444 {offsets = [0, 24], sizes = [8, 8], strides = [1, 1]} : vector<8x32xf32> to vector<8x8xf32>
    %461 = vector.shape_cast %457 : vector<8x8xf32> to vector<1x8x8xf32>
    %462 = vector.shape_cast %458 : vector<8x8xf32> to vector<1x8x8xf32>
    %463 = vector.shape_cast %459 : vector<8x8xf32> to vector<1x8x8xf32>
    %464 = vector.shape_cast %460 : vector<8x8xf32> to vector<1x8x8xf32>
    %465 = tpu.concatenate %461, %462, %463, %464 in 0 : vector<1x8x8xf32>, vector<1x8x8xf32>, vector<1x8x8xf32>, vector<1x8x8xf32> -> vector<4x8x8xf32>
    %466 = vector.extract_strided_slice %450 {offsets = [0, 0], sizes = [8, 8], strides = [1, 1]} : vector<8x32xf32> to vector<8x8xf32>
    %467 = vector.extract_strided_slice %450 {offsets = [0, 8], sizes = [8, 8], strides = [1, 1]} : vector<8x32xf32> to vector<8x8xf32>
    %468 = vector.extract_strided_slice %450 {offsets = [0, 16], sizes = [8, 8], strides = [1, 1]} : vector<8x32xf32> to vector<8x8xf32>
    %469 = vector.extract_strided_slice %450 {offsets = [0, 24], sizes = [8, 8], strides = [1, 1]} : vector<8x32xf32> to vector<8x8xf32>
    %470 = vector.shape_cast %466 : vector<8x8xf32> to vector<1x8x8xf32>
    %471 = vector.shape_cast %467 : vector<8x8xf32> to vector<1x8x8xf32>
    %472 = vector.shape_cast %468 : vector<8x8xf32> to vector<1x8x8xf32>
    %473 = vector.shape_cast %469 : vector<8x8xf32> to vector<1x8x8xf32>
    %474 = tpu.concatenate %470, %471, %472, %473 in 0 : vector<1x8x8xf32>, vector<1x8x8xf32>, vector<1x8x8xf32>, vector<1x8x8xf32> -> vector<4x8x8xf32>
    %475 = vector.extract_strided_slice %456 {offsets = [0, 0], sizes = [8, 8], strides = [1, 1]} : vector<8x32xf32> to vector<8x8xf32>
    %476 = vector.extract_strided_slice %456 {offsets = [0, 8], sizes = [8, 8], strides = [1, 1]} : vector<8x32xf32> to vector<8x8xf32>
    %477 = vector.extract_strided_slice %456 {offsets = [0, 16], sizes = [8, 8], strides = [1, 1]} : vector<8x32xf32> to vector<8x8xf32>
    %478 = vector.extract_strided_slice %456 {offsets = [0, 24], sizes = [8, 8], strides = [1, 1]} : vector<8x32xf32> to vector<8x8xf32>
    %479 = vector.shape_cast %475 : vector<8x8xf32> to vector<1x8x8xf32>
    %480 = vector.shape_cast %476 : vector<8x8xf32> to vector<1x8x8xf32>
    %481 = vector.shape_cast %477 : vector<8x8xf32> to vector<1x8x8xf32>
    %482 = vector.shape_cast %478 : vector<8x8xf32> to vector<1x8x8xf32>
    %483 = tpu.concatenate %479, %480, %481, %482 in 0 : vector<1x8x8xf32>, vector<1x8x8xf32>, vector<1x8x8xf32>, vector<1x8x8xf32> -> vector<4x8x8xf32>
    %cst_145 = arith.constant dense<0.000000e+00> : vector<4x8x8xf32>
    %484 = tpu.matmul %465, %474, %cst_145 {dimension_numbers = #tpu.dot_dimension_numbers<[2], [2], [1], [1], [0, 0, 0, 1, 1, 1], [0], [0]>} : vector<4x8x8xf32>, vector<4x8x8xf32>, vector<4x8x8xf32> -> vector<4x8x8xf32>
    %cst_146 = arith.constant 0.353553385 : f32
    %485 = vector.broadcast %cst_146 : f32 to vector<4x8x8xf32>
    %486 = arith.mulf %484, %485 : vector<4x8x8xf32>
    %487 = vector.shape_cast %3 : vector<1x8xi1> to vector<1x1x8xi1>
    %cst_147 = arith.constant -1.000000e+10 : f32
    %488 = vector.shape_cast %487 : vector<1x1x8xi1> to vector<1x1x8xi1>
    %489 = vector.broadcast %488 : vector<1x1x8xi1> to vector<4x8x8xi1>
    %490 = vector.broadcast %cst_147 : f32 to vector<4x8x8xf32>
    %491 = arith.select %489, %486, %490 : vector<4x8x8xi1>, vector<4x8x8xf32>
    %cst_148 = arith.constant dense<0xFF800000> : vector<4x8xf32>
    %492 = vector.multi_reduction <maximumf>, %491, %cst_148 [2] : vector<4x8x8xf32> to vector<4x8xf32>
    %493 = vector.shape_cast %492 : vector<4x8xf32> to vector<4x8x1xf32>
    %494 = vector.broadcast %493 : vector<4x8x1xf32> to vector<4x8x8xf32>
    %495 = arith.subf %491, %494 : vector<4x8x8xf32>
    %496 = math.exp %495 : vector<4x8x8xf32>
    %cst_149 = arith.constant dense<0.000000e+00> : vector<4x8xf32>
    %497 = vector.multi_reduction <add>, %496, %cst_149 [2] : vector<4x8x8xf32> to vector<4x8xf32>
    %498 = vector.shape_cast %497 : vector<4x8xf32> to vector<4x8x1xf32>
    %499 = tpu.reciprocal %498 {approx = true} : vector<4x8x1xf32> -> vector<4x8x1xf32>
    %500 = vector.broadcast %499 : vector<4x8x1xf32> to vector<4x8x8xf32>
    %501 = arith.mulf %496, %500 : vector<4x8x8xf32>
    %cst_150 = arith.constant dense<0.000000e+00> : vector<4x8x8xf32>
    %502 = tpu.matmul %501, %483, %cst_150 {dimension_numbers = #tpu.dot_dimension_numbers<[2], [1], [1], [2], [0, 0, 0, 1, 1, 2], [0], [0]>} : vector<4x8x8xf32>, vector<4x8x8xf32>, vector<4x8x8xf32> -> vector<4x8x8xf32>
    %503 = vector.extract_strided_slice %502 {offsets = [0, 0, 0], sizes = [1, 8, 8], strides = [1, 1, 1]} : vector<4x8x8xf32> to vector<1x8x8xf32>
    %504 = vector.shape_cast %503 : vector<1x8x8xf32> to vector<8x8xf32>
    %505 = vector.extract_strided_slice %502 {offsets = [1, 0, 0], sizes = [1, 8, 8], strides = [1, 1, 1]} : vector<4x8x8xf32> to vector<1x8x8xf32>
    %506 = vector.shape_cast %505 : vector<1x8x8xf32> to vector<8x8xf32>
    %507 = vector.extract_strided_slice %502 {offsets = [2, 0, 0], sizes = [1, 8, 8], strides = [1, 1, 1]} : vector<4x8x8xf32> to vector<1x8x8xf32>
    %508 = vector.shape_cast %507 : vector<1x8x8xf32> to vector<8x8xf32>
    %509 = vector.extract_strided_slice %502 {offsets = [3, 0, 0], sizes = [1, 8, 8], strides = [1, 1, 1]} : vector<4x8x8xf32> to vector<1x8x8xf32>
    %510 = vector.shape_cast %509 : vector<1x8x8xf32> to vector<8x8xf32>
    %511 = tpu.concatenate %504, %506, %508, %510 in 1 : vector<8x8xf32>, vector<8x8xf32>, vector<8x8xf32>, vector<8x8xf32> -> vector<8x32xf32>
    %512 = vector.extract_strided_slice %436 {offsets = [3, 0, 0], sizes = [1, 32, 32], strides = [1, 1, 1]} : vector<4x32x32xf32> to vector<1x32x32xf32>
    %513 = vector.shape_cast %512 : vector<1x32x32xf32> to vector<32x32xf32>
    %cst_151 = arith.constant dense<0.000000e+00> : vector<8x32xf32>
    %514 = tpu.matmul %511, %513, %cst_151 {dimension_numbers = #tpu.dot_dimension_numbers<[1], [0], [0], [1], [0, 0, 1, 1], [], []>} : vector<8x32xf32>, vector<32x32xf32>, vector<8x32xf32> -> vector<8x32xf32>
    %515 = vector.extract_strided_slice %438 {offsets = [3, 0], sizes = [1, 32], strides = [1, 1]} : vector<4x32xf32> to vector<1x32xf32>
    %516 = vector.broadcast %515 : vector<1x32xf32> to vector<8x32xf32>
    %517 = arith.addf %514, %516 : vector<8x32xf32>
    %518 = vector.extract_strided_slice %324 {offsets = [1, 0], sizes = [1, 32], strides = [1, 1]} : vector<3x32xf32> to vector<1x32xf32>
    %519 = vector.extract_strided_slice %326 {offsets = [1, 0], sizes = [1, 32], strides = [1, 1]} : vector<3x32xf32> to vector<1x32xf32>
    %520 = arith.addf %517, %434 : vector<8x32xf32>
    %cst_152 = arith.constant dense<0.000000e+00> : vector<8xf32>
    %521 = vector.multi_reduction <add>, %520, %cst_152 [1] : vector<8x32xf32> to vector<8xf32>
    %522 = vector.shape_cast %521 : vector<8xf32> to vector<8x1xf32>
    %cst_153 = arith.constant 3.200000e+01 : f32
    %523 = vector.broadcast %cst_153 : f32 to vector<8x1xf32>
    %524 = arith.divf %522, %523 : vector<8x1xf32>
    %525 = vector.broadcast %524 : vector<8x1xf32> to vector<8x32xf32>
    %526 = arith.subf %520, %525 : vector<8x32xf32>
    %527 = arith.mulf %526, %526 : vector<8x32xf32>
    %cst_154 = arith.constant dense<0.000000e+00> : vector<8xf32>
    %528 = vector.multi_reduction <add>, %527, %cst_154 [1] : vector<8x32xf32> to vector<8xf32>
    %529 = vector.shape_cast %528 : vector<8xf32> to vector<8x1xf32>
    %cst_155 = arith.constant 3.200000e+01 : f32
    %530 = vector.broadcast %cst_155 : f32 to vector<8x1xf32>
    %531 = arith.divf %529, %530 : vector<8x1xf32>
    %532 = vector.broadcast %524 : vector<8x1xf32> to vector<8x32xf32>
    %533 = arith.subf %520, %532 : vector<8x32xf32>
    %cst_156 = arith.constant 9.99999974E-6 : f32
    %534 = vector.broadcast %cst_156 : f32 to vector<8x1xf32>
    %535 = arith.addf %531, %534 : vector<8x1xf32>
    %536 = math.rsqrt %535 : vector<8x1xf32>
    %537 = vector.broadcast %536 : vector<8x1xf32> to vector<8x32xf32>
    %538 = arith.mulf %533, %537 : vector<8x32xf32>
    %539 = vector.broadcast %518 : vector<1x32xf32> to vector<8x32xf32>
    %540 = arith.mulf %538, %539 : vector<8x32xf32>
    %541 = vector.broadcast %519 : vector<1x32xf32> to vector<8x32xf32>
    %542 = arith.addf %540, %541 : vector<8x32xf32>
    %c0_157 = arith.constant 0 : index
    %c0_158 = arith.constant 0 : index
    %c0_159 = arith.constant 0 : index
    %543 = vector.load %arg19[%c0_157, %c0_158, %c0_159] : memref<2x32x64xf32, #tpu.memory_space<vmem>>, vector<1x32x64xf32>
    %544 = vector.shape_cast %543 : vector<1x32x64xf32> to vector<32x64xf32>
    %c0_160 = arith.constant 0 : index
    %c0_161 = arith.constant 0 : index
    %c0_162 = arith.constant 0 : index
    %545 = vector.load %arg20[%c0_160, %c0_161, %c0_162] : memref<2x1x64xf32, #tpu.memory_space<vmem>>, vector<1x1x64xf32>
    %546 = vector.shape_cast %545 : vector<1x1x64xf32> to vector<1x64xf32>
    %c0_163 = arith.constant 0 : index
    %c0_164 = arith.constant 0 : index
    %c0_165 = arith.constant 0 : index
    %547 = vector.load %arg21[%c0_163, %c0_164, %c0_165] : memref<2x64x32xf32, #tpu.memory_space<vmem>>, vector<1x64x32xf32>
    %548 = vector.shape_cast %547 : vector<1x64x32xf32> to vector<64x32xf32>
    %c0_166 = arith.constant 0 : index
    %c0_167 = arith.constant 0 : index
    %c0_168 = arith.constant 0 : index
    %549 = vector.load %arg22[%c0_166, %c0_167, %c0_168] : memref<2x1x32xf32, #tpu.memory_space<vmem>>, vector<1x1x32xf32>
    %550 = vector.shape_cast %549 : vector<1x1x32xf32> to vector<1x32xf32>
    %cst_169 = arith.constant dense<0.000000e+00> : vector<8x64xf32>
    %551 = tpu.matmul %542, %544, %cst_169 {dimension_numbers = #tpu.dot_dimension_numbers<[1], [0], [0], [1], [0, 0, 1, 1], [], []>} : vector<8x32xf32>, vector<32x64xf32>, vector<8x64xf32> -> vector<8x64xf32>
    %552 = vector.broadcast %546 : vector<1x64xf32> to vector<8x64xf32>
    %553 = arith.addf %551, %552 : vector<8x64xf32>
    %cst_170 = arith.constant 0.000000e+00 : f32
    %554 = vector.broadcast %cst_170 : f32 to vector<8x64xf32>
    %555 = arith.maximumf %553, %554 : vector<8x64xf32>
    %cst_171 = arith.constant dense<0.000000e+00> : vector<8x32xf32>
    %556 = tpu.matmul %555, %548, %cst_171 {dimension_numbers = #tpu.dot_dimension_numbers<[1], [0], [0], [1], [0, 0, 1, 1], [], []>} : vector<8x64xf32>, vector<64x32xf32>, vector<8x32xf32> -> vector<8x32xf32>
    %557 = vector.broadcast %550 : vector<1x32xf32> to vector<8x32xf32>
    %558 = arith.addf %556, %557 : vector<8x32xf32>
    %559 = vector.extract_strided_slice %324 {offsets = [2, 0], sizes = [1, 32], strides = [1, 1]} : vector<3x32xf32> to vector<1x32xf32>
    %560 = vector.extract_strided_slice %326 {offsets = [2, 0], sizes = [1, 32], strides = [1, 1]} : vector<3x32xf32> to vector<1x32xf32>
    %561 = arith.addf %558, %542 : vector<8x32xf32>
    %cst_172 = arith.constant dense<0.000000e+00> : vector<8xf32>
    %562 = vector.multi_reduction <add>, %561, %cst_172 [1] : vector<8x32xf32> to vector<8xf32>
    %563 = vector.shape_cast %562 : vector<8xf32> to vector<8x1xf32>
    %cst_173 = arith.constant 3.200000e+01 : f32
    %564 = vector.broadcast %cst_173 : f32 to vector<8x1xf32>
    %565 = arith.divf %563, %564 : vector<8x1xf32>
    %566 = vector.broadcast %565 : vector<8x1xf32> to vector<8x32xf32>
    %567 = arith.subf %561, %566 : vector<8x32xf32>
    %568 = arith.mulf %567, %567 : vector<8x32xf32>
    %cst_174 = arith.constant dense<0.000000e+00> : vector<8xf32>
    %569 = vector.multi_reduction <add>, %568, %cst_174 [1] : vector<8x32xf32> to vector<8xf32>
    %570 = vector.shape_cast %569 : vector<8xf32> to vector<8x1xf32>
    %cst_175 = arith.constant 3.200000e+01 : f32
    %571 = vector.broadcast %cst_175 : f32 to vector<8x1xf32>
    %572 = arith.divf %570, %571 : vector<8x1xf32>
    %573 = vector.broadcast %565 : vector<8x1xf32> to vector<8x32xf32>
    %574 = arith.subf %561, %573 : vector<8x32xf32>
    %cst_176 = arith.constant 9.99999974E-6 : f32
    %575 = vector.broadcast %cst_176 : f32 to vector<8x1xf32>
    %576 = arith.addf %572, %575 : vector<8x1xf32>
    %577 = math.rsqrt %576 : vector<8x1xf32>
    %578 = vector.broadcast %577 : vector<8x1xf32> to vector<8x32xf32>
    %579 = arith.mulf %574, %578 : vector<8x32xf32>
    %580 = vector.broadcast %559 : vector<1x32xf32> to vector<8x32xf32>
    %581 = arith.mulf %579, %580 : vector<8x32xf32>
    %582 = vector.broadcast %560 : vector<1x32xf32> to vector<8x32xf32>
    %583 = arith.addf %581, %582 : vector<8x32xf32>
    %c1_177 = arith.constant 1 : index
    %c0_178 = arith.constant 0 : index
    %c0_179 = arith.constant 0 : index
    %584 = vector.load %arg17[%c1_177, %c0_178, %c0_179] : memref<2x3x32xf32, #tpu.memory_space<vmem>>, vector<1x3x32xf32>
    %585 = vector.shape_cast %584 : vector<1x3x32xf32> to vector<3x32xf32>
    %c1_180 = arith.constant 1 : index
    %c0_181 = arith.constant 0 : index
    %c0_182 = arith.constant 0 : index
    %586 = vector.load %arg18[%c1_180, %c0_181, %c0_182] : memref<2x3x32xf32, #tpu.memory_space<vmem>>, vector<1x3x32xf32>
    %587 = vector.shape_cast %586 : vector<1x3x32xf32> to vector<3x32xf32>
    %c1_183 = arith.constant 1 : index
    %c0_184 = arith.constant 0 : index
    %c0_185 = arith.constant 0 : index
    %c0_186 = arith.constant 0 : index
    %588 = vector.load %arg13[%c1_183, %c0_184, %c0_185, %c0_186] : memref<2x4x32x32xf32, #tpu.memory_space<vmem>>, vector<1x4x32x32xf32>
    %589 = vector.shape_cast %588 : vector<1x4x32x32xf32> to vector<4x32x32xf32>
    %c1_187 = arith.constant 1 : index
    %c0_188 = arith.constant 0 : index
    %c0_189 = arith.constant 0 : index
    %590 = vector.load %arg14[%c1_187, %c0_188, %c0_189] : memref<2x4x32xf32, #tpu.memory_space<vmem>>, vector<1x4x32xf32>
    %591 = vector.shape_cast %590 : vector<1x4x32xf32> to vector<4x32xf32>
    %592 = vector.extract_strided_slice %589 {offsets = [0, 0, 0], sizes = [1, 32, 32], strides = [1, 1, 1]} : vector<4x32x32xf32> to vector<1x32x32xf32>
    %593 = vector.shape_cast %592 : vector<1x32x32xf32> to vector<32x32xf32>
    %cst_190 = arith.constant dense<0.000000e+00> : vector<8x32xf32>
    %594 = tpu.matmul %583, %593, %cst_190 {dimension_numbers = #tpu.dot_dimension_numbers<[1], [0], [0], [1], [0, 0, 1, 1], [], []>} : vector<8x32xf32>, vector<32x32xf32>, vector<8x32xf32> -> vector<8x32xf32>
    %595 = vector.extract_strided_slice %591 {offsets = [0, 0], sizes = [1, 32], strides = [1, 1]} : vector<4x32xf32> to vector<1x32xf32>
    %596 = vector.broadcast %595 : vector<1x32xf32> to vector<8x32xf32>
    %597 = arith.addf %594, %596 : vector<8x32xf32>
    %598 = vector.extract_strided_slice %589 {offsets = [1, 0, 0], sizes = [1, 32, 32], strides = [1, 1, 1]} : vector<4x32x32xf32> to vector<1x32x32xf32>
    %599 = vector.shape_cast %598 : vector<1x32x32xf32> to vector<32x32xf32>
    %cst_191 = arith.constant dense<0.000000e+00> : vector<8x32xf32>
    %600 = tpu.matmul %583, %599, %cst_191 {dimension_numbers = #tpu.dot_dimension_numbers<[1], [0], [0], [1], [0, 0, 1, 1], [], []>} : vector<8x32xf32>, vector<32x32xf32>, vector<8x32xf32> -> vector<8x32xf32>
    %601 = vector.extract_strided_slice %591 {offsets = [1, 0], sizes = [1, 32], strides = [1, 1]} : vector<4x32xf32> to vector<1x32xf32>
    %602 = vector.broadcast %601 : vector<1x32xf32> to vector<8x32xf32>
    %603 = arith.addf %600, %602 : vector<8x32xf32>
    %604 = vector.extract_strided_slice %589 {offsets = [2, 0, 0], sizes = [1, 32, 32], strides = [1, 1, 1]} : vector<4x32x32xf32> to vector<1x32x32xf32>
    %605 = vector.shape_cast %604 : vector<1x32x32xf32> to vector<32x32xf32>
    %cst_192 = arith.constant dense<0.000000e+00> : vector<8x32xf32>
    %606 = tpu.matmul %583, %605, %cst_192 {dimension_numbers = #tpu.dot_dimension_numbers<[1], [0], [0], [1], [0, 0, 1, 1], [], []>} : vector<8x32xf32>, vector<32x32xf32>, vector<8x32xf32> -> vector<8x32xf32>
    %607 = vector.extract_strided_slice %591 {offsets = [2, 0], sizes = [1, 32], strides = [1, 1]} : vector<4x32xf32> to vector<1x32xf32>
    %608 = vector.broadcast %607 : vector<1x32xf32> to vector<8x32xf32>
    %609 = arith.addf %606, %608 : vector<8x32xf32>
    %610 = vector.extract_strided_slice %597 {offsets = [0, 0], sizes = [8, 8], strides = [1, 1]} : vector<8x32xf32> to vector<8x8xf32>
    %611 = vector.extract_strided_slice %597 {offsets = [0, 8], sizes = [8, 8], strides = [1, 1]} : vector<8x32xf32> to vector<8x8xf32>
    %612 = vector.extract_strided_slice %597 {offsets = [0, 16], sizes = [8, 8], strides = [1, 1]} : vector<8x32xf32> to vector<8x8xf32>
    %613 = vector.extract_strided_slice %597 {offsets = [0, 24], sizes = [8, 8], strides = [1, 1]} : vector<8x32xf32> to vector<8x8xf32>
    %614 = vector.shape_cast %610 : vector<8x8xf32> to vector<1x8x8xf32>
    %615 = vector.shape_cast %611 : vector<8x8xf32> to vector<1x8x8xf32>
    %616 = vector.shape_cast %612 : vector<8x8xf32> to vector<1x8x8xf32>
    %617 = vector.shape_cast %613 : vector<8x8xf32> to vector<1x8x8xf32>
    %618 = tpu.concatenate %614, %615, %616, %617 in 0 : vector<1x8x8xf32>, vector<1x8x8xf32>, vector<1x8x8xf32>, vector<1x8x8xf32> -> vector<4x8x8xf32>
    %619 = vector.extract_strided_slice %603 {offsets = [0, 0], sizes = [8, 8], strides = [1, 1]} : vector<8x32xf32> to vector<8x8xf32>
    %620 = vector.extract_strided_slice %603 {offsets = [0, 8], sizes = [8, 8], strides = [1, 1]} : vector<8x32xf32> to vector<8x8xf32>
    %621 = vector.extract_strided_slice %603 {offsets = [0, 16], sizes = [8, 8], strides = [1, 1]} : vector<8x32xf32> to vector<8x8xf32>
    %622 = vector.extract_strided_slice %603 {offsets = [0, 24], sizes = [8, 8], strides = [1, 1]} : vector<8x32xf32> to vector<8x8xf32>
    %623 = vector.shape_cast %619 : vector<8x8xf32> to vector<1x8x8xf32>
    %624 = vector.shape_cast %620 : vector<8x8xf32> to vector<1x8x8xf32>
    %625 = vector.shape_cast %621 : vector<8x8xf32> to vector<1x8x8xf32>
    %626 = vector.shape_cast %622 : vector<8x8xf32> to vector<1x8x8xf32>
    %627 = tpu.concatenate %623, %624, %625, %626 in 0 : vector<1x8x8xf32>, vector<1x8x8xf32>, vector<1x8x8xf32>, vector<1x8x8xf32> -> vector<4x8x8xf32>
    %628 = vector.extract_strided_slice %609 {offsets = [0, 0], sizes = [8, 8], strides = [1, 1]} : vector<8x32xf32> to vector<8x8xf32>
    %629 = vector.extract_strided_slice %609 {offsets = [0, 8], sizes = [8, 8], strides = [1, 1]} : vector<8x32xf32> to vector<8x8xf32>
    %630 = vector.extract_strided_slice %609 {offsets = [0, 16], sizes = [8, 8], strides = [1, 1]} : vector<8x32xf32> to vector<8x8xf32>
    %631 = vector.extract_strided_slice %609 {offsets = [0, 24], sizes = [8, 8], strides = [1, 1]} : vector<8x32xf32> to vector<8x8xf32>
    %632 = vector.shape_cast %628 : vector<8x8xf32> to vector<1x8x8xf32>
    %633 = vector.shape_cast %629 : vector<8x8xf32> to vector<1x8x8xf32>
    %634 = vector.shape_cast %630 : vector<8x8xf32> to vector<1x8x8xf32>
    %635 = vector.shape_cast %631 : vector<8x8xf32> to vector<1x8x8xf32>
    %636 = tpu.concatenate %632, %633, %634, %635 in 0 : vector<1x8x8xf32>, vector<1x8x8xf32>, vector<1x8x8xf32>, vector<1x8x8xf32> -> vector<4x8x8xf32>
    %cst_193 = arith.constant dense<0.000000e+00> : vector<4x8x8xf32>
    %637 = tpu.matmul %618, %627, %cst_193 {dimension_numbers = #tpu.dot_dimension_numbers<[2], [2], [1], [1], [0, 0, 0, 1, 1, 1], [0], [0]>} : vector<4x8x8xf32>, vector<4x8x8xf32>, vector<4x8x8xf32> -> vector<4x8x8xf32>
    %cst_194 = arith.constant 0.353553385 : f32
    %638 = vector.broadcast %cst_194 : f32 to vector<4x8x8xf32>
    %639 = arith.mulf %637, %638 : vector<4x8x8xf32>
    %640 = vector.shape_cast %320 : vector<8x8xi1> to vector<1x8x8xi1>
    %cst_195 = arith.constant -1.000000e+10 : f32
    %641 = vector.shape_cast %640 : vector<1x8x8xi1> to vector<1x8x8xi1>
    %642 = vector.broadcast %641 : vector<1x8x8xi1> to vector<4x8x8xi1>
    %643 = vector.broadcast %cst_195 : f32 to vector<4x8x8xf32>
    %644 = arith.select %642, %639, %643 : vector<4x8x8xi1>, vector<4x8x8xf32>
    %cst_196 = arith.constant dense<0xFF800000> : vector<4x8xf32>
    %645 = vector.multi_reduction <maximumf>, %644, %cst_196 [2] : vector<4x8x8xf32> to vector<4x8xf32>
    %646 = vector.shape_cast %645 : vector<4x8xf32> to vector<4x8x1xf32>
    %647 = vector.broadcast %646 : vector<4x8x1xf32> to vector<4x8x8xf32>
    %648 = arith.subf %644, %647 : vector<4x8x8xf32>
    %649 = math.exp %648 : vector<4x8x8xf32>
    %cst_197 = arith.constant dense<0.000000e+00> : vector<4x8xf32>
    %650 = vector.multi_reduction <add>, %649, %cst_197 [2] : vector<4x8x8xf32> to vector<4x8xf32>
    %651 = vector.shape_cast %650 : vector<4x8xf32> to vector<4x8x1xf32>
    %652 = tpu.reciprocal %651 {approx = true} : vector<4x8x1xf32> -> vector<4x8x1xf32>
    %653 = vector.broadcast %652 : vector<4x8x1xf32> to vector<4x8x8xf32>
    %654 = arith.mulf %649, %653 : vector<4x8x8xf32>
    %cst_198 = arith.constant dense<0.000000e+00> : vector<4x8x8xf32>
    %655 = tpu.matmul %654, %636, %cst_198 {dimension_numbers = #tpu.dot_dimension_numbers<[2], [1], [1], [2], [0, 0, 0, 1, 1, 2], [0], [0]>} : vector<4x8x8xf32>, vector<4x8x8xf32>, vector<4x8x8xf32> -> vector<4x8x8xf32>
    %656 = vector.extract_strided_slice %655 {offsets = [0, 0, 0], sizes = [1, 8, 8], strides = [1, 1, 1]} : vector<4x8x8xf32> to vector<1x8x8xf32>
    %657 = vector.shape_cast %656 : vector<1x8x8xf32> to vector<8x8xf32>
    %658 = vector.extract_strided_slice %655 {offsets = [1, 0, 0], sizes = [1, 8, 8], strides = [1, 1, 1]} : vector<4x8x8xf32> to vector<1x8x8xf32>
    %659 = vector.shape_cast %658 : vector<1x8x8xf32> to vector<8x8xf32>
    %660 = vector.extract_strided_slice %655 {offsets = [2, 0, 0], sizes = [1, 8, 8], strides = [1, 1, 1]} : vector<4x8x8xf32> to vector<1x8x8xf32>
    %661 = vector.shape_cast %660 : vector<1x8x8xf32> to vector<8x8xf32>
    %662 = vector.extract_strided_slice %655 {offsets = [3, 0, 0], sizes = [1, 8, 8], strides = [1, 1, 1]} : vector<4x8x8xf32> to vector<1x8x8xf32>
    %663 = vector.shape_cast %662 : vector<1x8x8xf32> to vector<8x8xf32>
    %664 = tpu.concatenate %657, %659, %661, %663 in 1 : vector<8x8xf32>, vector<8x8xf32>, vector<8x8xf32>, vector<8x8xf32> -> vector<8x32xf32>
    %665 = vector.extract_strided_slice %589 {offsets = [3, 0, 0], sizes = [1, 32, 32], strides = [1, 1, 1]} : vector<4x32x32xf32> to vector<1x32x32xf32>
    %666 = vector.shape_cast %665 : vector<1x32x32xf32> to vector<32x32xf32>
    %cst_199 = arith.constant dense<0.000000e+00> : vector<8x32xf32>
    %667 = tpu.matmul %664, %666, %cst_199 {dimension_numbers = #tpu.dot_dimension_numbers<[1], [0], [0], [1], [0, 0, 1, 1], [], []>} : vector<8x32xf32>, vector<32x32xf32>, vector<8x32xf32> -> vector<8x32xf32>
    %668 = vector.extract_strided_slice %591 {offsets = [3, 0], sizes = [1, 32], strides = [1, 1]} : vector<4x32xf32> to vector<1x32xf32>
    %669 = vector.broadcast %668 : vector<1x32xf32> to vector<8x32xf32>
    %670 = arith.addf %667, %669 : vector<8x32xf32>
    %671 = vector.extract_strided_slice %585 {offsets = [0, 0], sizes = [1, 32], strides = [1, 1]} : vector<3x32xf32> to vector<1x32xf32>
    %672 = vector.extract_strided_slice %587 {offsets = [0, 0], sizes = [1, 32], strides = [1, 1]} : vector<3x32xf32> to vector<1x32xf32>
    %673 = arith.addf %670, %583 : vector<8x32xf32>
    %cst_200 = arith.constant dense<0.000000e+00> : vector<8xf32>
    %674 = vector.multi_reduction <add>, %673, %cst_200 [1] : vector<8x32xf32> to vector<8xf32>
    %675 = vector.shape_cast %674 : vector<8xf32> to vector<8x1xf32>
    %cst_201 = arith.constant 3.200000e+01 : f32
    %676 = vector.broadcast %cst_201 : f32 to vector<8x1xf32>
    %677 = arith.divf %675, %676 : vector<8x1xf32>
    %678 = vector.broadcast %677 : vector<8x1xf32> to vector<8x32xf32>
    %679 = arith.subf %673, %678 : vector<8x32xf32>
    %680 = arith.mulf %679, %679 : vector<8x32xf32>
    %cst_202 = arith.constant dense<0.000000e+00> : vector<8xf32>
    %681 = vector.multi_reduction <add>, %680, %cst_202 [1] : vector<8x32xf32> to vector<8xf32>
    %682 = vector.shape_cast %681 : vector<8xf32> to vector<8x1xf32>
    %cst_203 = arith.constant 3.200000e+01 : f32
    %683 = vector.broadcast %cst_203 : f32 to vector<8x1xf32>
    %684 = arith.divf %682, %683 : vector<8x1xf32>
    %685 = vector.broadcast %677 : vector<8x1xf32> to vector<8x32xf32>
    %686 = arith.subf %673, %685 : vector<8x32xf32>
    %cst_204 = arith.constant 9.99999974E-6 : f32
    %687 = vector.broadcast %cst_204 : f32 to vector<8x1xf32>
    %688 = arith.addf %684, %687 : vector<8x1xf32>
    %689 = math.rsqrt %688 : vector<8x1xf32>
    %690 = vector.broadcast %689 : vector<8x1xf32> to vector<8x32xf32>
    %691 = arith.mulf %686, %690 : vector<8x32xf32>
    %692 = vector.broadcast %671 : vector<1x32xf32> to vector<8x32xf32>
    %693 = arith.mulf %691, %692 : vector<8x32xf32>
    %694 = vector.broadcast %672 : vector<1x32xf32> to vector<8x32xf32>
    %695 = arith.addf %693, %694 : vector<8x32xf32>
    %c1_205 = arith.constant 1 : index
    %c0_206 = arith.constant 0 : index
    %c0_207 = arith.constant 0 : index
    %c0_208 = arith.constant 0 : index
    %696 = vector.load %arg15[%c1_205, %c0_206, %c0_207, %c0_208] : memref<2x4x32x32xf32, #tpu.memory_space<vmem>>, vector<1x4x32x32xf32>
    %697 = vector.shape_cast %696 : vector<1x4x32x32xf32> to vector<4x32x32xf32>
    %c1_209 = arith.constant 1 : index
    %c0_210 = arith.constant 0 : index
    %c0_211 = arith.constant 0 : index
    %698 = vector.load %arg16[%c1_209, %c0_210, %c0_211] : memref<2x4x32xf32, #tpu.memory_space<vmem>>, vector<1x4x32xf32>
    %699 = vector.shape_cast %698 : vector<1x4x32xf32> to vector<4x32xf32>
    %700 = vector.extract_strided_slice %697 {offsets = [0, 0, 0], sizes = [1, 32, 32], strides = [1, 1, 1]} : vector<4x32x32xf32> to vector<1x32x32xf32>
    %701 = vector.shape_cast %700 : vector<1x32x32xf32> to vector<32x32xf32>
    %cst_212 = arith.constant dense<0.000000e+00> : vector<8x32xf32>
    %702 = tpu.matmul %695, %701, %cst_212 {dimension_numbers = #tpu.dot_dimension_numbers<[1], [0], [0], [1], [0, 0, 1, 1], [], []>} : vector<8x32xf32>, vector<32x32xf32>, vector<8x32xf32> -> vector<8x32xf32>
    %703 = vector.extract_strided_slice %699 {offsets = [0, 0], sizes = [1, 32], strides = [1, 1]} : vector<4x32xf32> to vector<1x32xf32>
    %704 = vector.broadcast %703 : vector<1x32xf32> to vector<8x32xf32>
    %705 = arith.addf %702, %704 : vector<8x32xf32>
    %706 = vector.extract_strided_slice %697 {offsets = [1, 0, 0], sizes = [1, 32, 32], strides = [1, 1, 1]} : vector<4x32x32xf32> to vector<1x32x32xf32>
    %707 = vector.shape_cast %706 : vector<1x32x32xf32> to vector<32x32xf32>
    %cst_213 = arith.constant dense<0.000000e+00> : vector<8x32xf32>
    %708 = tpu.matmul %311, %707, %cst_213 {dimension_numbers = #tpu.dot_dimension_numbers<[1], [0], [0], [1], [0, 0, 1, 1], [], []>} : vector<8x32xf32>, vector<32x32xf32>, vector<8x32xf32> -> vector<8x32xf32>
    %709 = vector.extract_strided_slice %699 {offsets = [1, 0], sizes = [1, 32], strides = [1, 1]} : vector<4x32xf32> to vector<1x32xf32>
    %710 = vector.broadcast %709 : vector<1x32xf32> to vector<8x32xf32>
    %711 = arith.addf %708, %710 : vector<8x32xf32>
    %712 = vector.extract_strided_slice %697 {offsets = [2, 0, 0], sizes = [1, 32, 32], strides = [1, 1, 1]} : vector<4x32x32xf32> to vector<1x32x32xf32>
    %713 = vector.shape_cast %712 : vector<1x32x32xf32> to vector<32x32xf32>
    %cst_214 = arith.constant dense<0.000000e+00> : vector<8x32xf32>
    %714 = tpu.matmul %311, %713, %cst_214 {dimension_numbers = #tpu.dot_dimension_numbers<[1], [0], [0], [1], [0, 0, 1, 1], [], []>} : vector<8x32xf32>, vector<32x32xf32>, vector<8x32xf32> -> vector<8x32xf32>
    %715 = vector.extract_strided_slice %699 {offsets = [2, 0], sizes = [1, 32], strides = [1, 1]} : vector<4x32xf32> to vector<1x32xf32>
    %716 = vector.broadcast %715 : vector<1x32xf32> to vector<8x32xf32>
    %717 = arith.addf %714, %716 : vector<8x32xf32>
    %718 = vector.extract_strided_slice %705 {offsets = [0, 0], sizes = [8, 8], strides = [1, 1]} : vector<8x32xf32> to vector<8x8xf32>
    %719 = vector.extract_strided_slice %705 {offsets = [0, 8], sizes = [8, 8], strides = [1, 1]} : vector<8x32xf32> to vector<8x8xf32>
    %720 = vector.extract_strided_slice %705 {offsets = [0, 16], sizes = [8, 8], strides = [1, 1]} : vector<8x32xf32> to vector<8x8xf32>
    %721 = vector.extract_strided_slice %705 {offsets = [0, 24], sizes = [8, 8], strides = [1, 1]} : vector<8x32xf32> to vector<8x8xf32>
    %722 = vector.shape_cast %718 : vector<8x8xf32> to vector<1x8x8xf32>
    %723 = vector.shape_cast %719 : vector<8x8xf32> to vector<1x8x8xf32>
    %724 = vector.shape_cast %720 : vector<8x8xf32> to vector<1x8x8xf32>
    %725 = vector.shape_cast %721 : vector<8x8xf32> to vector<1x8x8xf32>
    %726 = tpu.concatenate %722, %723, %724, %725 in 0 : vector<1x8x8xf32>, vector<1x8x8xf32>, vector<1x8x8xf32>, vector<1x8x8xf32> -> vector<4x8x8xf32>
    %727 = vector.extract_strided_slice %711 {offsets = [0, 0], sizes = [8, 8], strides = [1, 1]} : vector<8x32xf32> to vector<8x8xf32>
    %728 = vector.extract_strided_slice %711 {offsets = [0, 8], sizes = [8, 8], strides = [1, 1]} : vector<8x32xf32> to vector<8x8xf32>
    %729 = vector.extract_strided_slice %711 {offsets = [0, 16], sizes = [8, 8], strides = [1, 1]} : vector<8x32xf32> to vector<8x8xf32>
    %730 = vector.extract_strided_slice %711 {offsets = [0, 24], sizes = [8, 8], strides = [1, 1]} : vector<8x32xf32> to vector<8x8xf32>
    %731 = vector.shape_cast %727 : vector<8x8xf32> to vector<1x8x8xf32>
    %732 = vector.shape_cast %728 : vector<8x8xf32> to vector<1x8x8xf32>
    %733 = vector.shape_cast %729 : vector<8x8xf32> to vector<1x8x8xf32>
    %734 = vector.shape_cast %730 : vector<8x8xf32> to vector<1x8x8xf32>
    %735 = tpu.concatenate %731, %732, %733, %734 in 0 : vector<1x8x8xf32>, vector<1x8x8xf32>, vector<1x8x8xf32>, vector<1x8x8xf32> -> vector<4x8x8xf32>
    %736 = vector.extract_strided_slice %717 {offsets = [0, 0], sizes = [8, 8], strides = [1, 1]} : vector<8x32xf32> to vector<8x8xf32>
    %737 = vector.extract_strided_slice %717 {offsets = [0, 8], sizes = [8, 8], strides = [1, 1]} : vector<8x32xf32> to vector<8x8xf32>
    %738 = vector.extract_strided_slice %717 {offsets = [0, 16], sizes = [8, 8], strides = [1, 1]} : vector<8x32xf32> to vector<8x8xf32>
    %739 = vector.extract_strided_slice %717 {offsets = [0, 24], sizes = [8, 8], strides = [1, 1]} : vector<8x32xf32> to vector<8x8xf32>
    %740 = vector.shape_cast %736 : vector<8x8xf32> to vector<1x8x8xf32>
    %741 = vector.shape_cast %737 : vector<8x8xf32> to vector<1x8x8xf32>
    %742 = vector.shape_cast %738 : vector<8x8xf32> to vector<1x8x8xf32>
    %743 = vector.shape_cast %739 : vector<8x8xf32> to vector<1x8x8xf32>
    %744 = tpu.concatenate %740, %741, %742, %743 in 0 : vector<1x8x8xf32>, vector<1x8x8xf32>, vector<1x8x8xf32>, vector<1x8x8xf32> -> vector<4x8x8xf32>
    %cst_215 = arith.constant dense<0.000000e+00> : vector<4x8x8xf32>
    %745 = tpu.matmul %726, %735, %cst_215 {dimension_numbers = #tpu.dot_dimension_numbers<[2], [2], [1], [1], [0, 0, 0, 1, 1, 1], [0], [0]>} : vector<4x8x8xf32>, vector<4x8x8xf32>, vector<4x8x8xf32> -> vector<4x8x8xf32>
    %cst_216 = arith.constant 0.353553385 : f32
    %746 = vector.broadcast %cst_216 : f32 to vector<4x8x8xf32>
    %747 = arith.mulf %745, %746 : vector<4x8x8xf32>
    %748 = vector.shape_cast %3 : vector<1x8xi1> to vector<1x1x8xi1>
    %cst_217 = arith.constant -1.000000e+10 : f32
    %749 = vector.shape_cast %748 : vector<1x1x8xi1> to vector<1x1x8xi1>
    %750 = vector.broadcast %749 : vector<1x1x8xi1> to vector<4x8x8xi1>
    %751 = vector.broadcast %cst_217 : f32 to vector<4x8x8xf32>
    %752 = arith.select %750, %747, %751 : vector<4x8x8xi1>, vector<4x8x8xf32>
    %cst_218 = arith.constant dense<0xFF800000> : vector<4x8xf32>
    %753 = vector.multi_reduction <maximumf>, %752, %cst_218 [2] : vector<4x8x8xf32> to vector<4x8xf32>
    %754 = vector.shape_cast %753 : vector<4x8xf32> to vector<4x8x1xf32>
    %755 = vector.broadcast %754 : vector<4x8x1xf32> to vector<4x8x8xf32>
    %756 = arith.subf %752, %755 : vector<4x8x8xf32>
    %757 = math.exp %756 : vector<4x8x8xf32>
    %cst_219 = arith.constant dense<0.000000e+00> : vector<4x8xf32>
    %758 = vector.multi_reduction <add>, %757, %cst_219 [2] : vector<4x8x8xf32> to vector<4x8xf32>
    %759 = vector.shape_cast %758 : vector<4x8xf32> to vector<4x8x1xf32>
    %760 = tpu.reciprocal %759 {approx = true} : vector<4x8x1xf32> -> vector<4x8x1xf32>
    %761 = vector.broadcast %760 : vector<4x8x1xf32> to vector<4x8x8xf32>
    %762 = arith.mulf %757, %761 : vector<4x8x8xf32>
    %cst_220 = arith.constant dense<0.000000e+00> : vector<4x8x8xf32>
    %763 = tpu.matmul %762, %744, %cst_220 {dimension_numbers = #tpu.dot_dimension_numbers<[2], [1], [1], [2], [0, 0, 0, 1, 1, 2], [0], [0]>} : vector<4x8x8xf32>, vector<4x8x8xf32>, vector<4x8x8xf32> -> vector<4x8x8xf32>
    %764 = vector.extract_strided_slice %763 {offsets = [0, 0, 0], sizes = [1, 8, 8], strides = [1, 1, 1]} : vector<4x8x8xf32> to vector<1x8x8xf32>
    %765 = vector.shape_cast %764 : vector<1x8x8xf32> to vector<8x8xf32>
    %766 = vector.extract_strided_slice %763 {offsets = [1, 0, 0], sizes = [1, 8, 8], strides = [1, 1, 1]} : vector<4x8x8xf32> to vector<1x8x8xf32>
    %767 = vector.shape_cast %766 : vector<1x8x8xf32> to vector<8x8xf32>
    %768 = vector.extract_strided_slice %763 {offsets = [2, 0, 0], sizes = [1, 8, 8], strides = [1, 1, 1]} : vector<4x8x8xf32> to vector<1x8x8xf32>
    %769 = vector.shape_cast %768 : vector<1x8x8xf32> to vector<8x8xf32>
    %770 = vector.extract_strided_slice %763 {offsets = [3, 0, 0], sizes = [1, 8, 8], strides = [1, 1, 1]} : vector<4x8x8xf32> to vector<1x8x8xf32>
    %771 = vector.shape_cast %770 : vector<1x8x8xf32> to vector<8x8xf32>
    %772 = tpu.concatenate %765, %767, %769, %771 in 1 : vector<8x8xf32>, vector<8x8xf32>, vector<8x8xf32>, vector<8x8xf32> -> vector<8x32xf32>
    %773 = vector.extract_strided_slice %697 {offsets = [3, 0, 0], sizes = [1, 32, 32], strides = [1, 1, 1]} : vector<4x32x32xf32> to vector<1x32x32xf32>
    %774 = vector.shape_cast %773 : vector<1x32x32xf32> to vector<32x32xf32>
    %cst_221 = arith.constant dense<0.000000e+00> : vector<8x32xf32>
    %775 = tpu.matmul %772, %774, %cst_221 {dimension_numbers = #tpu.dot_dimension_numbers<[1], [0], [0], [1], [0, 0, 1, 1], [], []>} : vector<8x32xf32>, vector<32x32xf32>, vector<8x32xf32> -> vector<8x32xf32>
    %776 = vector.extract_strided_slice %699 {offsets = [3, 0], sizes = [1, 32], strides = [1, 1]} : vector<4x32xf32> to vector<1x32xf32>
    %777 = vector.broadcast %776 : vector<1x32xf32> to vector<8x32xf32>
    %778 = arith.addf %775, %777 : vector<8x32xf32>
    %779 = vector.extract_strided_slice %585 {offsets = [1, 0], sizes = [1, 32], strides = [1, 1]} : vector<3x32xf32> to vector<1x32xf32>
    %780 = vector.extract_strided_slice %587 {offsets = [1, 0], sizes = [1, 32], strides = [1, 1]} : vector<3x32xf32> to vector<1x32xf32>
    %781 = arith.addf %778, %695 : vector<8x32xf32>
    %cst_222 = arith.constant dense<0.000000e+00> : vector<8xf32>
    %782 = vector.multi_reduction <add>, %781, %cst_222 [1] : vector<8x32xf32> to vector<8xf32>
    %783 = vector.shape_cast %782 : vector<8xf32> to vector<8x1xf32>
    %cst_223 = arith.constant 3.200000e+01 : f32
    %784 = vector.broadcast %cst_223 : f32 to vector<8x1xf32>
    %785 = arith.divf %783, %784 : vector<8x1xf32>
    %786 = vector.broadcast %785 : vector<8x1xf32> to vector<8x32xf32>
    %787 = arith.subf %781, %786 : vector<8x32xf32>
    %788 = arith.mulf %787, %787 : vector<8x32xf32>
    %cst_224 = arith.constant dense<0.000000e+00> : vector<8xf32>
    %789 = vector.multi_reduction <add>, %788, %cst_224 [1] : vector<8x32xf32> to vector<8xf32>
    %790 = vector.shape_cast %789 : vector<8xf32> to vector<8x1xf32>
    %cst_225 = arith.constant 3.200000e+01 : f32
    %791 = vector.broadcast %cst_225 : f32 to vector<8x1xf32>
    %792 = arith.divf %790, %791 : vector<8x1xf32>
    %793 = vector.broadcast %785 : vector<8x1xf32> to vector<8x32xf32>
    %794 = arith.subf %781, %793 : vector<8x32xf32>
    %cst_226 = arith.constant 9.99999974E-6 : f32
    %795 = vector.broadcast %cst_226 : f32 to vector<8x1xf32>
    %796 = arith.addf %792, %795 : vector<8x1xf32>
    %797 = math.rsqrt %796 : vector<8x1xf32>
    %798 = vector.broadcast %797 : vector<8x1xf32> to vector<8x32xf32>
    %799 = arith.mulf %794, %798 : vector<8x32xf32>
    %800 = vector.broadcast %779 : vector<1x32xf32> to vector<8x32xf32>
    %801 = arith.mulf %799, %800 : vector<8x32xf32>
    %802 = vector.broadcast %780 : vector<1x32xf32> to vector<8x32xf32>
    %803 = arith.addf %801, %802 : vector<8x32xf32>
    %c1_227 = arith.constant 1 : index
    %c0_228 = arith.constant 0 : index
    %c0_229 = arith.constant 0 : index
    %804 = vector.load %arg19[%c1_227, %c0_228, %c0_229] : memref<2x32x64xf32, #tpu.memory_space<vmem>>, vector<1x32x64xf32>
    %805 = vector.shape_cast %804 : vector<1x32x64xf32> to vector<32x64xf32>
    %c1_230 = arith.constant 1 : index
    %c0_231 = arith.constant 0 : index
    %c0_232 = arith.constant 0 : index
    %806 = vector.load %arg20[%c1_230, %c0_231, %c0_232] : memref<2x1x64xf32, #tpu.memory_space<vmem>>, vector<1x1x64xf32>
    %807 = vector.shape_cast %806 : vector<1x1x64xf32> to vector<1x64xf32>
    %c1_233 = arith.constant 1 : index
    %c0_234 = arith.constant 0 : index
    %c0_235 = arith.constant 0 : index
    %808 = vector.load %arg21[%c1_233, %c0_234, %c0_235] : memref<2x64x32xf32, #tpu.memory_space<vmem>>, vector<1x64x32xf32>
    %809 = vector.shape_cast %808 : vector<1x64x32xf32> to vector<64x32xf32>
    %c1_236 = arith.constant 1 : index
    %c0_237 = arith.constant 0 : index
    %c0_238 = arith.constant 0 : index
    %810 = vector.load %arg22[%c1_236, %c0_237, %c0_238] : memref<2x1x32xf32, #tpu.memory_space<vmem>>, vector<1x1x32xf32>
    %811 = vector.shape_cast %810 : vector<1x1x32xf32> to vector<1x32xf32>
    %cst_239 = arith.constant dense<0.000000e+00> : vector<8x64xf32>
    %812 = tpu.matmul %803, %805, %cst_239 {dimension_numbers = #tpu.dot_dimension_numbers<[1], [0], [0], [1], [0, 0, 1, 1], [], []>} : vector<8x32xf32>, vector<32x64xf32>, vector<8x64xf32> -> vector<8x64xf32>
    %813 = vector.broadcast %807 : vector<1x64xf32> to vector<8x64xf32>
    %814 = arith.addf %812, %813 : vector<8x64xf32>
    %cst_240 = arith.constant 0.000000e+00 : f32
    %815 = vector.broadcast %cst_240 : f32 to vector<8x64xf32>
    %816 = arith.maximumf %814, %815 : vector<8x64xf32>
    %cst_241 = arith.constant dense<0.000000e+00> : vector<8x32xf32>
    %817 = tpu.matmul %816, %809, %cst_241 {dimension_numbers = #tpu.dot_dimension_numbers<[1], [0], [0], [1], [0, 0, 1, 1], [], []>} : vector<8x64xf32>, vector<64x32xf32>, vector<8x32xf32> -> vector<8x32xf32>
    %818 = vector.broadcast %811 : vector<1x32xf32> to vector<8x32xf32>
    %819 = arith.addf %817, %818 : vector<8x32xf32>
    %820 = vector.extract_strided_slice %585 {offsets = [2, 0], sizes = [1, 32], strides = [1, 1]} : vector<3x32xf32> to vector<1x32xf32>
    %821 = vector.extract_strided_slice %587 {offsets = [2, 0], sizes = [1, 32], strides = [1, 1]} : vector<3x32xf32> to vector<1x32xf32>
    %822 = arith.addf %819, %803 : vector<8x32xf32>
    %cst_242 = arith.constant dense<0.000000e+00> : vector<8xf32>
    %823 = vector.multi_reduction <add>, %822, %cst_242 [1] : vector<8x32xf32> to vector<8xf32>
    %824 = vector.shape_cast %823 : vector<8xf32> to vector<8x1xf32>
    %cst_243 = arith.constant 3.200000e+01 : f32
    %825 = vector.broadcast %cst_243 : f32 to vector<8x1xf32>
    %826 = arith.divf %824, %825 : vector<8x1xf32>
    %827 = vector.broadcast %826 : vector<8x1xf32> to vector<8x32xf32>
    %828 = arith.subf %822, %827 : vector<8x32xf32>
    %829 = arith.mulf %828, %828 : vector<8x32xf32>
    %cst_244 = arith.constant dense<0.000000e+00> : vector<8xf32>
    %830 = vector.multi_reduction <add>, %829, %cst_244 [1] : vector<8x32xf32> to vector<8xf32>
    %831 = vector.shape_cast %830 : vector<8xf32> to vector<8x1xf32>
    %cst_245 = arith.constant 3.200000e+01 : f32
    %832 = vector.broadcast %cst_245 : f32 to vector<8x1xf32>
    %833 = arith.divf %831, %832 : vector<8x1xf32>
    %834 = vector.broadcast %826 : vector<8x1xf32> to vector<8x32xf32>
    %835 = arith.subf %822, %834 : vector<8x32xf32>
    %cst_246 = arith.constant 9.99999974E-6 : f32
    %836 = vector.broadcast %cst_246 : f32 to vector<8x1xf32>
    %837 = arith.addf %833, %836 : vector<8x1xf32>
    %838 = math.rsqrt %837 : vector<8x1xf32>
    %839 = vector.broadcast %838 : vector<8x1xf32> to vector<8x32xf32>
    %840 = arith.mulf %835, %839 : vector<8x32xf32>
    %841 = vector.broadcast %820 : vector<1x32xf32> to vector<8x32xf32>
    %842 = arith.mulf %840, %841 : vector<8x32xf32>
    %843 = vector.broadcast %821 : vector<1x32xf32> to vector<8x32xf32>
    %844 = arith.addf %842, %843 : vector<8x32xf32>
    %c0_247 = arith.constant 0 : index
    %c0_248 = arith.constant 0 : index
    %845 = vector.load %arg23[%c0_247, %c0_248] : memref<32x64xf32, #tpu.memory_space<vmem>>, vector<32x64xf32>
    %cst_249 = arith.constant dense<0.000000e+00> : vector<8x64xf32>
    %846 = tpu.matmul %844, %845, %cst_249 {dimension_numbers = #tpu.dot_dimension_numbers<[1], [0], [0], [1], [0, 0, 1, 1], [], []>} : vector<8x32xf32>, vector<32x64xf32>, vector<8x64xf32> -> vector<8x64xf32>
    %c0_250 = arith.constant 0 : index
    %c0_251 = arith.constant 0 : index
    %847 = vector.load %arg24[%c0_250, %c0_251] : memref<1x64xf32, #tpu.memory_space<vmem>>, vector<1x64xf32>
    %848 = vector.broadcast %847 : vector<1x64xf32> to vector<8x64xf32>
    %849 = arith.addf %846, %848 : vector<8x64xf32>
    %c0_252 = arith.constant 0 : index
    %c0_253 = arith.constant 0 : index
    %c0_254 = arith.constant 0 : index
    %850 = vector.load %arg25[%c0_252, %c0_253, %c0_254] : memref<1x8x64xf32, #tpu.memory_space<vmem>>, vector<1x8x64xf32>
    %851 = vector.shape_cast %850 : vector<1x8x64xf32> to vector<8x64xf32>
    %852 = vector.shape_cast %849 : vector<8x64xf32> to vector<1x8x64xf32>
    tpu.vector_store %arg25[%c0_252, %c0_253, %c0_254], %852 {strides = array<i32>} : memref<1x8x64xf32, #tpu.memory_space<vmem>>, vector<1x8x64xf32>,
    %c0_255 = arith.constant 0 : index
    %c0_256 = arith.constant 0 : index
    %c0_257 = arith.constant 0 : index
    %c0_258 = arith.constant 0 : index
    %853 = vector.load %arg26[%c0_255, %c0_256, %c0_257, %c0_258] : memref<1x4x8x8xf32, #tpu.memory_space<vmem>>, vector<1x4x8x8xf32>
    %854 = vector.shape_cast %853 : vector<1x4x8x8xf32> to vector<4x8x8xf32>
    %855 = vector.shape_cast %762 : vector<4x8x8xf32> to vector<1x4x8x8xf32>
    tpu.vector_store %arg26[%c0_255, %c0_256, %c0_257, %c0_258], %855 {strides = array<i32>} : memref<1x4x8x8xf32, #tpu.memory_space<vmem>>, vector<1x4x8x8xf32>,
    return
  }
  func.func @transform_0(%arg0: i32) -> (i32, i32, i32) {
    %c0_i32 = arith.constant 0 : i32
    %c0_i32_0 = arith.constant 0 : i32
    %c0_i32_1 = arith.constant 0 : i32
    return %arg0, %c0_i32, %c0_i32_0 : i32, i32, i32
  }
  func.func @transform_1(%arg0: i32) -> (i32, i32, i32) {
    %c0_i32 = arith.constant 0 : i32
    %c0_i32_0 = arith.constant 0 : i32
    %c0_i32_1 = arith.constant 0 : i32
    return %arg0, %c0_i32, %c0_i32_0 : i32, i32, i32
  }
  func.func @transform_2(%arg0: i32) -> (i32, i32, i32) {
    %c0_i32 = arith.constant 0 : i32
    %c0_i32_0 = arith.constant 0 : i32
    %c0_i32_1 = arith.constant 0 : i32
    return %arg0, %c0_i32, %c0_i32_0 : i32, i32, i32
  }
  func.func @transform_3(%arg0: i32) -> (i32, i32, i32) {
    %c0_i32 = arith.constant 0 : i32
    %c0_i32_0 = arith.constant 0 : i32
    %c0_i32_1 = arith.constant 0 : i32
    return %arg0, %c0_i32, %c0_i32_0 : i32, i32, i32
  }
  func.func @transform_4(%arg0: i32) -> (i32, i32, i32, i32) {
    %c0_i32 = arith.constant 0 : i32
    %c0_i32_0 = arith.constant 0 : i32
    %c0_i32_1 = arith.constant 0 : i32
    %c0_i32_2 = arith.constant 0 : i32
    %c0_i32_3 = arith.constant 0 : i32
    return %c0_i32, %c0_i32_0, %c0_i32_1, %c0_i32_2 : i32, i32, i32, i32
  }
  func.func @transform_5(%arg0: i32) -> (i32, i32, i32) {
    %c0_i32 = arith.constant 0 : i32
    %c0_i32_0 = arith.constant 0 : i32
    %c0_i32_1 = arith.constant 0 : i32
    %c0_i32_2 = arith.constant 0 : i32
    return %c0_i32, %c0_i32_0, %c0_i32_1 : i32, i32, i32
  }
  func.func @transform_6(%arg0: i32) -> (i32, i32, i32) {
    %c0_i32 = arith.constant 0 : i32
    %c0_i32_0 = arith.constant 0 : i32
    %c0_i32_1 = arith.constant 0 : i32
    %c0_i32_2 = arith.constant 0 : i32
    return %c0_i32, %c0_i32_0, %c0_i32_1 : i32, i32, i32
  }
  func.func @transform_7(%arg0: i32) -> (i32, i32, i32) {
    %c0_i32 = arith.constant 0 : i32
    %c0_i32_0 = arith.constant 0 : i32
    %c0_i32_1 = arith.constant 0 : i32
    %c0_i32_2 = arith.constant 0 : i32
    return %c0_i32, %c0_i32_0, %c0_i32_1 : i32, i32, i32
  }
  func.func @transform_8(%arg0: i32) -> (i32, i32, i32) {
    %c0_i32 = arith.constant 0 : i32
    %c0_i32_0 = arith.constant 0 : i32
    %c0_i32_1 = arith.constant 0 : i32
    %c0_i32_2 = arith.constant 0 : i32
    return %c0_i32, %c0_i32_0, %c0_i32_1 : i32, i32, i32
  }
  func.func @transform_9(%arg0: i32) -> (i32, i32, i32) {
    %c0_i32 = arith.constant 0 : i32
    %c0_i32_0 = arith.constant 0 : i32
    %c0_i32_1 = arith.constant 0 : i32
    %c0_i32_2 = arith.constant 0 : i32
    return %c0_i32, %c0_i32_0, %c0_i32_1 : i32, i32, i32
  }
  func.func @transform_10(%arg0: i32) -> (i32, i32, i32) {
    %c0_i32 = arith.constant 0 : i32
    %c0_i32_0 = arith.constant 0 : i32
    %c0_i32_1 = arith.constant 0 : i32
    %c0_i32_2 = arith.constant 0 : i32
    return %c0_i32, %c0_i32_0, %c0_i32_1 : i32, i32, i32
  }
  func.func @transform_11(%arg0: i32) -> (i32, i32, i32) {
    %c0_i32 = arith.constant 0 : i32
    %c0_i32_0 = arith.constant 0 : i32
    %c0_i32_1 = arith.constant 0 : i32
    %c0_i32_2 = arith.constant 0 : i32
    return %c0_i32, %c0_i32_0, %c0_i32_1 : i32, i32, i32
  }
  func.func @transform_12(%arg0: i32) -> (i32, i32, i32, i32) {
    %c0_i32 = arith.constant 0 : i32
    %c0_i32_0 = arith.constant 0 : i32
    %c0_i32_1 = arith.constant 0 : i32
    %c0_i32_2 = arith.constant 0 : i32
    %c0_i32_3 = arith.constant 0 : i32
    return %c0_i32, %c0_i32_0, %c0_i32_1, %c0_i32_2 : i32, i32, i32, i32
  }
  func.func @transform_13(%arg0: i32) -> (i32, i32, i32) {
    %c0_i32 = arith.constant 0 : i32
    %c0_i32_0 = arith.constant 0 : i32
    %c0_i32_1 = arith.constant 0 : i32
    %c0_i32_2 = arith.constant 0 : i32
    return %c0_i32, %c0_i32_0, %c0_i32_1 : i32, i32, i32
  }
  func.func @transform_14(%arg0: i32) -> (i32, i32, i32, i32) {
    %c0_i32 = arith.constant 0 : i32
    %c0_i32_0 = arith.constant 0 : i32
    %c0_i32_1 = arith.constant 0 : i32
    %c0_i32_2 = arith.constant 0 : i32
    %c0_i32_3 = arith.constant 0 : i32
    return %c0_i32, %c0_i32_0, %c0_i32_1, %c0_i32_2 : i32, i32, i32, i32
  }
  func.func @transform_15(%arg0: i32) -> (i32, i32, i32) {
    %c0_i32 = arith.constant 0 : i32
    %c0_i32_0 = arith.constant 0 : i32
    %c0_i32_1 = arith.constant 0 : i32
    %c0_i32_2 = arith.constant 0 : i32
    return %c0_i32, %c0_i32_0, %c0_i32_1 : i32, i32, i32
  }
  func.func @transform_16(%arg0: i32) -> (i32, i32, i32) {
    %c0_i32 = arith.constant 0 : i32
    %c0_i32_0 = arith.constant 0 : i32
    %c0_i32_1 = arith.constant 0 : i32
    %c0_i32_2 = arith.constant 0 : i32
    return %c0_i32, %c0_i32_0, %c0_i32_1 : i32, i32, i32
  }
  func.func @transform_17(%arg0: i32) -> (i32, i32, i32) {
    %c0_i32 = arith.constant 0 : i32
    %c0_i32_0 = arith.constant 0 : i32
    %c0_i32_1 = arith.constant 0 : i32
    %c0_i32_2 = arith.constant 0 : i32
    return %c0_i32, %c0_i32_0, %c0_i32_1 : i32, i32, i32
  }
  func.func @transform_18(%arg0: i32) -> (i32, i32, i32) {
    %c0_i32 = arith.constant 0 : i32
    %c0_i32_0 = arith.constant 0 : i32
    %c0_i32_1 = arith.constant 0 : i32
    %c0_i32_2 = arith.constant 0 : i32
    return %c0_i32, %c0_i32_0, %c0_i32_1 : i32, i32, i32
  }
  func.func @transform_19(%arg0: i32) -> (i32, i32, i32) {
    %c0_i32 = arith.constant 0 : i32
    %c0_i32_0 = arith.constant 0 : i32
    %c0_i32_1 = arith.constant 0 : i32
    %c0_i32_2 = arith.constant 0 : i32
    return %c0_i32, %c0_i32_0, %c0_i32_1 : i32, i32, i32
  }
  func.func @transform_20(%arg0: i32) -> (i32, i32, i32) {
    %c0_i32 = arith.constant 0 : i32
    %c0_i32_0 = arith.constant 0 : i32
    %c0_i32_1 = arith.constant 0 : i32
    %c0_i32_2 = arith.constant 0 : i32
    return %c0_i32, %c0_i32_0, %c0_i32_1 : i32, i32, i32
  }
  func.func @transform_21(%arg0: i32) -> (i32, i32, i32) {
    %c0_i32 = arith.constant 0 : i32
    %c0_i32_0 = arith.constant 0 : i32
    %c0_i32_1 = arith.constant 0 : i32
    %c0_i32_2 = arith.constant 0 : i32
    return %c0_i32, %c0_i32_0, %c0_i32_1 : i32, i32, i32
  }
  func.func @transform_22(%arg0: i32) -> (i32, i32) {
    %c0_i32 = arith.constant 0 : i32
    %c0_i32_0 = arith.constant 0 : i32
    %c0_i32_1 = arith.constant 0 : i32
    return %c0_i32, %c0_i32_0 : i32, i32
  }
  func.func @transform_23(%arg0: i32) -> (i32, i32) {
    %c0_i32 = arith.constant 0 : i32
    %c0_i32_0 = arith.constant 0 : i32
    %c0_i32_1 = arith.constant 0 : i32
    return %c0_i32, %c0_i32_0 : i32, i32
  }
  func.func @transform_24(%arg0: i32) -> (i32, i32, i32) {
    %c0_i32 = arith.constant 0 : i32
    %c0_i32_0 = arith.constant 0 : i32
    %c0_i32_1 = arith.constant 0 : i32
    return %arg0, %c0_i32, %c0_i32_0 : i32, i32, i32
  }
  func.func @transform_25(%arg0: i32) -> (i32, i32, i32, i32) {
    %c0_i32 = arith.constant 0 : i32
    %c0_i32_0 = arith.constant 0 : i32
    %c0_i32_1 = arith.constant 0 : i32
    %c0_i32_2 = arith.constant 0 : i32
    return %arg0, %c0_i32, %c0_i32_0, %c0_i32_1 : i32, i32, i32, i32
  }
}

</mosaic_0001>

<llo_original>
// kernel: seq2seq_forward.1
$region0: #{seq2seq_forward.1}
  #allocation0 [shape = 'u32[]', space=smem, size = 0x4, offset = 0x4, fixed_abs, tag = 'smem constant byte address 0x4 - core index']
  #allocation1 [shape = 'u32[72,128]{1,0:T(1,128)}', space=vmem, size = 0x9000, scoped, tag = 'internal scratch']
  %s0 = inlined_call_operand.vmem [shape: f32[2,8,32], index: 0, kind: input, shape index: {}]
  %s1 = inlined_call_operand.vmem [shape: f32[2,8,32], index: 1, kind: input, shape index: {}]
  %s2 = inlined_call_operand.vmem [shape: f32[2,1,8], index: 2, kind: input, shape index: {}]
  %s3 = inlined_call_operand.vmem [shape: f32[2,1,8], index: 3, kind: input, shape index: {}]
  %s4 = inlined_call_operand.vmem [shape: f32[2,4,32,32], index: 4, kind: input, shape index: {}]
  %s5 = inlined_call_operand.vmem [shape: f32[2,4,32], index: 5, kind: input, shape index: {}]
  %s6 = inlined_call_operand.vmem [shape: f32[2,2,32], index: 6, kind: input, shape index: {}]
  %s7 = inlined_call_operand.vmem [shape: f32[2,2,32], index: 7, kind: input, shape index: {}]
  %s8 = inlined_call_operand.vmem [shape: f32[2,32,64], index: 8, kind: input, shape index: {}]
  %s9 = inlined_call_operand.vmem [shape: f32[2,1,64], index: 9, kind: input, shape index: {}]
  %s10 = inlined_call_operand.vmem [shape: f32[2,64,32], index: 10, kind: input, shape index: {}]
  %s11 = inlined_call_operand.vmem [shape: f32[2,1,32], index: 11, kind: input, shape index: {}]
  %s12 = inlined_call_operand.hbm [shape: f32[2,4,32,32], index: 12, kind: input, shape index: {}]
  %s13 = inlined_call_operand.vmem [shape: f32[2,4,32], index: 13, kind: input, shape index: {}]
  %s14 = inlined_call_operand.hbm [shape: f32[2,4,32,32], index: 14, kind: input, shape index: {}]
  %s15 = inlined_call_operand.vmem [shape: f32[2,4,32], index: 15, kind: input, shape index: {}]
  %s16 = inlined_call_operand.vmem [shape: f32[2,3,32], index: 16, kind: input, shape index: {}]
  %s17 = inlined_call_operand.vmem [shape: f32[2,3,32], index: 17, kind: input, shape index: {}]
  %s18 = inlined_call_operand.vmem [shape: f32[2,32,64], index: 18, kind: input, shape index: {}]
  %s19 = inlined_call_operand.vmem [shape: f32[2,1,64], index: 19, kind: input, shape index: {}]
  %s20 = inlined_call_operand.vmem [shape: f32[2,64,32], index: 20, kind: input, shape index: {}]
  %s21 = inlined_call_operand.vmem [shape: f32[2,1,32], index: 21, kind: input, shape index: {}]
  %s22 = inlined_call_operand.vmem [shape: f32[32,64], index: 22, kind: input, shape index: {}]
  %s23 = inlined_call_operand.vmem [shape: f32[1,64], index: 23, kind: input, shape index: {}]
  %s24 = inlined_call_operand.hbm [shape: f32[2,8,64], index: 24, kind: output, shape index: {0}]
  %s25 = inlined_call_operand.hbm [shape: f32[2,4,8,8], index: 25, kind: output, shape index: {1}]
  %26 = xla_tuple %s24, %s25
  %s27 = sld [smem:[#allocation0]]
  $region145: #{seq2seq_forward.1} parent=0
    _
  %s29 = ssub.s32 1, %s27
  %s30 = scalar_select 0, %s29, %s27
  $region1: #{seq2seq_forward.1} parent=0
    #allocation2 [shape = 'u8[131072]{0}', space=vmem, size = 0x20000, scoped, tag = 'input window, operand 12, single buffered']
    #allocation3 [shape = 's32[2]{0}', space=sflag, size = 0x8, scoped, tag = 'scoped memory for seq2seq_forward.1']
    #allocation4 [shape = 's32[2]{0}', space=sflag, size = 0x8, scoped, tag = 'scoped memory for seq2seq_forward.1']
    #allocation5 [shape = 'u8[131072]{0}', space=vmem, size = 0x20000, scoped, tag = 'input window, operand 14, single buffered']
    #allocation6 [shape = 's32[1]{0}', space=sflag, size = 0x4, scoped, tag = 'scoped memory for seq2seq_forward.1']
    #allocation7 [shape = 'u8[8192]{0}', space=vmem, size = 0x2000, scoped, tag = 'output window, operand 0']
    #allocation8 [shape = 'u8[32768]{0}', space=vmem, size = 0x8000, scoped, tag = 'output window, operand 1']
    #allocation9 [shape = 's32[2]{0}', space=sflag, size = 0x8, scoped, tag = 'scoped memory for seq2seq_forward.1']
    %31 = vsyncpa [#allocation3], 0
    %32 = vsyncpa [#allocation6], 0
    %33 = vsyncpa [#allocation4], 0
    %s34 = scalar_lea.sflag [#allocation4], 1
    %35 = vsyncpa %s34, 0
    %36 = vsyncpa [#allocation9], 0
    %s37 = scalar_lea.sflag [#allocation9], 1
    %38 = vsyncpa %s37, 0
    loop: start=0, step=1, limit=4
    $region2: #{seq2seq_forward.1} parent=1 // loop_pre_header
      _
    $region3: #{seq2seq_forward.1} parent=1 // loop_header
      %s40 = sphi 0, %s44
      %p41 = scmp.ge.s32.totalorder %s40, 4
      %s50 = sphi 0, %s52
      %s53 = sphi 0, %s50
      %s54 = sphi 0, %s53
      %s70 = sphi 0, %s54
      %s76 = sphi 0, %s78
      %s79 = sphi 0, %s76
      %s80 = sphi 0, %s79
      %s96 = sphi 0, %s80
      %s102 = sphi 0, %s104
      %s105 = sphi 0, %s102
      %s106 = sphi 0, %s105
      %s122 = sphi 0, %s106
      %s128 = sphi 0, %s130
      %s131 = sphi 0, %s128
      %s132 = sphi 0, %s131
      %s148 = sphi 0, %s132
      %s152 = sphi 0, %s152
      %s154 = sphi 0, %s152
      %s155 = sphi 0, %s154
      %s169 = sphi 0, %s155
      %s173 = sphi 0, %s173
      %s175 = sphi 0, %s173
      %s176 = sphi 0, %s175
      %s190 = sphi 0, %s176
      %s194 = sphi 0, %s194
      %s196 = sphi 0, %s194
      %s197 = sphi 0, %s196
      %s211 = sphi 0, %s197
      %s215 = sphi 0, %s215
      %s217 = sphi 0, %s215
      %s218 = sphi 0, %s217
      %s232 = sphi 0, %s218
      %s236 = sphi 0, %s236
      %s238 = sphi 0, %s236
      %s239 = sphi 0, %s238
      %s253 = sphi 0, %s239
      %s257 = sphi 0, %s257
      %s259 = sphi 0, %s257
      %s260 = sphi 0, %s259
      %s274 = sphi 0, %s260
      %s278 = sphi 0, %s278
      %s280 = sphi 0, %s278
      %s281 = sphi 0, %s280
      %s295 = sphi 0, %s281
      %s299 = sphi 0, %s299
      %s301 = sphi 0, %s299
      %s302 = sphi 0, %s301
      %s316 = sphi 0, %s302
      %s320 = sphi 0, %s320
      %s322 = sphi 0, %s320
      %s323 = sphi 0, %s322
      %s337 = sphi 0, %s323
      %s341 = sphi 0, %s341
      %s343 = sphi 0, %s341
      %s344 = sphi 0, %s343
      %s358 = sphi 0, %s344
      %s362 = sphi 0, %s362
      %s364 = sphi 0, %s362
      %s365 = sphi 0, %s364
      %s379 = sphi 0, %s365
      %s383 = sphi 0, %s383
      %s385 = sphi 0, %s383
      %s386 = sphi 0, %s385
      %s400 = sphi 0, %s386
      %s404 = sphi 0, %s404
      %s406 = sphi 0, %s404
      %s407 = sphi 0, %s406
      %s421 = sphi 0, %s407
      %s425 = sphi 0, %s425
      %s427 = sphi 0, %s425
      %s428 = sphi 0, %s427
      %s442 = sphi 0, %s428
      %s446 = sphi 0, %s446
      %s448 = sphi 0, %s446
      %s449 = sphi 0, %s448
      %s463 = sphi 0, %s449
      %s467 = sphi 0, %s467
      %s469 = sphi 0, %s467
      %s470 = sphi 0, %s469
      %s484 = sphi 0, %s470
      %s488 = sphi 0, %s488
      %s490 = sphi 0, %s488
      %s491 = sphi 0, %s490
      %s505 = sphi 0, %s491
      %s509 = sphi 0, %s509
      %s511 = sphi 0, %s509
      %s512 = sphi 0, %s511
      %s526 = sphi 0, %s512
      %s530 = sphi 0, %s530
      %s532 = sphi 0, %s530
      %s533 = sphi 0, %s532
      %s547 = sphi 0, %s533
      %s551 = sphi 0, %s551
      %s553 = sphi 0, %s551
      %s554 = sphi 0, %s553
      %s568 = sphi 0, %s554
      %s574 = sphi 0, %s576
      %s577 = sphi 0, %s574
      %s578 = sphi 0, %s577
      %s594 = sphi 0, %s578
      %s600 = sphi 0, %s602
      %s603 = sphi 0, %s600
      %s604 = sphi 0, %s603
      %s620 = sphi 0, %s604
    $region4: #{seq2seq_forward.1} parent=1 // loop_header_branch
      %43 = sbr.rel (%p41) target = $region8
    $region5: #{seq2seq_forward.1} parent=1 // loop_body
      %s45 = ssub.s32 %s40, 1
      %s46 = ssub.s32 %s40, 2
      %s47 = sadd.s32 %s40, 1
      %s48 = ssub.s32 %s40, %s47
      %p49 = scmp.eq.s32.totalorder %s48, 0
      %s51 = sadd.s32 %s50, 1
      %s52 = scalar_select %p49, %s50, %s51
      %p55 = pneg %p49
      %p56 = scmp.eq.s32.totalorder %s40, 1
      %p57 = por %p55, %p56
      %p58 = scmp.ne.s32.totalorder %s50, %s53
      %p59 = scmp.eq.s32.totalorder %s40, 0
      %p60 = por %p58, %p59
      %p61 = scmp.ne.s32.totalorder %s50, %s53
      %p62 = scmp.eq.s32.totalorder %s45, 1
      %p63 = por %p61, %p62
      %p64 = scmp.ne.s32.totalorder %s53, %s54
      %p65 = scmp.eq.s32.totalorder %s45, 0
      %p66 = por %p64, %p65
      %p67 = scmp.ne.s32.totalorder %s53, %s54
      %p68 = scmp.eq.s32.totalorder %s46, 1
      %p69 = por %p67, %p68
      %p71 = scmp.ne.s32.totalorder %s54, %s70
      %p72 = scmp.eq.s32.totalorder %s46, 0
      %p73 = por %p71, %p72
      %s74 = ssub.s32 %s40, %s47
      %p75 = scmp.eq.s32.totalorder %s74, 0
      %s77 = sadd.s32 %s76, 1
      %s78 = scalar_select %p75, %s76, %s77
      %p81 = pneg %p75
      %p82 = scmp.eq.s32.totalorder %s40, 1
      %p83 = por %p81, %p82
      %p84 = scmp.ne.s32.totalorder %s76, %s79
      %p85 = scmp.eq.s32.totalorder %s40, 0
      %p86 = por %p84, %p85
      %p87 = scmp.ne.s32.totalorder %s76, %s79
      %p88 = scmp.eq.s32.totalorder %s45, 1
      %p89 = por %p87, %p88
      %p90 = scmp.ne.s32.totalorder %s79, %s80
      %p91 = scmp.eq.s32.totalorder %s45, 0
      %p92 = por %p90, %p91
      %p93 = scmp.ne.s32.totalorder %s79, %s80
      %p94 = scmp.eq.s32.totalorder %s46, 1
      %p95 = por %p93, %p94
      %p97 = scmp.ne.s32.totalorder %s80, %s96
      %p98 = scmp.eq.s32.totalorder %s46, 0
      %p99 = por %p97, %p98
      %s100 = ssub.s32 %s40, %s47
      %p101 = scmp.eq.s32.totalorder %s100, 0
      %s103 = sadd.s32 %s102, 1
      %s104 = scalar_select %p101, %s102, %s103
      %p107 = pneg %p101
      %p108 = scmp.eq.s32.totalorder %s40, 1
      %p109 = por %p107, %p108
      %p110 = scmp.ne.s32.totalorder %s102, %s105
      %p111 = scmp.eq.s32.totalorder %s40, 0
      %p112 = por %p110, %p111
      %p113 = scmp.ne.s32.totalorder %s102, %s105
      %p114 = scmp.eq.s32.totalorder %s45, 1
      %p115 = por %p113, %p114
      %p116 = scmp.ne.s32.totalorder %s105, %s106
      %p117 = scmp.eq.s32.totalorder %s45, 0
      %p118 = por %p116, %p117
      %p119 = scmp.ne.s32.totalorder %s105, %s106
      %p120 = scmp.eq.s32.totalorder %s46, 1
      %p121 = por %p119, %p120
      %p123 = scmp.ne.s32.totalorder %s106, %s122
      %p124 = scmp.eq.s32.totalorder %s46, 0
      %p125 = por %p123, %p124
      %s126 = ssub.s32 %s40, %s47
      %p127 = scmp.eq.s32.totalorder %s126, 0
      %s129 = sadd.s32 %s128, 1
      %s130 = scalar_select %p127, %s128, %s129
      %p133 = pneg %p127
      %p134 = scmp.eq.s32.totalorder %s40, 1
      %p135 = por %p133, %p134
      %p136 = scmp.ne.s32.totalorder %s128, %s131
      %p137 = scmp.eq.s32.totalorder %s40, 0
      %p138 = por %p136, %p137
      %p139 = scmp.ne.s32.totalorder %s128, %s131
      %p140 = scmp.eq.s32.totalorder %s45, 1
      %p141 = por %p139, %p140
      %p142 = scmp.ne.s32.totalorder %s131, %s132
      %p143 = scmp.eq.s32.totalorder %s45, 0
      %p144 = por %p142, %p143
      %p145 = scmp.ne.s32.totalorder %s131, %s132
      %p146 = scmp.eq.s32.totalorder %s46, 1
      %p147 = por %p145, %p146
      %p149 = scmp.ne.s32.totalorder %s132, %s148
      %p150 = scmp.eq.s32.totalorder %s46, 0
      %p151 = por %p149, %p150
      %s153 = sadd.s32 %s152, 1
      %p156 = scmp.eq.s32.totalorder %s40, 1
      %p157 = scmp.ne.s32.totalorder %s152, %s154
      %p158 = scmp.eq.s32.totalorder %s40, 0
      %p159 = por %p157, %p158
      %p160 = scmp.ne.s32.totalorder %s152, %s154
      %p161 = scmp.eq.s32.totalorder %s45, 1
      %p162 = por %p160, %p161
      %p163 = scmp.ne.s32.totalorder %s154, %s155
      %p164 = scmp.eq.s32.totalorder %s45, 0
      %p165 = por %p163, %p164
      %p166 = scmp.ne.s32.totalorder %s154, %s155
      %p167 = scmp.eq.s32.totalorder %s46, 1
      %p168 = por %p166, %p167
      %p170 = scmp.ne.s32.totalorder %s155, %s169
      %p171 = scmp.eq.s32.totalorder %s46, 0
      %p172 = por %p170, %p171
      %s174 = sadd.s32 %s173, 1
      %p177 = scmp.eq.s32.totalorder %s40, 1
      %p178 = scmp.ne.s32.totalorder %s173, %s175
      %p179 = scmp.eq.s32.totalorder %s40, 0
      %p180 = por %p178, %p179
      %p181 = scmp.ne.s32.totalorder %s173, %s175
      %p182 = scmp.eq.s32.totalorder %s45, 1
      %p183 = por %p181, %p182
      %p184 = scmp.ne.s32.totalorder %s175, %s176
      %p185 = scmp.eq.s32.totalorder %s45, 0
      %p186 = por %p184, %p185
      %p187 = scmp.ne.s32.totalorder %s175, %s176
      %p188 = scmp.eq.s32.totalorder %s46, 1
      %p189 = por %p187, %p188
      %p191 = scmp.ne.s32.totalorder %s176, %s190
      %p192 = scmp.eq.s32.totalorder %s46, 0
      %p193 = por %p191, %p192
      %s195 = sadd.s32 %s194, 1
      %p198 = scmp.eq.s32.totalorder %s40, 1
      %p199 = scmp.ne.s32.totalorder %s194, %s196
      %p200 = scmp.eq.s32.totalorder %s40, 0
      %p201 = por %p199, %p200
      %p202 = scmp.ne.s32.totalorder %s194, %s196
      %p203 = scmp.eq.s32.totalorder %s45, 1
      %p204 = por %p202, %p203
      %p205 = scmp.ne.s32.totalorder %s196, %s197
      %p206 = scmp.eq.s32.totalorder %s45, 0
      %p207 = por %p205, %p206
      %p208 = scmp.ne.s32.totalorder %s196, %s197
      %p209 = scmp.eq.s32.totalorder %s46, 1
      %p210 = por %p208, %p209
      %p212 = scmp.ne.s32.totalorder %s197, %s211
      %p213 = scmp.eq.s32.totalorder %s46, 0
      %p214 = por %p212, %p213
      %s216 = sadd.s32 %s215, 1
      %p219 = scmp.eq.s32.totalorder %s40, 1
      %p220 = scmp.ne.s32.totalorder %s215, %s217
      %p221 = scmp.eq.s32.totalorder %s40, 0
      %p222 = por %p220, %p221
      %p223 = scmp.ne.s32.totalorder %s215, %s217
      %p224 = scmp.eq.s32.totalorder %s45, 1
      %p225 = por %p223, %p224
      %p226 = scmp.ne.s32.totalorder %s217, %s218
      %p227 = scmp.eq.s32.totalorder %s45, 0
      %p228 = por %p226, %p227
      %p229 = scmp.ne.s32.totalorder %s217, %s218
      %p230 = scmp.eq.s32.totalorder %s46, 1
      %p231 = por %p229, %p230
      %p233 = scmp.ne.s32.totalorder %s218, %s232
      %p234 = scmp.eq.s32.totalorder %s46, 0
      %p235 = por %p233, %p234
      %s237 = sadd.s32 %s236, 1
      %p240 = scmp.eq.s32.totalorder %s40, 1
      %p241 = scmp.ne.s32.totalorder %s236, %s238
      %p242 = scmp.eq.s32.totalorder %s40, 0
      %p243 = por %p241, %p242
      %p244 = scmp.ne.s32.totalorder %s236, %s238
      %p245 = scmp.eq.s32.totalorder %s45, 1
      %p246 = por %p244, %p245
      %p247 = scmp.ne.s32.totalorder %s238, %s239
      %p248 = scmp.eq.s32.totalorder %s45, 0
      %p249 = por %p247, %p248
      %p250 = scmp.ne.s32.totalorder %s238, %s239
      %p251 = scmp.eq.s32.totalorder %s46, 1
      %p252 = por %p250, %p251
      %p254 = scmp.ne.s32.totalorder %s239, %s253
      %p255 = scmp.eq.s32.totalorder %s46, 0
      %p256 = por %p254, %p255
      %s258 = sadd.s32 %s257, 1
      %p261 = scmp.eq.s32.totalorder %s40, 1
      %p262 = scmp.ne.s32.totalorder %s257, %s259
      %p263 = scmp.eq.s32.totalorder %s40, 0
      %p264 = por %p262, %p263
      %p265 = scmp.ne.s32.totalorder %s257, %s259
      %p266 = scmp.eq.s32.totalorder %s45, 1
      %p267 = por %p265, %p266
      %p268 = scmp.ne.s32.totalorder %s259, %s260
      %p269 = scmp.eq.s32.totalorder %s45, 0
      %p270 = por %p268, %p269
      %p271 = scmp.ne.s32.totalorder %s259, %s260
      %p272 = scmp.eq.s32.totalorder %s46, 1
      %p273 = por %p271, %p272
      %p275 = scmp.ne.s32.totalorder %s260, %s274
      %p276 = scmp.eq.s32.totalorder %s46, 0
      %p277 = por %p275, %p276
      %s279 = sadd.s32 %s278, 1
      %p282 = scmp.eq.s32.totalorder %s40, 1
      %p283 = scmp.ne.s32.totalorder %s278, %s280
      %p284 = scmp.eq.s32.totalorder %s40, 0
      %p285 = por %p283, %p284
      %p286 = scmp.ne.s32.totalorder %s278, %s280
      %p287 = scmp.eq.s32.totalorder %s45, 1
      %p288 = por %p286, %p287
      %p289 = scmp.ne.s32.totalorder %s280, %s281
      %p290 = scmp.eq.s32.totalorder %s45, 0
      %p291 = por %p289, %p290
      %p292 = scmp.ne.s32.totalorder %s280, %s281
      %p293 = scmp.eq.s32.totalorder %s46, 1
      %p294 = por %p292, %p293
      %p296 = scmp.ne.s32.totalorder %s281, %s295
      %p297 = scmp.eq.s32.totalorder %s46, 0
      %p298 = por %p296, %p297
      %s300 = sadd.s32 %s299, 1
      %p303 = scmp.eq.s32.totalorder %s40, 1
      %p304 = scmp.ne.s32.totalorder %s299, %s301
      %p305 = scmp.eq.s32.totalorder %s40, 0
      %p306 = por %p304, %p305
      %p307 = scmp.ne.s32.totalorder %s299, %s301
      %p308 = scmp.eq.s32.totalorder %s45, 1
      %p309 = por %p307, %p308
      %p310 = scmp.ne.s32.totalorder %s301, %s302
      %p311 = scmp.eq.s32.totalorder %s45, 0
      %p312 = por %p310, %p311
      %p313 = scmp.ne.s32.totalorder %s301, %s302
      %p314 = scmp.eq.s32.totalorder %s46, 1
      %p315 = por %p313, %p314
      %p317 = scmp.ne.s32.totalorder %s302, %s316
      %p318 = scmp.eq.s32.totalorder %s46, 0
      %p319 = por %p317, %p318
      %s321 = sadd.s32 %s320, 1
      %p324 = scmp.eq.s32.totalorder %s40, 1
      %p325 = scmp.ne.s32.totalorder %s320, %s322
      %p326 = scmp.eq.s32.totalorder %s40, 0
      %p327 = por %p325, %p326
      %p328 = scmp.ne.s32.totalorder %s320, %s322
      %p329 = scmp.eq.s32.totalorder %s45, 1
      %p330 = por %p328, %p329
      %p331 = scmp.ne.s32.totalorder %s322, %s323
      %p332 = scmp.eq.s32.totalorder %s45, 0
      %p333 = por %p331, %p332
      %p334 = scmp.ne.s32.totalorder %s322, %s323
      %p335 = scmp.eq.s32.totalorder %s46, 1
      %p336 = por %p334, %p335
      %p338 = scmp.ne.s32.totalorder %s323, %s337
      %p339 = scmp.eq.s32.totalorder %s46, 0
      %p340 = por %p338, %p339
      %s342 = sadd.s32 %s341, 1
      %p345 = scmp.eq.s32.totalorder %s40, 1
      %p346 = scmp.ne.s32.totalorder %s341, %s343
      %p347 = scmp.eq.s32.totalorder %s40, 0
      %p348 = por %p346, %p347
      %p349 = scmp.ne.s32.totalorder %s341, %s343
      %p350 = scmp.eq.s32.totalorder %s45, 1
      %p351 = por %p349, %p350
      %p352 = scmp.ne.s32.totalorder %s343, %s344
      %p353 = scmp.eq.s32.totalorder %s45, 0
      %p354 = por %p352, %p353
      %p355 = scmp.ne.s32.totalorder %s343, %s344
      %p356 = scmp.eq.s32.totalorder %s46, 1
      %p357 = por %p355, %p356
      %p359 = scmp.ne.s32.totalorder %s344, %s358
      %p360 = scmp.eq.s32.totalorder %s46, 0
      %p361 = por %p359, %p360
      %s363 = sadd.s32 %s362, 1
      %p366 = scmp.eq.s32.totalorder %s40, 1
      %p367 = scmp.ne.s32.totalorder %s362, %s364
      %p368 = scmp.eq.s32.totalorder %s40, 0
      %p369 = por %p367, %p368
      %p370 = scmp.ne.s32.totalorder %s362, %s364
      %p371 = scmp.eq.s32.totalorder %s45, 1
      %p372 = por %p370, %p371
      %p373 = scmp.ne.s32.totalorder %s364, %s365
      %p374 = scmp.eq.s32.totalorder %s45, 0
      %p375 = por %p373, %p374
      %p376 = scmp.ne.s32.totalorder %s364, %s365
      %p377 = scmp.eq.s32.totalorder %s46, 1
      %p378 = por %p376, %p377
      %p380 = scmp.ne.s32.totalorder %s365, %s379
      %p381 = scmp.eq.s32.totalorder %s46, 0
      %p382 = por %p380, %p381
      %s384 = sadd.s32 %s383, 1
      %p387 = scmp.eq.s32.totalorder %s40, 1
      %p388 = scmp.ne.s32.totalorder %s383, %s385
      %p389 = scmp.eq.s32.totalorder %s40, 0
      %p390 = por %p388, %p389
      %p391 = scmp.ne.s32.totalorder %s383, %s385
      %p392 = scmp.eq.s32.totalorder %s45, 1
      %p393 = por %p391, %p392
      %p394 = scmp.ne.s32.totalorder %s385, %s386
      %p395 = scmp.eq.s32.totalorder %s45, 0
      %p396 = por %p394, %p395
      %p397 = scmp.ne.s32.totalorder %s385, %s386
      %p398 = scmp.eq.s32.totalorder %s46, 1
      %p399 = por %p397, %p398
      %p401 = scmp.ne.s32.totalorder %s386, %s400
      %p402 = scmp.eq.s32.totalorder %s46, 0
      %p403 = por %p401, %p402
      %s405 = sadd.s32 %s404, 1
      %p408 = scmp.eq.s32.totalorder %s40, 1
      %p409 = scmp.ne.s32.totalorder %s404, %s406
      %p410 = scmp.eq.s32.totalorder %s40, 0
      %p411 = por %p409, %p410
      %p412 = scmp.ne.s32.totalorder %s404, %s406
      %p413 = scmp.eq.s32.totalorder %s45, 1
      %p414 = por %p412, %p413
      %p415 = scmp.ne.s32.totalorder %s406, %s407
      %p416 = scmp.eq.s32.totalorder %s45, 0
      %p417 = por %p415, %p416
      %p418 = scmp.ne.s32.totalorder %s406, %s407
      %p419 = scmp.eq.s32.totalorder %s46, 1
      %p420 = por %p418, %p419
      %p422 = scmp.ne.s32.totalorder %s407, %s421
      %p423 = scmp.eq.s32.totalorder %s46, 0
      %p424 = por %p422, %p423
      %s426 = sadd.s32 %s425, 1
      %p429 = scmp.eq.s32.totalorder %s40, 1
      %p430 = scmp.ne.s32.totalorder %s425, %s427
      %p431 = scmp.eq.s32.totalorder %s40, 0
      %p432 = por %p430, %p431
      %p433 = scmp.ne.s32.totalorder %s425, %s427
      %p434 = scmp.eq.s32.totalorder %s45, 1
      %p435 = por %p433, %p434
      %p436 = scmp.ne.s32.totalorder %s427, %s428
      %p437 = scmp.eq.s32.totalorder %s45, 0
      %p438 = por %p436, %p437
      %p439 = scmp.ne.s32.totalorder %s427, %s428
      %p440 = scmp.eq.s32.totalorder %s46, 1
      %p441 = por %p439, %p440
      %p443 = scmp.ne.s32.totalorder %s428, %s442
      %p444 = scmp.eq.s32.totalorder %s46, 0
      %p445 = por %p443, %p444
      %s447 = sadd.s32 %s446, 1
      %p450 = scmp.eq.s32.totalorder %s40, 1
      %p451 = scmp.ne.s32.totalorder %s446, %s448
      %p452 = scmp.eq.s32.totalorder %s40, 0
      %p453 = por %p451, %p452
      %p454 = scmp.ne.s32.totalorder %s446, %s448
      %p455 = scmp.eq.s32.totalorder %s45, 1
      %p456 = por %p454, %p455
      %p457 = scmp.ne.s32.totalorder %s448, %s449
      %p458 = scmp.eq.s32.totalorder %s45, 0
      %p459 = por %p457, %p458
      %p460 = scmp.ne.s32.totalorder %s448, %s449
      %p461 = scmp.eq.s32.totalorder %s46, 1
      %p462 = por %p460, %p461
      %p464 = scmp.ne.s32.totalorder %s449, %s463
      %p465 = scmp.eq.s32.totalorder %s46, 0
      %p466 = por %p464, %p465
      %s468 = sadd.s32 %s467, 1
      %p471 = scmp.eq.s32.totalorder %s40, 1
      %p472 = scmp.ne.s32.totalorder %s467, %s469
      %p473 = scmp.eq.s32.totalorder %s40, 0
      %p474 = por %p472, %p473
      %p475 = scmp.ne.s32.totalorder %s467, %s469
      %p476 = scmp.eq.s32.totalorder %s45, 1
      %p477 = por %p475, %p476
      %p478 = scmp.ne.s32.totalorder %s469, %s470
      %p479 = scmp.eq.s32.totalorder %s45, 0
      %p480 = por %p478, %p479
      %p481 = scmp.ne.s32.totalorder %s469, %s470
      %p482 = scmp.eq.s32.totalorder %s46, 1
      %p483 = por %p481, %p482
      %p485 = scmp.ne.s32.totalorder %s470, %s484
      %p486 = scmp.eq.s32.totalorder %s46, 0
      %p487 = por %p485, %p486
      %s489 = sadd.s32 %s488, 1
      %p492 = scmp.eq.s32.totalorder %s40, 1
      %p493 = scmp.ne.s32.totalorder %s488, %s490
      %p494 = scmp.eq.s32.totalorder %s40, 0
      %p495 = por %p493, %p494
      %p496 = scmp.ne.s32.totalorder %s488, %s490
      %p497 = scmp.eq.s32.totalorder %s45, 1
      %p498 = por %p496, %p497
      %p499 = scmp.ne.s32.totalorder %s490, %s491
      %p500 = scmp.eq.s32.totalorder %s45, 0
      %p501 = por %p499, %p500
      %p502 = scmp.ne.s32.totalorder %s490, %s491
      %p503 = scmp.eq.s32.totalorder %s46, 1
      %p504 = por %p502, %p503
      %p506 = scmp.ne.s32.totalorder %s491, %s505
      %p507 = scmp.eq.s32.totalorder %s46, 0
      %p508 = por %p506, %p507
      %s510 = sadd.s32 %s509, 1
      %p513 = scmp.eq.s32.totalorder %s40, 1
      %p514 = scmp.ne.s32.totalorder %s509, %s511
      %p515 = scmp.eq.s32.totalorder %s40, 0
      %p516 = por %p514, %p515
      %p517 = scmp.ne.s32.totalorder %s509, %s511
      %p518 = scmp.eq.s32.totalorder %s45, 1
      %p519 = por %p517, %p518
      %p520 = scmp.ne.s32.totalorder %s511, %s512
      %p521 = scmp.eq.s32.totalorder %s45, 0
      %p522 = por %p520, %p521
      %p523 = scmp.ne.s32.totalorder %s511, %s512
      %p524 = scmp.eq.s32.totalorder %s46, 1
      %p525 = por %p523, %p524
      %p527 = scmp.ne.s32.totalorder %s512, %s526
      %p528 = scmp.eq.s32.totalorder %s46, 0
      %p529 = por %p527, %p528
      %s531 = sadd.s32 %s530, 1
      %p534 = scmp.eq.s32.totalorder %s40, 1
      %p535 = scmp.ne.s32.totalorder %s530, %s532
      %p536 = scmp.eq.s32.totalorder %s40, 0
      %p537 = por %p535, %p536
      %p538 = scmp.ne.s32.totalorder %s530, %s532
      %p539 = scmp.eq.s32.totalorder %s45, 1
      %p540 = por %p538, %p539
      %p541 = scmp.ne.s32.totalorder %s532, %s533
      %p542 = scmp.eq.s32.totalorder %s45, 0
      %p543 = por %p541, %p542
      %p544 = scmp.ne.s32.totalorder %s532, %s533
      %p545 = scmp.eq.s32.totalorder %s46, 1
      %p546 = por %p544, %p545
      %p548 = scmp.ne.s32.totalorder %s533, %s547
      %p549 = scmp.eq.s32.totalorder %s46, 0
      %p550 = por %p548, %p549
      %s552 = sadd.s32 %s551, 1
      %p555 = scmp.eq.s32.totalorder %s40, 1
      %p556 = scmp.ne.s32.totalorder %s551, %s553
      %p557 = scmp.eq.s32.totalorder %s40, 0
      %p558 = por %p556, %p557
      %p559 = scmp.ne.s32.totalorder %s551, %s553
      %p560 = scmp.eq.s32.totalorder %s45, 1
      %p561 = por %p559, %p560
      %p562 = scmp.ne.s32.totalorder %s553, %s554
      %p563 = scmp.eq.s32.totalorder %s45, 0
      %p564 = por %p562, %p563
      %p565 = scmp.ne.s32.totalorder %s553, %s554
      %p566 = scmp.eq.s32.totalorder %s46, 1
      %p567 = por %p565, %p566
      %p569 = scmp.ne.s32.totalorder %s554, %s568
      %p570 = scmp.eq.s32.totalorder %s46, 0
      %p571 = por %p569, %p570
      %s572 = ssub.s32 %s40, %s47
      %p573 = scmp.eq.s32.totalorder %s572, 0
      %s575 = sadd.s32 %s574, 1
      %s576 = scalar_select %p573, %s574, %s575
      %p579 = pneg %p573
      %p580 = scmp.eq.s32.totalorder %s40, 1
      %p581 = por %p579, %p580
      %p582 = scmp.ne.s32.totalorder %s574, %s577
      %p583 = scmp.eq.s32.totalorder %s40, 0
      %p584 = por %p582, %p583
      %p585 = scmp.ne.s32.totalorder %s574, %s577
      %p586 = scmp.eq.s32.totalorder %s45, 1
      %p587 = por %p585, %p586
      %p588 = scmp.ne.s32.totalorder %s577, %s578
      %p589 = scmp.eq.s32.totalorder %s45, 0
      %p590 = por %p588, %p589
      %p591 = scmp.ne.s32.totalorder %s577, %s578
      %p592 = scmp.eq.s32.totalorder %s46, 1
      %p593 = por %p591, %p592
      %p595 = scmp.ne.s32.totalorder %s578, %s594
      %p596 = scmp.eq.s32.totalorder %s46, 0
      %p597 = por %p595, %p596
      %s598 = ssub.s32 %s40, %s47
      %p599 = scmp.eq.s32.totalorder %s598, 0
      %s601 = sadd.s32 %s600, 1
      %s602 = scalar_select %p599, %s600, %s601
      %p605 = pneg %p599
      %p606 = scmp.eq.s32.totalorder %s40, 1
      %p607 = por %p605, %p606
      %p608 = scmp.ne.s32.totalorder %s600, %s603
      %p609 = scmp.eq.s32.totalorder %s40, 0
      %p610 = por %p608, %p609
      %p611 = scmp.ne.s32.totalorder %s600, %s603
      %p612 = scmp.eq.s32.totalorder %s45, 1
      %p613 = por %p611, %p612
      %p614 = scmp.ne.s32.totalorder %s603, %s604
      %p615 = scmp.eq.s32.totalorder %s45, 0
      %p616 = por %p614, %p615
      %p617 = scmp.ne.s32.totalorder %s603, %s604
      %p618 = scmp.eq.s32.totalorder %s46, 1
      %p619 = por %p617, %p618
      %p621 = scmp.ne.s32.totalorder %s604, %s620
      %p622 = scmp.eq.s32.totalorder %s46, 0
      %p623 = por %p621, %p622
      %p624 = scmp.le.s32.totalorder 1, %s40
      %p625 = scmp.lt.s32.totalorder %s40, 3
      %p626 = pnand %p624, %p625
      %p627 = pneg %p626
      // Predicated region
      $region9: #{seq2seq_forward.1} parent=5 // pred_check
        _
      $region10: #{seq2seq_forward.1} parent=5 // pred_check_branch
        %629 = sbr.rel (%p626) target = $region12
      $region11: #{seq2seq_forward.1} parent=5 // pred_region
        %s630 = ssub.s32 %s40, 1
        // Predicated region
        $region13: #{seq2seq_forward.1} parent=11 // pred_check
          %p631 = pneg %p165
        $region14: #{seq2seq_forward.1} parent=11 // pred_check_branch
          %633 = sbr.rel (%p631) target = $region16
        $region15: #{seq2seq_forward.1} parent=11 // pred_region
          _
        $region16: #{seq2seq_forward.1} parent=11 // pred_fallthru
          _
        // Predicated region
        $region17: #{seq2seq_forward.1} parent=11 // pred_check
          %p634 = pneg %p186
        $region18: #{seq2seq_forward.1} parent=11 // pred_check_branch
          %636 = sbr.rel (%p634) target = $region20
        $region19: #{seq2seq_forward.1} parent=11 // pred_region
          _
        $region20: #{seq2seq_forward.1} parent=11 // pred_fallthru
          _
        // Predicated region
        $region21: #{seq2seq_forward.1} parent=11 // pred_check
          %p637 = pneg %p207
        $region22: #{seq2seq_forward.1} parent=11 // pred_check_branch
          %639 = sbr.rel (%p637) target = $region24
        $region23: #{seq2seq_forward.1} parent=11 // pred_region
          _
        $region24: #{seq2seq_forward.1} parent=11 // pred_fallthru
          _
        // Predicated region
        $region25: #{seq2seq_forward.1} parent=11 // pred_check
          %p640 = pneg %p228
        $region26: #{seq2seq_forward.1} parent=11 // pred_check_branch
          %642 = sbr.rel (%p640) target = $region28
        $region27: #{seq2seq_forward.1} parent=11 // pred_region
          _
        $region28: #{seq2seq_forward.1} parent=11 // pred_fallthru
          _
        // Predicated region
        $region29: #{seq2seq_forward.1} parent=11 // pred_check
          %p643 = pneg %p249
        $region30: #{seq2seq_forward.1} parent=11 // pred_check_branch
          %645 = sbr.rel (%p643) target = $region32
        $region31: #{seq2seq_forward.1} parent=11 // pred_region
          _
        $region32: #{seq2seq_forward.1} parent=11 // pred_fallthru
          _
        // Predicated region
        $region33: #{seq2seq_forward.1} parent=11 // pred_check
          %p646 = pneg %p270
        $region34: #{seq2seq_forward.1} parent=11 // pred_check_branch
          %648 = sbr.rel (%p646) target = $region36
        $region35: #{seq2seq_forward.1} parent=11 // pred_region
          _
        $region36: #{seq2seq_forward.1} parent=11 // pred_fallthru
          _
        // Predicated region
        $region37: #{seq2seq_forward.1} parent=11 // pred_check
          %p649 = pneg %p291
        $region38: #{seq2seq_forward.1} parent=11 // pred_check_branch
          %651 = sbr.rel (%p649) target = $region40
        $region39: #{seq2seq_forward.1} parent=11 // pred_region
          _
        $region40: #{seq2seq_forward.1} parent=11 // pred_fallthru
          _
        // Predicated region
        $region41: #{seq2seq_forward.1} parent=11 // pred_check
          %p652 = pneg %p312
        $region42: #{seq2seq_forward.1} parent=11 // pred_check_branch
          %654 = sbr.rel (%p652) target = $region44
        $region43: #{seq2seq_forward.1} parent=11 // pred_region
          _
        $region44: #{seq2seq_forward.1} parent=11 // pred_fallthru
          _
        // Predicated region
        $region45: #{seq2seq_forward.1} parent=11 // pred_check
          %p655 = pneg %p333
        $region46: #{seq2seq_forward.1} parent=11 // pred_check_branch
          %657 = sbr.rel (%p655) target = $region48
        $region47: #{seq2seq_forward.1} parent=11 // pred_region
          %659 = vsyncadd [#allocation3], 0
          %s660 = sshll.u32 %s12, 4
          %s661 = int_to_ptr.hbm [resolvable:$true] %s660
          %s662 = sshll.u32 [#allocation2], 4
          %s663 = int_to_ptr.vmem [resolvable:$true] %s662
          %668 = dma.hbm_to_vmem [thread:$0]  %s661, 4096, %s663, [#allocation3], 128, 128, 8
        $region48: #{seq2seq_forward.1} parent=11 // pred_fallthru
          _
        // Predicated region
        $region49: #{seq2seq_forward.1} parent=11 // pred_check
          %p669 = pneg %p354
        $region50: #{seq2seq_forward.1} parent=11 // pred_check_branch
          %671 = sbr.rel (%p669) target = $region52
        $region51: #{seq2seq_forward.1} parent=11 // pred_region
          _
        $region52: #{seq2seq_forward.1} parent=11 // pred_fallthru
          _
        // Predicated region
        $region53: #{seq2seq_forward.1} parent=11 // pred_check
          %p672 = pneg %p375
        $region54: #{seq2seq_forward.1} parent=11 // pred_check_branch
          %674 = sbr.rel (%p672) target = $region56
        $region55: #{seq2seq_forward.1} parent=11 // pred_region
          %676 = vsyncadd [#allocation6], 0
          %s677 = sshll.u32 %s14, 4
          %s678 = int_to_ptr.hbm [resolvable:$true] %s677
          %s679 = sshll.u32 [#allocation5], 4
          %s680 = int_to_ptr.vmem [resolvable:$true] %s679
          %685 = dma.hbm_to_vmem [thread:$0]  %s678, 4096, %s680, [#allocation6], 128, 128, 8
        $region56: #{seq2seq_forward.1} parent=11 // pred_fallthru
          _
        // Predicated region
        $region57: #{seq2seq_forward.1} parent=11 // pred_check
          %p686 = pneg %p396
        $region58: #{seq2seq_forward.1} parent=11 // pred_check_branch
          %688 = sbr.rel (%p686) target = $region60
        $region59: #{seq2seq_forward.1} parent=11 // pred_region
          _
        $region60: #{seq2seq_forward.1} parent=11 // pred_fallthru
          _
        // Predicated region
        $region61: #{seq2seq_forward.1} parent=11 // pred_check
          %p689 = pneg %p417
        $region62: #{seq2seq_forward.1} parent=11 // pred_check_branch
          %691 = sbr.rel (%p689) target = $region64
        $region63: #{seq2seq_forward.1} parent=11 // pred_region
          _
        $region64: #{seq2seq_forward.1} parent=11 // pred_fallthru
          _
        // Predicated region
        $region65: #{seq2seq_forward.1} parent=11 // pred_check
          %p692 = pneg %p438
        $region66: #{seq2seq_forward.1} parent=11 // pred_check_branch
          %694 = sbr.rel (%p692) target = $region68
        $region67: #{seq2seq_forward.1} parent=11 // pred_region
          _
        $region68: #{seq2seq_forward.1} parent=11 // pred_fallthru
          _
        // Predicated region
        $region69: #{seq2seq_forward.1} parent=11 // pred_check
          %p695 = pneg %p459
        $region70: #{seq2seq_forward.1} parent=11 // pred_check_branch
          %697 = sbr.rel (%p695) target = $region72
        $region71: #{seq2seq_forward.1} parent=11 // pred_region
          _
        $region72: #{seq2seq_forward.1} parent=11 // pred_fallthru
          _
        // Predicated region
        $region73: #{seq2seq_forward.1} parent=11 // pred_check
          %p698 = pneg %p480
        $region74: #{seq2seq_forward.1} parent=11 // pred_check_branch
          %700 = sbr.rel (%p698) target = $region76
        $region75: #{seq2seq_forward.1} parent=11 // pred_region
          _
        $region76: #{seq2seq_forward.1} parent=11 // pred_fallthru
          _
        // Predicated region
        $region77: #{seq2seq_forward.1} parent=11 // pred_check
          %p701 = pneg %p501
        $region78: #{seq2seq_forward.1} parent=11 // pred_check_branch
          %703 = sbr.rel (%p701) target = $region80
        $region79: #{seq2seq_forward.1} parent=11 // pred_region
          _
        $region80: #{seq2seq_forward.1} parent=11 // pred_fallthru
          _
        // Predicated region
        $region81: #{seq2seq_forward.1} parent=11 // pred_check
          %p704 = pneg %p522
        $region82: #{seq2seq_forward.1} parent=11 // pred_check_branch
          %706 = sbr.rel (%p704) target = $region84
        $region83: #{seq2seq_forward.1} parent=11 // pred_region
          _
        $region84: #{seq2seq_forward.1} parent=11 // pred_fallthru
          _
        // Predicated region
        $region85: #{seq2seq_forward.1} parent=11 // pred_check
          %p707 = pneg %p543
        $region86: #{seq2seq_forward.1} parent=11 // pred_check_branch
          %709 = sbr.rel (%p707) target = $region88
        $region87: #{seq2seq_forward.1} parent=11 // pred_region
          _
        $region88: #{seq2seq_forward.1} parent=11 // pred_fallthru
          _
        // Predicated region
        $region89: #{seq2seq_forward.1} parent=11 // pred_check
          %p710 = pneg %p564
        $region90: #{seq2seq_forward.1} parent=11 // pred_check_branch
          %712 = sbr.rel (%p710) target = $region92
        $region91: #{seq2seq_forward.1} parent=11 // pred_region
          _
        $region92: #{seq2seq_forward.1} parent=11 // pred_fallthru
          _
      $region12: #{seq2seq_forward.1} parent=5 // pred_fallthru
        _
      %p713 = scmp.lt.s32.totalorder %s40, 2
      // Predicated region
      $region93: #{seq2seq_forward.1} parent=5 // pred_check
        %p714 = pneg %p713
      $region94: #{seq2seq_forward.1} parent=5 // pred_check_branch
        %716 = sbr.rel (%p714) target = $region96
      $region95: #{seq2seq_forward.1} parent=5 // pred_region
        // Predicated region
        $region97: #{seq2seq_forward.1} parent=95 // pred_check
          %p717 = pneg %p60
        $region98: #{seq2seq_forward.1} parent=95 // pred_check_branch
          %719 = sbr.rel (%p717) target = $region100
        $region99: #{seq2seq_forward.1} parent=95 // pred_region
          %p720 = scmp.lt.s32.totalorder %s40, 1
          %s721 = scalar_select %p720, %s40, 1
          %s722 = smul.addr %s721, 8
          %s723 = scalar_lea.vmem %s0, %s722
        $region100: #{seq2seq_forward.1} parent=95 // pred_fallthru
          _
        // Predicated region
        $region101: #{seq2seq_forward.1} parent=95 // pred_check
          %p724 = pneg %p86
        $region102: #{seq2seq_forward.1} parent=95 // pred_check_branch
          %726 = sbr.rel (%p724) target = $region104
        $region103: #{seq2seq_forward.1} parent=95 // pred_region
          %p727 = scmp.lt.s32.totalorder %s40, 1
          %s728 = scalar_select %p727, %s40, 1
          %s729 = smul.addr %s728, 8
          %s730 = scalar_lea.vmem %s1, %s729
        $region104: #{seq2seq_forward.1} parent=95 // pred_fallthru
          _
        // Predicated region
        $region105: #{seq2seq_forward.1} parent=95 // pred_check
          %p731 = pneg %p112
        $region106: #{seq2seq_forward.1} parent=95 // pred_check_branch
          %733 = sbr.rel (%p731) target = $region108
        $region107: #{seq2seq_forward.1} parent=95 // pred_region
          %p734 = scmp.lt.s32.totalorder %s40, 1
          %s735 = scalar_select %p734, %s40, 1
          %s736 = scalar_lea.vmem %s2, %s735
        $region108: #{seq2seq_forward.1} parent=95 // pred_fallthru
          _
        // Predicated region
        $region109: #{seq2seq_forward.1} parent=95 // pred_check
          %p737 = pneg %p138
        $region110: #{seq2seq_forward.1} parent=95 // pred_check_branch
          %739 = sbr.rel (%p737) target = $region112
        $region111: #{seq2seq_forward.1} parent=95 // pred_region
          %p740 = scmp.lt.s32.totalorder %s40, 1
          %s741 = scalar_select %p740, %s40, 1
          %s742 = scalar_lea.vmem %s3, %s741
        $region112: #{seq2seq_forward.1} parent=95 // pred_fallthru
          _
      $region96: #{seq2seq_forward.1} parent=5 // pred_fallthru
        _
      %p743 = scmp.le.s32.totalorder 1, %s40
      %p744 = scmp.lt.s32.totalorder %s40, 3
      %p745 = pnand %p743, %p744
      %p746 = pneg %p745
      // Predicated region
      $region113: #{seq2seq_forward.1} parent=5 // pred_check
        _
      $region114: #{seq2seq_forward.1} parent=5 // pred_check_branch
        %748 = sbr.rel (%p745) target = $region116
      $region115: #{seq2seq_forward.1} parent=5 // pred_region
        %s749 = ssub.s32 %s40, 1
        // Predicated region
        $region117: #{seq2seq_forward.1} parent=115 // pred_check
          %p750 = pneg %p333
        $region118: #{seq2seq_forward.1} parent=115 // pred_check_branch
          %752 = sbr.rel (%p750) target = $region120
        $region119: #{seq2seq_forward.1} parent=115 // pred_region
          %754 = dma.done [#allocation3], 4096
        $region120: #{seq2seq_forward.1} parent=115 // pred_fallthru
          _
        // Predicated region
        $region121: #{seq2seq_forward.1} parent=115 // pred_check
          %p755 = pneg %p375
        $region122: #{seq2seq_forward.1} parent=115 // pred_check_branch
          %757 = sbr.rel (%p755) target = $region124
        $region123: #{seq2seq_forward.1} parent=115 // pred_region
          %759 = dma.done [#allocation6], 4096
        $region124: #{seq2seq_forward.1} parent=115 // pred_fallthru
          _
        %p760 = scmp.lt.s32.totalorder %s45, 1
        %s761 = scalar_select %p760, %s45, 1
        %s762 = smul.addr %s761, 8
        %s763 = scalar_lea.vmem %s0, %s762
        %p764 = pneg %p66
        %p765 = pneg %p63
        %p766 = scmp.lt.s32.totalorder %s45, 1
        %s767 = scalar_select %p766, %s45, 1
        %s768 = smul.addr %s767, 8
        %s769 = scalar_lea.vmem %s1, %s768
        %p770 = pneg %p92
        %p771 = pneg %p89
        %p772 = scmp.lt.s32.totalorder %s45, 1
        %s773 = scalar_select %p772, %s45, 1
        %s774 = scalar_lea.vmem %s2, %s773
        %p775 = pneg %p118
        %p776 = pneg %p115
        %p777 = scmp.lt.s32.totalorder %s45, 1
        %s778 = scalar_select %p777, %s45, 1
        %s779 = scalar_lea.vmem %s3, %s778
        %p780 = pneg %p144
        %p781 = pneg %p141
        %p782 = pneg %p165
        %p783 = pneg %p162
        %p784 = pneg %p186
        %p785 = pneg %p183
        %p786 = pneg %p207
        %p787 = pneg %p204
        %p788 = pneg %p228
        %p789 = pneg %p225
        %p790 = pneg %p249
        %p791 = pneg %p246
        %p792 = pneg %p270
        %p793 = pneg %p267
        %p794 = pneg %p291
        %p795 = pneg %p288
        %p796 = pneg %p312
        %p797 = pneg %p309
        %p798 = pneg %p333
        %p799 = pneg %p330
        %p800 = pneg %p354
        %p801 = pneg %p351
        %p802 = pneg %p375
        %p803 = pneg %p372
        %p804 = pneg %p396
        %p805 = pneg %p393
        %p806 = pneg %p417
        %p807 = pneg %p414
        %p808 = pneg %p438
        %p809 = pneg %p435
        %p810 = pneg %p459
        %p811 = pneg %p456
        %p812 = pneg %p480
        %p813 = pneg %p477
        %p814 = pneg %p501
        %p815 = pneg %p498
        %p816 = pneg %p522
        %p817 = pneg %p519
        %p818 = pneg %p543
        %p819 = pneg %p540
        %p820 = pneg %p564
        %p821 = pneg %p561
        %p822 = pneg %p590
        %p823 = pneg %p587
        %s824 = sand.u32 %s577, 1
        %s825 = scalar_lea.sflag [#allocation4], %s824
        %s826 = sand.u32 %s577, 1
        %s827 = smul.addr %s826, 8
        %s828 = scalar_lea.vmem [#allocation7], %s827
        %p829 = pneg %p616
        %p830 = pneg %p613
        %s831 = sand.u32 %s603, 1
        %s832 = scalar_lea.sflag [#allocation9], %s831
        %s833 = sand.u32 %s603, 1
        %s834 = smul.addr %s833, 32
        %s835 = scalar_lea.vmem [#allocation8], %s834
        %p836 = scmp.lt.s32.totalorder %s45, 1
        %s837 = scalar_select %p836, %s45, 1
        %s838 = smul.addr %s837, 8
        %s839 = scalar_lea.vmem %s0, %s838
        %p840 = scmp.lt.s32.totalorder %s45, 1
        %s841 = scalar_select %p840, %s45, 1
        %s842 = smul.addr %s841, 8
        %s843 = scalar_lea.vmem %s1, %s842
        %p844 = scmp.lt.s32.totalorder %s45, 1
        %s845 = scalar_select %p844, %s45, 1
        %s846 = scalar_lea.vmem %s2, %s845
        %p847 = scmp.lt.s32.totalorder %s45, 1
        %s848 = scalar_select %p847, %s45, 1
        %s849 = scalar_lea.vmem %s3, %s848
        %v850 = vld [vmem:[%s846] sm:$0x1]
        %vm851 = vcmp.ne.f32.partialorder %v850, 0.0
        %v852 = vld [vmem:[%s839] sm:$0xff]
        %v853 = vld [vmem:[%s6] sm:$0x3]
        %v854 = vld [vmem:[%s7] sm:$0x3]
        %v855 = vld [vmem:[%s4] sm:$0xff]
        %v856 = vld [vmem:[%s4 + $0x8] sm:$0xff]
        %v857 = vld [vmem:[%s4 + $0x10] sm:$0xff]
        %v858 = vld [vmem:[%s4 + $0x18] sm:$0xff]
        %v859 = vld [vmem:[%s4 + $0x20] sm:$0xff]
        %v860 = vld [vmem:[%s4 + $0x28] sm:$0xff]
        %v861 = vld [vmem:[%s4 + $0x30] sm:$0xff]
        %v862 = vld [vmem:[%s4 + $0x38] sm:$0xff]
        %v863 = vld [vmem:[%s4 + $0x40] sm:$0xff]
        %v864 = vld [vmem:[%s4 + $0x48] sm:$0xff]
        %v865 = vld [vmem:[%s4 + $0x50] sm:$0xff]
        %v866 = vld [vmem:[%s4 + $0x58] sm:$0xff]
        %v867 = vld [vmem:[%s4 + $0x60] sm:$0xff]
        %v868 = vld [vmem:[%s4 + $0x68] sm:$0xff]
        %v869 = vld [vmem:[%s4 + $0x70] sm:$0xff]
        %v870 = vld [vmem:[%s4 + $0x78] sm:$0xff]
        %v871 = vld [vmem:[%s5] sm:$0xf]
        %v872 = vperm.slane %v871, 0
        %vm873 = vcmask 261120
        %v875 = vsel %vm873, %v852, 0
        %877 = vmatpush.msra.mxu0 0.0
        %878 = vmatpush.msra.mxu0 0.0
        %879 = vmatpush.msra.mxu0 0.0
        %880 = vmatpush.msra.mxu0 0.0
        %881 = vmatpush.msra.mxu0 0.0
        %882 = vmatpush.msra.mxu0 0.0
        %883 = vmatpush.msra.mxu0 0.0
        %884 = vmatpush.msra.mxu0 0.0
        %885 = vmatpush.msra.mxu0 0.0
        %886 = vmatpush.msra.mxu0 0.0
        %887 = vmatpush.msra.mxu0 0.0
        %888 = vmatpush.msra.mxu0 0.0
        %889 = vmatpush.msra.mxu0 %v858
        %890 = vmatpush.msra.mxu0 %v857
        %891 = vmatpush.msra.mxu0 %v856
        %892 = vmatpush.msra.mxu0 %v855
        %893 = vmatmul.f32.gmra.mxu0 %v875
        %v894 = vpop.f32.mrf.mxu0
        %v895 = vadd.f32 %v872, %v894
        %896 = vdwg.mxu0
        %v897 = vperm.slane %v871, 1
        %898 = vmatpush.msra.mxu0 0.0
        %899 = vmatpush.msra.mxu0 0.0
        %900 = vmatpush.msra.mxu0 0.0
        %901 = vmatpush.msra.mxu0 0.0
        %902 = vmatpush.msra.mxu0 0.0
        %903 = vmatpush.msra.mxu0 0.0
        %904 = vmatpush.msra.mxu0 0.0
        %905 = vmatpush.msra.mxu0 0.0
        %906 = vmatpush.msra.mxu0 0.0
        %907 = vmatpush.msra.mxu0 0.0
        %908 = vmatpush.msra.mxu0 0.0
        %909 = vmatpush.msra.mxu0 0.0
        %910 = vmatpush.msra.mxu0 %v862
        %911 = vmatpush.msra.mxu0 %v861
        %912 = vmatpush.msra.mxu0 %v860
        %913 = vmatpush.msra.mxu0 %v859
        %914 = vmatmul.f32.gmra.mxu0 %v875
        %v915 = vpop.f32.mrf.mxu0
        %v916 = vadd.f32 %v897, %v915
        %917 = vdwg.mxu0
        %v918 = vperm.slane %v871, 2
        %919 = vmatpush.msra.mxu0 0.0
        %920 = vmatpush.msra.mxu0 0.0
        %921 = vmatpush.msra.mxu0 0.0
        %922 = vmatpush.msra.mxu0 0.0
        %923 = vmatpush.msra.mxu0 0.0
        %924 = vmatpush.msra.mxu0 0.0
        %925 = vmatpush.msra.mxu0 0.0
        %926 = vmatpush.msra.mxu0 0.0
        %927 = vmatpush.msra.mxu0 0.0
        %928 = vmatpush.msra.mxu0 0.0
        %929 = vmatpush.msra.mxu0 0.0
        %930 = vmatpush.msra.mxu0 0.0
        %931 = vmatpush.msra.mxu0 %v866
        %932 = vmatpush.msra.mxu0 %v865
        %933 = vmatpush.msra.mxu0 %v864
        %934 = vmatpush.msra.mxu0 %v863
        %935 = vmatmul.f32.gmra.mxu0 %v875
        %v936 = vpop.f32.mrf.mxu0
        %v937 = vadd.f32 %v918, %v936
        %938 = vdwg.mxu0
        %940 = vrot.lane.b32.xlu0 %v895, 120
        %v941 = vpop.permute.xlu0 %940
        %942 = vrot.lane.b32.xlu0 %v895, 112
        %v943 = vpop.permute.xlu0 %942
        %944 = vrot.lane.b32.xlu0 %v895, 104
        %v945 = vpop.permute.xlu0 %944
        %947 = vrot.lane.b32.xlu0 %v916, 120
        %v948 = vpop.permute.xlu0 %947
        %949 = vrot.lane.b32.xlu0 %v916, 112
        %v950 = vpop.permute.xlu0 %949
        %951 = vrot.lane.b32.xlu0 %v916, 104
        %v952 = vpop.permute.xlu0 %951
        %954 = vrot.lane.b32.xlu0 %v937, 120
        %v955 = vpop.permute.xlu0 %954
        %957 = vrot.lane.b32.xlu0 %v937, 112
        %v958 = vpop.permute.xlu0 %957
        %960 = vrot.lane.b32.xlu0 %v937, 104
        %v961 = vpop.permute.xlu0 %960
        %vm963 = vcmask 64512
        %v964 = vsel %vm963, %v895, 0
        %v966 = vsel %vm963, %v916, 0
        %968 = vmatpush.xpose.msra.mxu0 0.0
        %969 = vmatpush.xpose.msra.mxu0 0.0
        %970 = vmatpush.xpose.msra.mxu0 0.0
        %971 = vmatpush.xpose.msra.mxu0 0.0
        %972 = vmatpush.xpose.msra.mxu0 0.0
        %973 = vmatpush.xpose.msra.mxu0 0.0
        %974 = vmatpush.xpose.msra.mxu0 0.0
        %975 = vmatpush.xpose.msra.mxu0 0.0
        %976 = vmatpush.xpose.msra.mxu0 0.0
        %977 = vmatpush.xpose.msra.mxu0 0.0
        %978 = vmatpush.xpose.msra.mxu0 0.0
        %979 = vmatpush.xpose.msra.mxu0 0.0
        %980 = vmatpush.xpose.msra.mxu0 0.0
        %981 = vmatpush.xpose.msra.mxu0 0.0
        %982 = vmatpush.xpose.msra.mxu0 0.0
        %983 = vmatpush.xpose.msra.mxu0 %v966
        %984 = vmatmul.f32.gmra.mxu0 %v964
        %v985 = vpop.f32.mrf.mxu0
        %v986 = vadd.f32 0.0, %v985
        %987 = vdwg.mxu0
        %v988 = vsel %vm963, %v941, 0
        %v990 = vsel %vm963, %v948, 0
        %992 = vmatpush.xpose.msra.mxu0 0.0
        %993 = vmatpush.xpose.msra.mxu0 0.0
        %994 = vmatpush.xpose.msra.mxu0 0.0
        %995 = vmatpush.xpose.msra.mxu0 0.0
        %996 = vmatpush.xpose.msra.mxu0 0.0
        %997 = vmatpush.xpose.msra.mxu0 0.0
        %998 = vmatpush.xpose.msra.mxu0 0.0
        %999 = vmatpush.xpose.msra.mxu0 0.0
        %1000 = vmatpush.xpose.msra.mxu0 0.0
        %1001 = vmatpush.xpose.msra.mxu0 0.0
        %1002 = vmatpush.xpose.msra.mxu0 0.0
        %1003 = vmatpush.xpose.msra.mxu0 0.0
        %1004 = vmatpush.xpose.msra.mxu0 0.0
        %1005 = vmatpush.xpose.msra.mxu0 0.0
        %1006 = vmatpush.xpose.msra.mxu0 0.0
        %1007 = vmatpush.xpose.msra.mxu0 %v990
        %1008 = vmatmul.f32.gmra.mxu0 %v988
        %v1009 = vpop.f32.mrf.mxu0
        %v1010 = vadd.f32 0.0, %v1009
        %1011 = vdwg.mxu0
        %v1012 = vsel %vm963, %v943, 0
        %v1014 = vsel %vm963, %v950, 0
        %1016 = vmatpush.xpose.msra.mxu0 0.0
        %1017 = vmatpush.xpose.msra.mxu0 0.0
        %1018 = vmatpush.xpose.msra.mxu0 0.0
        %1019 = vmatpush.xpose.msra.mxu0 0.0
        %1020 = vmatpush.xpose.msra.mxu0 0.0
        %1021 = vmatpush.xpose.msra.mxu0 0.0
        %1022 = vmatpush.xpose.msra.mxu0 0.0
        %1023 = vmatpush.xpose.msra.mxu0 0.0
        %1024 = vmatpush.xpose.msra.mxu0 0.0
        %1025 = vmatpush.xpose.msra.mxu0 0.0
        %1026 = vmatpush.xpose.msra.mxu0 0.0
        %1027 = vmatpush.xpose.msra.mxu0 0.0
        %1028 = vmatpush.xpose.msra.mxu0 0.0
        %1029 = vmatpush.xpose.msra.mxu0 0.0
        %1030 = vmatpush.xpose.msra.mxu0 0.0
        %1031 = vmatpush.xpose.msra.mxu0 %v1014
        %1032 = vmatmul.f32.gmra.mxu0 %v1012
        %v1033 = vpop.f32.mrf.mxu0
        %v1034 = vadd.f32 0.0, %v1033
        %1035 = vdwg.mxu0
        %v1036 = vsel %vm963, %v945, 0
        %v1038 = vsel %vm963, %v952, 0
        %1040 = vmatpush.xpose.msra.mxu0 0.0
        %1041 = vmatpush.xpose.msra.mxu0 0.0
        %1042 = vmatpush.xpose.msra.mxu0 0.0
        %1043 = vmatpush.xpose.msra.mxu0 0.0
        %1044 = vmatpush.xpose.msra.mxu0 0.0
        %1045 = vmatpush.xpose.msra.mxu0 0.0
        %1046 = vmatpush.xpose.msra.mxu0 0.0
        %1047 = vmatpush.xpose.msra.mxu0 0.0
        %1048 = vmatpush.xpose.msra.mxu0 0.0
        %1049 = vmatpush.xpose.msra.mxu0 0.0
        %1050 = vmatpush.xpose.msra.mxu0 0.0
        %1051 = vmatpush.xpose.msra.mxu0 0.0
        %1052 = vmatpush.xpose.msra.mxu0 0.0
        %1053 = vmatpush.xpose.msra.mxu0 0.0
        %1054 = vmatpush.xpose.msra.mxu0 0.0
        %1055 = vmatpush.xpose.msra.mxu0 %v1038
        %1056 = vmatmul.f32.gmra.mxu0 %v1036
        %v1057 = vpop.f32.mrf.mxu0
        %v1058 = vadd.f32 0.0, %v1057
        %1059 = vdwg.mxu0
        %v1060 = vmul.f32 %v986, 0.35355338
        %v1061 = vmul.f32 %v1010, 0.35355338
        %v1062 = vmul.f32 %v1034, 0.35355338
        %v1063 = vmul.f32 %v1058, 0.35355338
        %v1064 = vsel %vm851, 1, 0
        %v1065 = vperm.slane %v1064, 0
        %vm1066 = vcmp.eq.s32.totalorder %v1065, 1
        %v1067 = vsel %vm1066, %v1060, -1e+10
        %v1068 = vsel %vm1066, %v1061, -1e+10
        %v1069 = vsel %vm1066, %v1062, -1e+10
        %v1070 = vsel %vm1066, %v1063, -1e+10
        %v1071 = vsel %vm963, %v1067, -inf
        %1072 = vmax.xlane.f32.xlu0 %v1071
        %v1073 = vpop.xlane.xlu0 %1072
        %v1074 = vsel %vm963, %v1068, -inf
        %1075 = vmax.xlane.f32.xlu0 %v1074
        %v1076 = vpop.xlane.xlu0 %1075
        %v1077 = vsel %vm963, %v1069, -inf
        %1078 = vmax.xlane.f32.xlu0 %v1077
        %v1079 = vpop.xlane.xlu0 %1078
        %v1080 = vsel %vm963, %v1070, -inf
        %1081 = vmax.xlane.f32.xlu0 %v1080
        %v1082 = vpop.xlane.xlu0 %1081
        %v1083 = vsub.f32 %v1067, %v1073
        %v1084 = vsub.f32 %v1068, %v1076
        %v1085 = vsub.f32 %v1069, %v1079
        %v1086 = vsub.f32 %v1070, %v1082
        %v1087 = vmul.f32 %v1083, 1.442695
        %v1088 = vpow.pop %v1087
        %v1089 = vmul.f32 %v1084, 1.442695
        %v1090 = vpow.pop %v1089
        %v1091 = vmul.f32 %v1085, 1.442695
        %v1092 = vpow.pop %v1091
        %v1093 = vmul.f32 %v1086, 1.442695
        %v1094 = vpow.pop %v1093
        %v1095 = vsel %vm963, %v1088, 0.0
        %1096 = vadd.xlane.f32.xlu0 %v1095
        %v1097 = vpop.xlane.xlu0 %1096
        %v1098 = vsel %vm963, %v1090, 0.0
        %1099 = vadd.xlane.f32.xlu0 %v1098
        %v1100 = vpop.xlane.xlu0 %1099
        %v1101 = vsel %vm963, %v1092, 0.0
        %1102 = vadd.xlane.f32.xlu0 %v1101
        %v1103 = vpop.xlane.xlu0 %1102
        %v1104 = vsel %vm963, %v1094, 0.0
        %1105 = vadd.xlane.f32.xlu0 %v1104
        %v1106 = vpop.xlane.xlu0 %1105
        %v1107 = vrcp.pop %v1097
        %v1108 = vrcp.pop %v1100
        %v1109 = vrcp.pop %v1103
        %v1110 = vrcp.pop %v1106
        %v1111 = vmul.f32 %v1088, %v1107
        %v1112 = vmul.f32 %v1090, %v1108
        %v1113 = vmul.f32 %v1092, %v1109
        %v1114 = vmul.f32 %v1094, %v1110
        %v1116 = vsel %vm963, %v1111, 0
        %1118 = vmatpush.msra.mxu0 0.0
        %1119 = vmatpush.msra.mxu0 0.0
        %1120 = vmatpush.msra.mxu0 0.0
        %1121 = vmatpush.msra.mxu0 0.0
        %1122 = vmatpush.msra.mxu0 0.0
        %1123 = vmatpush.msra.mxu0 0.0
        %1124 = vmatpush.msra.mxu0 0.0
        %1125 = vmatpush.msra.mxu0 0.0
        %1126 = vmatpush.msra.mxu0 0.0
        %1127 = vmatpush.msra.mxu0 0.0
        %1128 = vmatpush.msra.mxu0 0.0
        %1129 = vmatpush.msra.mxu0 0.0
        %1130 = vmatpush.msra.mxu0 0.0
        %1131 = vmatpush.msra.mxu0 0.0
        %1132 = vmatpush.msra.mxu0 0.0
        %1133 = vmatpush.msra.mxu0 %v937
        %1134 = vmatmul.f32.gmra.mxu0 %v1116
        %v1135 = vpop.f32.mrf.mxu0
        %v1136 = vadd.f32 0.0, %v1135
        %1137 = vdwg.mxu0
        %v1139 = vsel %vm963, %v1112, 0
        %1141 = vmatpush.msra.mxu0 0.0
        %1142 = vmatpush.msra.mxu0 0.0
        %1143 = vmatpush.msra.mxu0 0.0
        %1144 = vmatpush.msra.mxu0 0.0
        %1145 = vmatpush.msra.mxu0 0.0
        %1146 = vmatpush.msra.mxu0 0.0
        %1147 = vmatpush.msra.mxu0 0.0
        %1148 = vmatpush.msra.mxu0 0.0
        %1149 = vmatpush.msra.mxu0 0.0
        %1150 = vmatpush.msra.mxu0 0.0
        %1151 = vmatpush.msra.mxu0 0.0
        %1152 = vmatpush.msra.mxu0 0.0
        %1153 = vmatpush.msra.mxu0 0.0
        %1154 = vmatpush.msra.mxu0 0.0
        %1155 = vmatpush.msra.mxu0 0.0
        %1156 = vmatpush.msra.mxu0 %v955
        %1157 = vmatmul.f32.gmra.mxu0 %v1139
        %v1158 = vpop.f32.mrf.mxu0
        %v1159 = vadd.f32 0.0, %v1158
        %1160 = vdwg.mxu0
        %v1162 = vsel %vm963, %v1113, 0
        %1164 = vmatpush.msra.mxu0 0.0
        %1165 = vmatpush.msra.mxu0 0.0
        %1166 = vmatpush.msra.mxu0 0.0
        %1167 = vmatpush.msra.mxu0 0.0
        %1168 = vmatpush.msra.mxu0 0.0
        %1169 = vmatpush.msra.mxu0 0.0
        %1170 = vmatpush.msra.mxu0 0.0
        %1171 = vmatpush.msra.mxu0 0.0
        %1172 = vmatpush.msra.mxu0 0.0
        %1173 = vmatpush.msra.mxu0 0.0
        %1174 = vmatpush.msra.mxu0 0.0
        %1175 = vmatpush.msra.mxu0 0.0
        %1176 = vmatpush.msra.mxu0 0.0
        %1177 = vmatpush.msra.mxu0 0.0
        %1178 = vmatpush.msra.mxu0 0.0
        %1179 = vmatpush.msra.mxu0 %v958
        %1180 = vmatmul.f32.gmra.mxu0 %v1162
        %v1181 = vpop.f32.mrf.mxu0
        %v1182 = vadd.f32 0.0, %v1181
        %1183 = vdwg.mxu0
        %v1185 = vsel %vm963, %v1114, 0
        %1187 = vmatpush.msra.mxu0 0.0
        %1188 = vmatpush.msra.mxu0 0.0
        %1189 = vmatpush.msra.mxu0 0.0
        %1190 = vmatpush.msra.mxu0 0.0
        %1191 = vmatpush.msra.mxu0 0.0
        %1192 = vmatpush.msra.mxu0 0.0
        %1193 = vmatpush.msra.mxu0 0.0
        %1194 = vmatpush.msra.mxu0 0.0
        %1195 = vmatpush.msra.mxu0 0.0
        %1196 = vmatpush.msra.mxu0 0.0
        %1197 = vmatpush.msra.mxu0 0.0
        %1198 = vmatpush.msra.mxu0 0.0
        %1199 = vmatpush.msra.mxu0 0.0
        %1200 = vmatpush.msra.mxu0 0.0
        %1201 = vmatpush.msra.mxu0 0.0
        %1202 = vmatpush.msra.mxu0 %v961
        %1203 = vmatmul.f32.gmra.mxu0 %v1185
        %v1204 = vpop.f32.mrf.mxu0
        %v1205 = vadd.f32 0.0, %v1204
        %1206 = vdwg.mxu0
        %1208 = vrot.lane.b32.xlu0 %v1159, 8
        %v1209 = vpop.permute.xlu0 %1208
        %1212 = vrot.lane.b32.xlu0 %v1182, 16
        %v1213 = vpop.permute.xlu0 %1212
        %1216 = vrot.lane.b32.xlu0 %v1205, 24
        %v1217 = vpop.permute.xlu0 %1216
        %v1219 = vsel %vm963, %v1136, %v1209
        %vm1220 = vcmask 130048
        %v1221 = vsel %vm1220, %v1219, %v1213
        %vm1222 = vcmask 195584
        %v1223 = vsel %vm1222, %v1221, %v1217
        %v1224 = vperm.slane %v871, 3
        %v1226 = vsel %vm873, %v1223, 0
        %1228 = vmatpush.msra.mxu0 0.0
        %1229 = vmatpush.msra.mxu0 0.0
        %1230 = vmatpush.msra.mxu0 0.0
        %1231 = vmatpush.msra.mxu0 0.0
        %1232 = vmatpush.msra.mxu0 0.0
        %1233 = vmatpush.msra.mxu0 0.0
        %1234 = vmatpush.msra.mxu0 0.0
        %1235 = vmatpush.msra.mxu0 0.0
        %1236 = vmatpush.msra.mxu0 0.0
        %1237 = vmatpush.msra.mxu0 0.0
        %1238 = vmatpush.msra.mxu0 0.0
        %1239 = vmatpush.msra.mxu0 0.0
        %1240 = vmatpush.msra.mxu0 %v870
        %1241 = vmatpush.msra.mxu0 %v869
        %1242 = vmatpush.msra.mxu0 %v868
        %1243 = vmatpush.msra.mxu0 %v867
        %1244 = vmatmul.f32.gmra.mxu0 %v1226
        %v1245 = vpop.f32.mrf.mxu0
        %v1246 = vadd.f32 %v1224, %v1245
        %1247 = vdwg.mxu0
        %v1248 = vadd.f32 %v1246, %v852
        %v1249 = vsel %vm873, %v1248, 0.0
        %1250 = vadd.xlane.f32.xlu0 %v1249
        %v1251 = vpop.xlane.xlu0 %1250
        %v1252 = vrcp.pop 32.0
        %v1253 = vmul.f32 32.0, %v1252
        %v1254 = vsub.f32 1.0, %v1253
        %v1255 = vmul.f32 %v1252, %v1254
        %v1256 = vadd.f32 %v1252, %v1255
        %vm1257 = vweird.f32 %v1252
        %v1258 = vsel %vm1257, %v1252, %v1256
        %v1259 = vmul.f32 %v1251, %v1258
        %v1260 = vsub.f32 %v1248, %v1259
        %v1261 = vmul.f32 %v1260, %v1260
        %v1262 = vsel %vm873, %v1261, 0.0
        %1263 = vadd.xlane.f32.xlu0 %v1262
        %v1264 = vpop.xlane.xlu0 %1263
        %v1265 = vmul.f32 %v1264, %v1258
        %v1266 = vadd.f32 %v1265, 1e-05
        %v1267 = vrsqrt.pop %v1266
        %v1268 = vmul.f32 %v1267, %v1266
        %v1269 = vmul.f32 %v1268, %v1267
        %v1270 = vmul.f32 0.5, %v1269
        %v1271 = vsub.f32 1.5, %v1270
        %v1272 = vmul.f32 %v1267, %v1271
        %vm1273 = vweird.f32 %v1266
        %vm1274 = vweird.f32 %v1267
        %vm1275 = vmor %vm1273, %vm1274
        %v1276 = vsel %vm1275, %v1267, %v1272
        %v1277 = vmul.f32 %v1260, %v1276
        %v1278 = vperm.slane %v853, 0
        %v1279 = vmul.f32 %v1277, %v1278
        %v1280 = vperm.slane %v854, 0
        %v1281 = vadd.f32 %v1279, %v1280
        %v1282 = vld [vmem:[%s8] sm:$0xff]
        %v1283 = vld [vmem:[%s8 + $0x8] sm:$0xff]
        %v1284 = vld [vmem:[%s8 + $0x10] sm:$0xff]
        %v1285 = vld [vmem:[%s8 + $0x18] sm:$0xff]
        %v1286 = vld [vmem:[%s9] sm:$0x1]
        %v1287 = vld [vmem:[%s10] sm:$0xff]
        %v1288 = vld [vmem:[%s10 + $0x8] sm:$0xff]
        %v1289 = vld [vmem:[%s10 + $0x10] sm:$0xff]
        %v1290 = vld [vmem:[%s10 + $0x18] sm:$0xff]
        %v1291 = vld [vmem:[%s10 + $0x20] sm:$0xff]
        %v1292 = vld [vmem:[%s10 + $0x28] sm:$0xff]
        %v1293 = vld [vmem:[%s10 + $0x30] sm:$0xff]
        %v1294 = vld [vmem:[%s10 + $0x38] sm:$0xff]
        %v1295 = vld [vmem:[%s11] sm:$0x1]
        %v1297 = vperm.slane %v1286, 0
        %v1300 = vsel %vm873, %v1281, 0
        %1302 = vmatpush.msra.mxu0 0.0
        %1303 = vmatpush.msra.mxu0 0.0
        %1304 = vmatpush.msra.mxu0 0.0
        %1305 = vmatpush.msra.mxu0 0.0
        %1306 = vmatpush.msra.mxu0 0.0
        %1307 = vmatpush.msra.mxu0 0.0
        %1308 = vmatpush.msra.mxu0 0.0
        %1309 = vmatpush.msra.mxu0 0.0
        %1310 = vmatpush.msra.mxu0 0.0
        %1311 = vmatpush.msra.mxu0 0.0
        %1312 = vmatpush.msra.mxu0 0.0
        %1313 = vmatpush.msra.mxu0 0.0
        %1314 = vmatpush.msra.mxu0 %v1285
        %1315 = vmatpush.msra.mxu0 %v1284
        %1316 = vmatpush.msra.mxu0 %v1283
        %1317 = vmatpush.msra.mxu0 %v1282
        %1318 = vmatmul.f32.gmra.mxu0 %v1300
        %v1319 = vpop.f32.mrf.mxu0
        %v1320 = vadd.f32 %v1297, %v1319
        %1321 = vdwg.mxu0
        %v1322 = vmax.f32 %v1320, 0.0
        %v1324 = vperm.slane %v1295, 0
        %vm1326 = vcmask 523264
        %v1328 = vsel %vm1326, %v1322, 0
        %1330 = vmatpush.msra.mxu0 0.0
        %1331 = vmatpush.msra.mxu0 0.0
        %1332 = vmatpush.msra.mxu0 0.0
        %1333 = vmatpush.msra.mxu0 0.0
        %1334 = vmatpush.msra.mxu0 0.0
        %1335 = vmatpush.msra.mxu0 0.0
        %1336 = vmatpush.msra.mxu0 0.0
        %1337 = vmatpush.msra.mxu0 0.0
        %1338 = vmatpush.msra.mxu0 %v1294
        %1339 = vmatpush.msra.mxu0 %v1293
        %1340 = vmatpush.msra.mxu0 %v1292
        %1341 = vmatpush.msra.mxu0 %v1291
        %1342 = vmatpush.msra.mxu0 %v1290
        %1343 = vmatpush.msra.mxu0 %v1289
        %1344 = vmatpush.msra.mxu0 %v1288
        %1345 = vmatpush.msra.mxu0 %v1287
        %1346 = vmatmul.f32.gmra.mxu0 %v1328
        %v1347 = vpop.f32.mrf.mxu0
        %v1348 = vadd.f32 %v1324, %v1347
        %1349 = vdwg.mxu0
        %v1350 = vadd.f32 %v1348, %v1281
        %v1351 = vsel %vm873, %v1350, 0.0
        %1352 = vadd.xlane.f32.xlu0 %v1351
        %v1353 = vpop.xlane.xlu0 %1352
        %v1354 = vmul.f32 %v1353, %v1258
        %v1355 = vsub.f32 %v1350, %v1354
        %v1356 = vmul.f32 %v1355, %v1355
        %v1357 = vsel %vm873, %v1356, 0.0
        %1358 = vadd.xlane.f32.xlu0 %v1357
        %v1359 = vpop.xlane.xlu0 %1358
        %v1360 = vmul.f32 %v1359, %v1258
        %v1361 = vadd.f32 %v1360, 1e-05
        %v1362 = vrsqrt.pop %v1361
        %v1363 = vmul.f32 %v1362, %v1361
        %v1364 = vmul.f32 %v1363, %v1362
        %v1365 = vmul.f32 0.5, %v1364
        %v1366 = vsub.f32 1.5, %v1365
        %v1367 = vmul.f32 %v1362, %v1366
        %vm1368 = vweird.f32 %v1361
        %vm1369 = vweird.f32 %v1362
        %vm1370 = vmor %vm1368, %vm1369
        %v1371 = vsel %vm1370, %v1362, %v1367
        %v1372 = vmul.f32 %v1355, %v1371
        %v1373 = vperm.slane %v853, 1
        %v1374 = vmul.f32 %v1372, %v1373
        %v1375 = vperm.slane %v854, 1
        %v1376 = vadd.f32 %v1374, %v1375
        %s1377 = scalar_lea.vmem %s6, 2
        %v1378 = vld [vmem:[%s1377] sm:$0x3]
        %s1379 = scalar_lea.vmem %s7, 2
        %v1380 = vld [vmem:[%s1379] sm:$0x3]
        %s1381 = scalar_lea.vmem %s4, 128
        %v1382 = vld [vmem:[%s1381] sm:$0xff]
        %v1383 = vld [vmem:[%s1381 + $0x8] sm:$0xff]
        %v1384 = vld [vmem:[%s1381 + $0x10] sm:$0xff]
        %v1385 = vld [vmem:[%s1381 + $0x18] sm:$0xff]
        %v1386 = vld [vmem:[%s1381 + $0x20] sm:$0xff]
        %v1387 = vld [vmem:[%s1381 + $0x28] sm:$0xff]
        %v1388 = vld [vmem:[%s1381 + $0x30] sm:$0xff]
        %v1389 = vld [vmem:[%s1381 + $0x38] sm:$0xff]
        %v1390 = vld [vmem:[%s1381 + $0x40] sm:$0xff]
        %v1391 = vld [vmem:[%s1381 + $0x48] sm:$0xff]
        %v1392 = vld [vmem:[%s1381 + $0x50] sm:$0xff]
        %v1393 = vld [vmem:[%s1381 + $0x58] sm:$0xff]
        %v1394 = vld [vmem:[%s1381 + $0x60] sm:$0xff]
        %v1395 = vld [vmem:[%s1381 + $0x68] sm:$0xff]
        %v1396 = vld [vmem:[%s1381 + $0x70] sm:$0xff]
        %v1397 = vld [vmem:[%s1381 + $0x78] sm:$0xff]
        %s1398 = scalar_lea.vmem %s5, 4
        %v1399 = vld [vmem:[%s1398] sm:$0xf]
        %v1400 = vperm.slane %v1399, 0
        %v1402 = vsel %vm873, %v1376, 0
        %1404 = vmatpush.msra.mxu0 0.0
        %1405 = vmatpush.msra.mxu0 0.0
        %1406 = vmatpush.msra.mxu0 0.0
        %1407 = vmatpush.msra.mxu0 0.0
        %1408 = vmatpush.msra.mxu0 0.0
        %1409 = vmatpush.msra.mxu0 0.0
        %1410 = vmatpush.msra.mxu0 0.0
        %1411 = vmatpush.msra.mxu0 0.0
        %1412 = vmatpush.msra.mxu0 0.0
        %1413 = vmatpush.msra.mxu0 0.0
        %1414 = vmatpush.msra.mxu0 0.0
        %1415 = vmatpush.msra.mxu0 0.0
        %1416 = vmatpush.msra.mxu0 %v1385
        %1417 = vmatpush.msra.mxu0 %v1384
        %1418 = vmatpush.msra.mxu0 %v1383
        %1419 = vmatpush.msra.mxu0 %v1382
        %1420 = vmatmul.f32.gmra.mxu0 %v1402
        %v1421 = vpop.f32.mrf.mxu0
        %v1422 = vadd.f32 %v1400, %v1421
        %1423 = vdwg.mxu0
        %v1424 = vperm.slane %v1399, 1
        %1425 = vmatpush.msra.mxu0 0.0
        %1426 = vmatpush.msra.mxu0 0.0
        %1427 = vmatpush.msra.mxu0 0.0
        %1428 = vmatpush.msra.mxu0 0.0
        %1429 = vmatpush.msra.mxu0 0.0
        %1430 = vmatpush.msra.mxu0 0.0
        %1431 = vmatpush.msra.mxu0 0.0
        %1432 = vmatpush.msra.mxu0 0.0
        %1433 = vmatpush.msra.mxu0 0.0
        %1434 = vmatpush.msra.mxu0 0.0
        %1435 = vmatpush.msra.mxu0 0.0
        %1436 = vmatpush.msra.mxu0 0.0
        %1437 = vmatpush.msra.mxu0 %v1389
        %1438 = vmatpush.msra.mxu0 %v1388
        %1439 = vmatpush.msra.mxu0 %v1387
        %1440 = vmatpush.msra.mxu0 %v1386
        %1441 = vmatmul.f32.gmra.mxu0 %v1402
        %v1442 = vpop.f32.mrf.mxu0
        %v1443 = vadd.f32 %v1424, %v1442
        %1444 = vdwg.mxu0
        %v1445 = vperm.slane %v1399, 2
        %1446 = vmatpush.msra.mxu0 0.0
        %1447 = vmatpush.msra.mxu0 0.0
        %1448 = vmatpush.msra.mxu0 0.0
        %1449 = vmatpush.msra.mxu0 0.0
        %1450 = vmatpush.msra.mxu0 0.0
        %1451 = vmatpush.msra.mxu0 0.0
        %1452 = vmatpush.msra.mxu0 0.0
        %1453 = vmatpush.msra.mxu0 0.0
        %1454 = vmatpush.msra.mxu0 0.0
        %1455 = vmatpush.msra.mxu0 0.0
        %1456 = vmatpush.msra.mxu0 0.0
        %1457 = vmatpush.msra.mxu0 0.0
        %1458 = vmatpush.msra.mxu0 %v1393
        %1459 = vmatpush.msra.mxu0 %v1392
        %1460 = vmatpush.msra.mxu0 %v1391
        %1461 = vmatpush.msra.mxu0 %v1390
        %1462 = vmatmul.f32.gmra.mxu0 %v1402
        %v1463 = vpop.f32.mrf.mxu0
        %v1464 = vadd.f32 %v1445, %v1463
        %1465 = vdwg.mxu0
        %1467 = vrot.lane.b32.xlu0 %v1422, 120
        %v1468 = vpop.permute.xlu0 %1467
        %1469 = vrot.lane.b32.xlu0 %v1422, 112
        %v1470 = vpop.permute.xlu0 %1469
        %1471 = vrot.lane.b32.xlu0 %v1422, 104
        %v1472 = vpop.permute.xlu0 %1471
        %1474 = vrot.lane.b32.xlu0 %v1443, 120
        %v1475 = vpop.permute.xlu0 %1474
        %1476 = vrot.lane.b32.xlu0 %v1443, 112
        %v1477 = vpop.permute.xlu0 %1476
        %1478 = vrot.lane.b32.xlu0 %v1443, 104
        %v1479 = vpop.permute.xlu0 %1478
        %1481 = vrot.lane.b32.xlu0 %v1464, 120
        %v1482 = vpop.permute.xlu0 %1481
        %1484 = vrot.lane.b32.xlu0 %v1464, 112
        %v1485 = vpop.permute.xlu0 %1484
        %1487 = vrot.lane.b32.xlu0 %v1464, 104
        %v1488 = vpop.permute.xlu0 %1487
        %v1490 = vsel %vm963, %v1422, 0
        %v1492 = vsel %vm963, %v1443, 0
        %1494 = vmatpush.xpose.msra.mxu0 0.0
        %1495 = vmatpush.xpose.msra.mxu0 0.0
        %1496 = vmatpush.xpose.msra.mxu0 0.0
        %1497 = vmatpush.xpose.msra.mxu0 0.0
        %1498 = vmatpush.xpose.msra.mxu0 0.0
        %1499 = vmatpush.xpose.msra.mxu0 0.0
        %1500 = vmatpush.xpose.msra.mxu0 0.0
        %1501 = vmatpush.xpose.msra.mxu0 0.0
        %1502 = vmatpush.xpose.msra.mxu0 0.0
        %1503 = vmatpush.xpose.msra.mxu0 0.0
        %1504 = vmatpush.xpose.msra.mxu0 0.0
        %1505 = vmatpush.xpose.msra.mxu0 0.0
        %1506 = vmatpush.xpose.msra.mxu0 0.0
        %1507 = vmatpush.xpose.msra.mxu0 0.0
        %1508 = vmatpush.xpose.msra.mxu0 0.0
        %1509 = vmatpush.xpose.msra.mxu0 %v1492
        %1510 = vmatmul.f32.gmra.mxu0 %v1490
        %v1511 = vpop.f32.mrf.mxu0
        %v1512 = vadd.f32 0.0, %v1511
        %1513 = vdwg.mxu0
        %v1514 = vsel %vm963, %v1468, 0
        %v1516 = vsel %vm963, %v1475, 0
        %1518 = vmatpush.xpose.msra.mxu0 0.0
        %1519 = vmatpush.xpose.msra.mxu0 0.0
        %1520 = vmatpush.xpose.msra.mxu0 0.0
        %1521 = vmatpush.xpose.msra.mxu0 0.0
        %1522 = vmatpush.xpose.msra.mxu0 0.0
        %1523 = vmatpush.xpose.msra.mxu0 0.0
        %1524 = vmatpush.xpose.msra.mxu0 0.0
        %1525 = vmatpush.xpose.msra.mxu0 0.0
        %1526 = vmatpush.xpose.msra.mxu0 0.0
        %1527 = vmatpush.xpose.msra.mxu0 0.0
        %1528 = vmatpush.xpose.msra.mxu0 0.0
        %1529 = vmatpush.xpose.msra.mxu0 0.0
        %1530 = vmatpush.xpose.msra.mxu0 0.0
        %1531 = vmatpush.xpose.msra.mxu0 0.0
        %1532 = vmatpush.xpose.msra.mxu0 0.0
        %1533 = vmatpush.xpose.msra.mxu0 %v1516
        %1534 = vmatmul.f32.gmra.mxu0 %v1514
        %v1535 = vpop.f32.mrf.mxu0
        %v1536 = vadd.f32 0.0, %v1535
        %1537 = vdwg.mxu0
        %v1538 = vsel %vm963, %v1470, 0
        %v1540 = vsel %vm963, %v1477, 0
        %1542 = vmatpush.xpose.msra.mxu0 0.0
        %1543 = vmatpush.xpose.msra.mxu0 0.0
        %1544 = vmatpush.xpose.msra.mxu0 0.0
        %1545 = vmatpush.xpose.msra.mxu0 0.0
        %1546 = vmatpush.xpose.msra.mxu0 0.0
        %1547 = vmatpush.xpose.msra.mxu0 0.0
        %1548 = vmatpush.xpose.msra.mxu0 0.0
        %1549 = vmatpush.xpose.msra.mxu0 0.0
        %1550 = vmatpush.xpose.msra.mxu0 0.0
        %1551 = vmatpush.xpose.msra.mxu0 0.0
        %1552 = vmatpush.xpose.msra.mxu0 0.0
        %1553 = vmatpush.xpose.msra.mxu0 0.0
        %1554 = vmatpush.xpose.msra.mxu0 0.0
        %1555 = vmatpush.xpose.msra.mxu0 0.0
        %1556 = vmatpush.xpose.msra.mxu0 0.0
        %1557 = vmatpush.xpose.msra.mxu0 %v1540
        %1558 = vmatmul.f32.gmra.mxu0 %v1538
        %v1559 = vpop.f32.mrf.mxu0
        %v1560 = vadd.f32 0.0, %v1559
        %1561 = vdwg.mxu0
        %v1562 = vsel %vm963, %v1472, 0
        %v1564 = vsel %vm963, %v1479, 0
        %1566 = vmatpush.xpose.msra.mxu0 0.0
        %1567 = vmatpush.xpose.msra.mxu0 0.0
        %1568 = vmatpush.xpose.msra.mxu0 0.0
        %1569 = vmatpush.xpose.msra.mxu0 0.0
        %1570 = vmatpush.xpose.msra.mxu0 0.0
        %1571 = vmatpush.xpose.msra.mxu0 0.0
        %1572 = vmatpush.xpose.msra.mxu0 0.0
        %1573 = vmatpush.xpose.msra.mxu0 0.0
        %1574 = vmatpush.xpose.msra.mxu0 0.0
        %1575 = vmatpush.xpose.msra.mxu0 0.0
        %1576 = vmatpush.xpose.msra.mxu0 0.0
        %1577 = vmatpush.xpose.msra.mxu0 0.0
        %1578 = vmatpush.xpose.msra.mxu0 0.0
        %1579 = vmatpush.xpose.msra.mxu0 0.0
        %1580 = vmatpush.xpose.msra.mxu0 0.0
        %1581 = vmatpush.xpose.msra.mxu0 %v1564
        %1582 = vmatmul.f32.gmra.mxu0 %v1562
        %v1583 = vpop.f32.mrf.mxu0
        %v1584 = vadd.f32 0.0, %v1583
        %1585 = vdwg.mxu0
        %v1586 = vmul.f32 %v1512, 0.35355338
        %v1587 = vmul.f32 %v1536, 0.35355338
        %v1588 = vmul.f32 %v1560, 0.35355338
        %v1589 = vmul.f32 %v1584, 0.35355338
        %v1590 = vsel %vm1066, %v1586, -1e+10
        %v1591 = vsel %vm1066, %v1587, -1e+10
        %v1592 = vsel %vm1066, %v1588, -1e+10
        %v1593 = vsel %vm1066, %v1589, -1e+10
        %v1594 = vsel %vm963, %v1590, -inf
        %1595 = vmax.xlane.f32.xlu0 %v1594
        %v1596 = vpop.xlane.xlu0 %1595
        %v1597 = vsel %vm963, %v1591, -inf
        %1598 = vmax.xlane.f32.xlu0 %v1597
        %v1599 = vpop.xlane.xlu0 %1598
        %v1600 = vsel %vm963, %v1592, -inf
        %1601 = vmax.xlane.f32.xlu0 %v1600
        %v1602 = vpop.xlane.xlu0 %1601
        %v1603 = vsel %vm963, %v1593, -inf
        %1604 = vmax.xlane.f32.xlu0 %v1603
        %v1605 = vpop.xlane.xlu0 %1604
        %v1606 = vsub.f32 %v1590, %v1596
        %v1607 = vsub.f32 %v1591, %v1599
        %v1608 = vsub.f32 %v1592, %v1602
        %v1609 = vsub.f32 %v1593, %v1605
        %v1610 = vmul.f32 %v1606, 1.442695
        %v1611 = vpow.pop %v1610
        %v1612 = vmul.f32 %v1607, 1.442695
        %v1613 = vpow.pop %v1612
        %v1614 = vmul.f32 %v1608, 1.442695
        %v1615 = vpow.pop %v1614
        %v1616 = vmul.f32 %v1609, 1.442695
        %v1617 = vpow.pop %v1616
        %v1618 = vsel %vm963, %v1611, 0.0
        %1619 = vadd.xlane.f32.xlu0 %v1618
        %v1620 = vpop.xlane.xlu0 %1619
        %v1621 = vsel %vm963, %v1613, 0.0
        %1622 = vadd.xlane.f32.xlu0 %v1621
        %v1623 = vpop.xlane.xlu0 %1622
        %v1624 = vsel %vm963, %v1615, 0.0
        %1625 = vadd.xlane.f32.xlu0 %v1624
        %v1626 = vpop.xlane.xlu0 %1625
        %v1627 = vsel %vm963, %v1617, 0.0
        %1628 = vadd.xlane.f32.xlu0 %v1627
        %v1629 = vpop.xlane.xlu0 %1628
        %v1630 = vrcp.pop %v1620
        %v1631 = vrcp.pop %v1623
        %v1632 = vrcp.pop %v1626
        %v1633 = vrcp.pop %v1629
        %v1634 = vmul.f32 %v1611, %v1630
        %v1635 = vmul.f32 %v1613, %v1631
        %v1636 = vmul.f32 %v1615, %v1632
        %v1637 = vmul.f32 %v1617, %v1633
        %v1639 = vsel %vm963, %v1634, 0
        %1641 = vmatpush.msra.mxu0 0.0
        %1642 = vmatpush.msra.mxu0 0.0
        %1643 = vmatpush.msra.mxu0 0.0
        %1644 = vmatpush.msra.mxu0 0.0
        %1645 = vmatpush.msra.mxu0 0.0
        %1646 = vmatpush.msra.mxu0 0.0
        %1647 = vmatpush.msra.mxu0 0.0
        %1648 = vmatpush.msra.mxu0 0.0
        %1649 = vmatpush.msra.mxu0 0.0
        %1650 = vmatpush.msra.mxu0 0.0
        %1651 = vmatpush.msra.mxu0 0.0
        %1652 = vmatpush.msra.mxu0 0.0
        %1653 = vmatpush.msra.mxu0 0.0
        %1654 = vmatpush.msra.mxu0 0.0
        %1655 = vmatpush.msra.mxu0 0.0
        %1656 = vmatpush.msra.mxu0 %v1464
        %1657 = vmatmul.f32.gmra.mxu0 %v1639
        %v1658 = vpop.f32.mrf.mxu0
        %v1659 = vadd.f32 0.0, %v1658
        %1660 = vdwg.mxu0
        %v1662 = vsel %vm963, %v1635, 0
        %1664 = vmatpush.msra.mxu0 0.0
        %1665 = vmatpush.msra.mxu0 0.0
        %1666 = vmatpush.msra.mxu0 0.0
        %1667 = vmatpush.msra.mxu0 0.0
        %1668 = vmatpush.msra.mxu0 0.0
        %1669 = vmatpush.msra.mxu0 0.0
        %1670 = vmatpush.msra.mxu0 0.0
        %1671 = vmatpush.msra.mxu0 0.0
        %1672 = vmatpush.msra.mxu0 0.0
        %1673 = vmatpush.msra.mxu0 0.0
        %1674 = vmatpush.msra.mxu0 0.0
        %1675 = vmatpush.msra.mxu0 0.0
        %1676 = vmatpush.msra.mxu0 0.0
        %1677 = vmatpush.msra.mxu0 0.0
        %1678 = vmatpush.msra.mxu0 0.0
        %1679 = vmatpush.msra.mxu0 %v1482
        %1680 = vmatmul.f32.gmra.mxu0 %v1662
        %v1681 = vpop.f32.mrf.mxu0
        %v1682 = vadd.f32 0.0, %v1681
        %1683 = vdwg.mxu0
        %v1685 = vsel %vm963, %v1636, 0
        %1687 = vmatpush.msra.mxu0 0.0
        %1688 = vmatpush.msra.mxu0 0.0
        %1689 = vmatpush.msra.mxu0 0.0
        %1690 = vmatpush.msra.mxu0 0.0
        %1691 = vmatpush.msra.mxu0 0.0
        %1692 = vmatpush.msra.mxu0 0.0
        %1693 = vmatpush.msra.mxu0 0.0
        %1694 = vmatpush.msra.mxu0 0.0
        %1695 = vmatpush.msra.mxu0 0.0
        %1696 = vmatpush.msra.mxu0 0.0
        %1697 = vmatpush.msra.mxu0 0.0
        %1698 = vmatpush.msra.mxu0 0.0
        %1699 = vmatpush.msra.mxu0 0.0
        %1700 = vmatpush.msra.mxu0 0.0
        %1701 = vmatpush.msra.mxu0 0.0
        %1702 = vmatpush.msra.mxu0 %v1485
        %1703 = vmatmul.f32.gmra.mxu0 %v1685
        %v1704 = vpop.f32.mrf.mxu0
        %v1705 = vadd.f32 0.0, %v1704
        %1706 = vdwg.mxu0
        %v1708 = vsel %vm963, %v1637, 0
        %1710 = vmatpush.msra.mxu0 0.0
        %1711 = vmatpush.msra.mxu0 0.0
        %1712 = vmatpush.msra.mxu0 0.0
        %1713 = vmatpush.msra.mxu0 0.0
        %1714 = vmatpush.msra.mxu0 0.0
        %1715 = vmatpush.msra.mxu0 0.0
        %1716 = vmatpush.msra.mxu0 0.0
        %1717 = vmatpush.msra.mxu0 0.0
        %1718 = vmatpush.msra.mxu0 0.0
        %1719 = vmatpush.msra.mxu0 0.0
        %1720 = vmatpush.msra.mxu0 0.0
        %1721 = vmatpush.msra.mxu0 0.0
        %1722 = vmatpush.msra.mxu0 0.0
        %1723 = vmatpush.msra.mxu0 0.0
        %1724 = vmatpush.msra.mxu0 0.0
        %1725 = vmatpush.msra.mxu0 %v1488
        %1726 = vmatmul.f32.gmra.mxu0 %v1708
        %v1727 = vpop.f32.mrf.mxu0
        %v1728 = vadd.f32 0.0, %v1727
        %1729 = vdwg.mxu0
        %1731 = vrot.lane.b32.xlu0 %v1682, 8
        %v1732 = vpop.permute.xlu0 %1731
        %1735 = vrot.lane.b32.xlu0 %v1705, 16
        %v1736 = vpop.permute.xlu0 %1735
        %1739 = vrot.lane.b32.xlu0 %v1728, 24
        %v1740 = vpop.permute.xlu0 %1739
        %v1742 = vsel %vm963, %v1659, %v1732
        %v1743 = vsel %vm1220, %v1742, %v1736
        %v1744 = vsel %vm1222, %v1743, %v1740
        %v1745 = vperm.slane %v1399, 3
        %v1747 = vsel %vm873, %v1744, 0
        %1749 = vmatpush.msra.mxu0 0.0
        %1750 = vmatpush.msra.mxu0 0.0
        %1751 = vmatpush.msra.mxu0 0.0
        %1752 = vmatpush.msra.mxu0 0.0
        %1753 = vmatpush.msra.mxu0 0.0
        %1754 = vmatpush.msra.mxu0 0.0
        %1755 = vmatpush.msra.mxu0 0.0
        %1756 = vmatpush.msra.mxu0 0.0
        %1757 = vmatpush.msra.mxu0 0.0
        %1758 = vmatpush.msra.mxu0 0.0
        %1759 = vmatpush.msra.mxu0 0.0
        %1760 = vmatpush.msra.mxu0 0.0
        %1761 = vmatpush.msra.mxu0 %v1397
        %1762 = vmatpush.msra.mxu0 %v1396
        %1763 = vmatpush.msra.mxu0 %v1395
        %1764 = vmatpush.msra.mxu0 %v1394
        %1765 = vmatmul.f32.gmra.mxu0 %v1747
        %v1766 = vpop.f32.mrf.mxu0
        %v1767 = vadd.f32 %v1745, %v1766
        %1768 = vdwg.mxu0
        %v1769 = vadd.f32 %v1767, %v1376
        %v1770 = vsel %vm873, %v1769, 0.0
        %1771 = vadd.xlane.f32.xlu0 %v1770
        %v1772 = vpop.xlane.xlu0 %1771
        %v1773 = vmul.f32 %v1772, %v1258
        %v1774 = vsub.f32 %v1769, %v1773
        %v1775 = vmul.f32 %v1774, %v1774
        %v1776 = vsel %vm873, %v1775, 0.0
        %1777 = vadd.xlane.f32.xlu0 %v1776
        %v1778 = vpop.xlane.xlu0 %1777
        %v1779 = vmul.f32 %v1778, %v1258
        %v1780 = vadd.f32 %v1779, 1e-05
        %v1781 = vrsqrt.pop %v1780
        %v1782 = vmul.f32 %v1781, %v1780
        %v1783 = vmul.f32 %v1782, %v1781
        %v1784 = vmul.f32 0.5, %v1783
        %v1785 = vsub.f32 1.5, %v1784
        %v1786 = vmul.f32 %v1781, %v1785
        %vm1787 = vweird.f32 %v1780
        %vm1788 = vweird.f32 %v1781
        %vm1789 = vmor %vm1787, %vm1788
        %v1790 = vsel %vm1789, %v1781, %v1786
        %v1791 = vmul.f32 %v1774, %v1790
        %v1792 = vperm.slane %v1378, 0
        %v1793 = vmul.f32 %v1791, %v1792
        %v1794 = vperm.slane %v1380, 0
        %v1795 = vadd.f32 %v1793, %v1794
        %s1796 = scalar_lea.vmem %s8, 32
        %v1797 = vld [vmem:[%s1796] sm:$0xff]
        %v1798 = vld [vmem:[%s1796 + $0x8] sm:$0xff]
        %v1799 = vld [vmem:[%s1796 + $0x10] sm:$0xff]
        %v1800 = vld [vmem:[%s1796 + $0x18] sm:$0xff]
        %s1801 = scalar_lea.vmem %s9, 1
        %v1802 = vld [vmem:[%s1801] sm:$0x1]
        %s1803 = scalar_lea.vmem %s10, 64
        %v1804 = vld [vmem:[%s1803] sm:$0xff]
        %v1805 = vld [vmem:[%s1803 + $0x8] sm:$0xff]
        %v1806 = vld [vmem:[%s1803 + $0x10] sm:$0xff]
        %v1807 = vld [vmem:[%s1803 + $0x18] sm:$0xff]
        %v1808 = vld [vmem:[%s1803 + $0x20] sm:$0xff]
        %v1809 = vld [vmem:[%s1803 + $0x28] sm:$0xff]
        %v1810 = vld [vmem:[%s1803 + $0x30] sm:$0xff]
        %v1811 = vld [vmem:[%s1803 + $0x38] sm:$0xff]
        %s1812 = scalar_lea.vmem %s11, 1
        %v1813 = vld [vmem:[%s1812] sm:$0x1]
        %v1815 = vperm.slane %v1802, 0
        %v1818 = vsel %vm873, %v1795, 0
        %1820 = vmatpush.msra.mxu0 0.0
        %1821 = vmatpush.msra.mxu0 0.0
        %1822 = vmatpush.msra.mxu0 0.0
        %1823 = vmatpush.msra.mxu0 0.0
        %1824 = vmatpush.msra.mxu0 0.0
        %1825 = vmatpush.msra.mxu0 0.0
        %1826 = vmatpush.msra.mxu0 0.0
        %1827 = vmatpush.msra.mxu0 0.0
        %1828 = vmatpush.msra.mxu0 0.0
        %1829 = vmatpush.msra.mxu0 0.0
        %1830 = vmatpush.msra.mxu0 0.0
        %1831 = vmatpush.msra.mxu0 0.0
        %1832 = vmatpush.msra.mxu0 %v1800
        %1833 = vmatpush.msra.mxu0 %v1799
        %1834 = vmatpush.msra.mxu0 %v1798
        %1835 = vmatpush.msra.mxu0 %v1797
        %1836 = vmatmul.f32.gmra.mxu0 %v1818
        %v1837 = vpop.f32.mrf.mxu0
        %v1838 = vadd.f32 %v1815, %v1837
        %1839 = vdwg.mxu0
        %v1840 = vmax.f32 %v1838, 0.0
        %v1842 = vperm.slane %v1813, 0
        %v1845 = vsel %vm1326, %v1840, 0
        %1847 = vmatpush.msra.mxu0 0.0
        %1848 = vmatpush.msra.mxu0 0.0
        %1849 = vmatpush.msra.mxu0 0.0
        %1850 = vmatpush.msra.mxu0 0.0
        %1851 = vmatpush.msra.mxu0 0.0
        %1852 = vmatpush.msra.mxu0 0.0
        %1853 = vmatpush.msra.mxu0 0.0
        %1854 = vmatpush.msra.mxu0 0.0
        %1855 = vmatpush.msra.mxu0 %v1811
        %1856 = vmatpush.msra.mxu0 %v1810
        %1857 = vmatpush.msra.mxu0 %v1809
        %1858 = vmatpush.msra.mxu0 %v1808
        %1859 = vmatpush.msra.mxu0 %v1807
        %1860 = vmatpush.msra.mxu0 %v1806
        %1861 = vmatpush.msra.mxu0 %v1805
        %1862 = vmatpush.msra.mxu0 %v1804
        %1863 = vmatmul.f32.gmra.mxu0 %v1845
        %v1864 = vpop.f32.mrf.mxu0
        %v1865 = vadd.f32 %v1842, %v1864
        %1866 = vdwg.mxu0
        %v1867 = vadd.f32 %v1865, %v1795
        %v1868 = vsel %vm873, %v1867, 0.0
        %1869 = vadd.xlane.f32.xlu0 %v1868
        %v1870 = vpop.xlane.xlu0 %1869
        %v1871 = vmul.f32 %v1870, %v1258
        %v1872 = vsub.f32 %v1867, %v1871
        %v1873 = vmul.f32 %v1872, %v1872
        %v1874 = vsel %vm873, %v1873, 0.0
        %1875 = vadd.xlane.f32.xlu0 %v1874
        %v1876 = vpop.xlane.xlu0 %1875
        %v1877 = vmul.f32 %v1876, %v1258
        %v1878 = vadd.f32 %v1877, 1e-05
        %v1879 = vrsqrt.pop %v1878
        %v1880 = vmul.f32 %v1879, %v1878
        %v1881 = vmul.f32 %v1880, %v1879
        %v1882 = vmul.f32 0.5, %v1881
        %v1883 = vsub.f32 1.5, %v1882
        %v1884 = vmul.f32 %v1879, %v1883
        %vm1885 = vweird.f32 %v1878
        %vm1886 = vweird.f32 %v1879
        %vm1887 = vmor %vm1885, %vm1886
        %v1888 = vsel %vm1887, %v1879, %v1884
        %v1889 = vmul.f32 %v1872, %v1888
        %v1890 = vperm.slane %v1378, 1
        %v1891 = vmul.f32 %v1889, %v1890
        %v1892 = vperm.slane %v1380, 1
        %v1893 = vadd.f32 %v1891, %v1892
        %v1894 = vlaneseq
        %v1895 = vshrl.u32 %v1894, 7
        %v1896 = vlaneseq
        %v1897 = vand.u32 %v1896, 127
        %v1898 = vld [vmem:[%s849] sm:$0x1]
        %vm1899 = vcmp.ne.f32.partialorder %v1898, 0.0
        %vm1900 = vcmp.ge.s32.totalorder %v1895, %v1897
        %v1901 = vsel %vm1899, 1, 0
        %v1902 = vperm.slane %v1901, 0
        %vm1903 = vcmp.eq.s32.totalorder %v1902, 1
        %vm1904 = vmand %vm1903, %vm1900
        %v1905 = vld [vmem:[%s843] sm:$0xff]
        %v1906 = vld [vmem:[%s16] sm:$0x7]
        %v1907 = vld [vmem:[%s17] sm:$0x7]
        %v1908 = vld [vmem:[#allocation2] sm:$0xff]
        %v1909 = vld [vmem:[#allocation2 + $0x8] sm:$0xff]
        %v1910 = vld [vmem:[#allocation2 + $0x10] sm:$0xff]
        %v1911 = vld [vmem:[#allocation2 + $0x18] sm:$0xff]
        %v1912 = vld [vmem:[#allocation2 + $0x20] sm:$0xff]
        %v1913 = vld [vmem:[#allocation2 + $0x28] sm:$0xff]
        %v1914 = vld [vmem:[#allocation2 + $0x30] sm:$0xff]
        %v1915 = vld [vmem:[#allocation2 + $0x38] sm:$0xff]
        %v1916 = vld [vmem:[#allocation2 + $0x40] sm:$0xff]
        %v1917 = vld [vmem:[#allocation2 + $0x48] sm:$0xff]
        %v1918 = vld [vmem:[#allocation2 + $0x50] sm:$0xff]
        %v1919 = vld [vmem:[#allocation2 + $0x58] sm:$0xff]
        %v1920 = vld [vmem:[#allocation2 + $0x60] sm:$0xff]
        %v1921 = vld [vmem:[#allocation2 + $0x68] sm:$0xff]
        %v1922 = vld [vmem:[#allocation2 + $0x70] sm:$0xff]
        %v1923 = vld [vmem:[#allocation2 + $0x78] sm:$0xff]
        %v1924 = vld [vmem:[%s13] sm:$0xf]
        %v1925 = vperm.slane %v1924, 0
        %v1927 = vsel %vm873, %v1905, 0
        %1929 = vmatpush.msra.mxu0 0.0
        %1930 = vmatpush.msra.mxu0 0.0
        %1931 = vmatpush.msra.mxu0 0.0
        %1932 = vmatpush.msra.mxu0 0.0
        %1933 = vmatpush.msra.mxu0 0.0
        %1934 = vmatpush.msra.mxu0 0.0
        %1935 = vmatpush.msra.mxu0 0.0
        %1936 = vmatpush.msra.mxu0 0.0
        %1937 = vmatpush.msra.mxu0 0.0
        %1938 = vmatpush.msra.mxu0 0.0
        %1939 = vmatpush.msra.mxu0 0.0
        %1940 = vmatpush.msra.mxu0 0.0
        %1941 = vmatpush.msra.mxu0 %v1911
        %1942 = vmatpush.msra.mxu0 %v1910
        %1943 = vmatpush.msra.mxu0 %v1909
        %1944 = vmatpush.msra.mxu0 %v1908
        %1945 = vmatmul.f32.gmra.mxu0 %v1927
        %v1946 = vpop.f32.mrf.mxu0
        %v1947 = vadd.f32 %v1925, %v1946
        %1948 = vdwg.mxu0
        %v1949 = vperm.slane %v1924, 1
        %1950 = vmatpush.msra.mxu0 0.0
        %1951 = vmatpush.msra.mxu0 0.0
        %1952 = vmatpush.msra.mxu0 0.0
        %1953 = vmatpush.msra.mxu0 0.0
        %1954 = vmatpush.msra.mxu0 0.0
        %1955 = vmatpush.msra.mxu0 0.0
        %1956 = vmatpush.msra.mxu0 0.0
        %1957 = vmatpush.msra.mxu0 0.0
        %1958 = vmatpush.msra.mxu0 0.0
        %1959 = vmatpush.msra.mxu0 0.0
        %1960 = vmatpush.msra.mxu0 0.0
        %1961 = vmatpush.msra.mxu0 0.0
        %1962 = vmatpush.msra.mxu0 %v1915
        %1963 = vmatpush.msra.mxu0 %v1914
        %1964 = vmatpush.msra.mxu0 %v1913
        %1965 = vmatpush.msra.mxu0 %v1912
        %1966 = vmatmul.f32.gmra.mxu0 %v1927
        %v1967 = vpop.f32.mrf.mxu0
        %v1968 = vadd.f32 %v1949, %v1967
        %1969 = vdwg.mxu0
        %v1970 = vperm.slane %v1924, 2
        %1971 = vmatpush.msra.mxu0 0.0
        %1972 = vmatpush.msra.mxu0 0.0
        %1973 = vmatpush.msra.mxu0 0.0
        %1974 = vmatpush.msra.mxu0 0.0
        %1975 = vmatpush.msra.mxu0 0.0
        %1976 = vmatpush.msra.mxu0 0.0
        %1977 = vmatpush.msra.mxu0 0.0
        %1978 = vmatpush.msra.mxu0 0.0
        %1979 = vmatpush.msra.mxu0 0.0
        %1980 = vmatpush.msra.mxu0 0.0
        %1981 = vmatpush.msra.mxu0 0.0
        %1982 = vmatpush.msra.mxu0 0.0
        %1983 = vmatpush.msra.mxu0 %v1919
        %1984 = vmatpush.msra.mxu0 %v1918
        %1985 = vmatpush.msra.mxu0 %v1917
        %1986 = vmatpush.msra.mxu0 %v1916
        %1987 = vmatmul.f32.gmra.mxu0 %v1927
        %v1988 = vpop.f32.mrf.mxu0
        %v1989 = vadd.f32 %v1970, %v1988
        %1990 = vdwg.mxu0
        %1992 = vrot.lane.b32.xlu0 %v1947, 120
        %v1993 = vpop.permute.xlu0 %1992
        %1994 = vrot.lane.b32.xlu0 %v1947, 112
        %v1995 = vpop.permute.xlu0 %1994
        %1996 = vrot.lane.b32.xlu0 %v1947, 104
        %v1997 = vpop.permute.xlu0 %1996
        %1999 = vrot.lane.b32.xlu0 %v1968, 120
        %v2000 = vpop.permute.xlu0 %1999
        %2001 = vrot.lane.b32.xlu0 %v1968, 112
        %v2002 = vpop.permute.xlu0 %2001
        %2003 = vrot.lane.b32.xlu0 %v1968, 104
        %v2004 = vpop.permute.xlu0 %2003
        %2006 = vrot.lane.b32.xlu0 %v1989, 120
        %v2007 = vpop.permute.xlu0 %2006
        %2009 = vrot.lane.b32.xlu0 %v1989, 112
        %v2010 = vpop.permute.xlu0 %2009
        %2012 = vrot.lane.b32.xlu0 %v1989, 104
        %v2013 = vpop.permute.xlu0 %2012
        %v2015 = vsel %vm963, %v1947, 0
        %v2017 = vsel %vm963, %v1968, 0
        %2019 = vmatpush.xpose.msra.mxu0 0.0
        %2020 = vmatpush.xpose.msra.mxu0 0.0
        %2021 = vmatpush.xpose.msra.mxu0 0.0
        %2022 = vmatpush.xpose.msra.mxu0 0.0
        %2023 = vmatpush.xpose.msra.mxu0 0.0
        %2024 = vmatpush.xpose.msra.mxu0 0.0
        %2025 = vmatpush.xpose.msra.mxu0 0.0
        %2026 = vmatpush.xpose.msra.mxu0 0.0
        %2027 = vmatpush.xpose.msra.mxu0 0.0
        %2028 = vmatpush.xpose.msra.mxu0 0.0
        %2029 = vmatpush.xpose.msra.mxu0 0.0
        %2030 = vmatpush.xpose.msra.mxu0 0.0
        %2031 = vmatpush.xpose.msra.mxu0 0.0
        %2032 = vmatpush.xpose.msra.mxu0 0.0
        %2033 = vmatpush.xpose.msra.mxu0 0.0
        %2034 = vmatpush.xpose.msra.mxu0 %v2017
        %2035 = vmatmul.f32.gmra.mxu0 %v2015
        %v2036 = vpop.f32.mrf.mxu0
        %v2037 = vadd.f32 0.0, %v2036
        %2038 = vdwg.mxu0
        %v2039 = vsel %vm963, %v1993, 0
        %v2041 = vsel %vm963, %v2000, 0
        %2043 = vmatpush.xpose.msra.mxu0 0.0
        %2044 = vmatpush.xpose.msra.mxu0 0.0
        %2045 = vmatpush.xpose.msra.mxu0 0.0
        %2046 = vmatpush.xpose.msra.mxu0 0.0
        %2047 = vmatpush.xpose.msra.mxu0 0.0
        %2048 = vmatpush.xpose.msra.mxu0 0.0
        %2049 = vmatpush.xpose.msra.mxu0 0.0
        %2050 = vmatpush.xpose.msra.mxu0 0.0
        %2051 = vmatpush.xpose.msra.mxu0 0.0
        %2052 = vmatpush.xpose.msra.mxu0 0.0
        %2053 = vmatpush.xpose.msra.mxu0 0.0
        %2054 = vmatpush.xpose.msra.mxu0 0.0
        %2055 = vmatpush.xpose.msra.mxu0 0.0
        %2056 = vmatpush.xpose.msra.mxu0 0.0
        %2057 = vmatpush.xpose.msra.mxu0 0.0
        %2058 = vmatpush.xpose.msra.mxu0 %v2041
        %2059 = vmatmul.f32.gmra.mxu0 %v2039
        %v2060 = vpop.f32.mrf.mxu0
        %v2061 = vadd.f32 0.0, %v2060
        %2062 = vdwg.mxu0
        %v2063 = vsel %vm963, %v1995, 0
        %v2065 = vsel %vm963, %v2002, 0
        %2067 = vmatpush.xpose.msra.mxu0 0.0
        %2068 = vmatpush.xpose.msra.mxu0 0.0
        %2069 = vmatpush.xpose.msra.mxu0 0.0
        %2070 = vmatpush.xpose.msra.mxu0 0.0
        %2071 = vmatpush.xpose.msra.mxu0 0.0
        %2072 = vmatpush.xpose.msra.mxu0 0.0
        %2073 = vmatpush.xpose.msra.mxu0 0.0
        %2074 = vmatpush.xpose.msra.mxu0 0.0
        %2075 = vmatpush.xpose.msra.mxu0 0.0
        %2076 = vmatpush.xpose.msra.mxu0 0.0
        %2077 = vmatpush.xpose.msra.mxu0 0.0
        %2078 = vmatpush.xpose.msra.mxu0 0.0
        %2079 = vmatpush.xpose.msra.mxu0 0.0
        %2080 = vmatpush.xpose.msra.mxu0 0.0
        %2081 = vmatpush.xpose.msra.mxu0 0.0
        %2082 = vmatpush.xpose.msra.mxu0 %v2065
        %2083 = vmatmul.f32.gmra.mxu0 %v2063
        %v2084 = vpop.f32.mrf.mxu0
        %v2085 = vadd.f32 0.0, %v2084
        %2086 = vdwg.mxu0
        %v2087 = vsel %vm963, %v1997, 0
        %v2089 = vsel %vm963, %v2004, 0
        %2091 = vmatpush.xpose.msra.mxu0 0.0
        %2092 = vmatpush.xpose.msra.mxu0 0.0
        %2093 = vmatpush.xpose.msra.mxu0 0.0
        %2094 = vmatpush.xpose.msra.mxu0 0.0
        %2095 = vmatpush.xpose.msra.mxu0 0.0
        %2096 = vmatpush.xpose.msra.mxu0 0.0
        %2097 = vmatpush.xpose.msra.mxu0 0.0
        %2098 = vmatpush.xpose.msra.mxu0 0.0
        %2099 = vmatpush.xpose.msra.mxu0 0.0
        %2100 = vmatpush.xpose.msra.mxu0 0.0
        %2101 = vmatpush.xpose.msra.mxu0 0.0
        %2102 = vmatpush.xpose.msra.mxu0 0.0
        %2103 = vmatpush.xpose.msra.mxu0 0.0
        %2104 = vmatpush.xpose.msra.mxu0 0.0
        %2105 = vmatpush.xpose.msra.mxu0 0.0
        %2106 = vmatpush.xpose.msra.mxu0 %v2089
        %2107 = vmatmul.f32.gmra.mxu0 %v2087
        %v2108 = vpop.f32.mrf.mxu0
        %v2109 = vadd.f32 0.0, %v2108
        %2110 = vdwg.mxu0
        %v2111 = vmul.f32 %v2037, 0.35355338
        %v2112 = vmul.f32 %v2061, 0.35355338
        %v2113 = vmul.f32 %v2085, 0.35355338
        %v2114 = vmul.f32 %v2109, 0.35355338
        %v2115 = vsel %vm1904, 1, 0
        %vm2116 = vcmp.eq.s32.totalorder %v2115, 1
        %v2117 = vsel %vm2116, %v2111, -1e+10
        %v2118 = vsel %vm2116, %v2112, -1e+10
        %v2119 = vsel %vm2116, %v2113, -1e+10
        %v2120 = vsel %vm2116, %v2114, -1e+10
        %v2121 = vsel %vm963, %v2117, -inf
        %2122 = vmax.xlane.f32.xlu0 %v2121
        %v2123 = vpop.xlane.xlu0 %2122
        %v2124 = vsel %vm963, %v2118, -inf
        %2125 = vmax.xlane.f32.xlu0 %v2124
        %v2126 = vpop.xlane.xlu0 %2125
        %v2127 = vsel %vm963, %v2119, -inf
        %2128 = vmax.xlane.f32.xlu0 %v2127
        %v2129 = vpop.xlane.xlu0 %2128
        %v2130 = vsel %vm963, %v2120, -inf
        %2131 = vmax.xlane.f32.xlu0 %v2130
        %v2132 = vpop.xlane.xlu0 %2131
        %v2133 = vsub.f32 %v2117, %v2123
        %v2134 = vsub.f32 %v2118, %v2126
        %v2135 = vsub.f32 %v2119, %v2129
        %v2136 = vsub.f32 %v2120, %v2132
        %v2137 = vmul.f32 %v2133, 1.442695
        %v2138 = vpow.pop %v2137
        %v2139 = vmul.f32 %v2134, 1.442695
        %v2140 = vpow.pop %v2139
        %v2141 = vmul.f32 %v2135, 1.442695
        %v2142 = vpow.pop %v2141
        %v2143 = vmul.f32 %v2136, 1.442695
        %v2144 = vpow.pop %v2143
        %v2145 = vsel %vm963, %v2138, 0.0
        %2146 = vadd.xlane.f32.xlu0 %v2145
        %v2147 = vpop.xlane.xlu0 %2146
        %v2148 = vsel %vm963, %v2140, 0.0
        %2149 = vadd.xlane.f32.xlu0 %v2148
        %v2150 = vpop.xlane.xlu0 %2149
        %v2151 = vsel %vm963, %v2142, 0.0
        %2152 = vadd.xlane.f32.xlu0 %v2151
        %v2153 = vpop.xlane.xlu0 %2152
        %v2154 = vsel %vm963, %v2144, 0.0
        %2155 = vadd.xlane.f32.xlu0 %v2154
        %v2156 = vpop.xlane.xlu0 %2155
        %v2157 = vrcp.pop %v2147
        %v2158 = vrcp.pop %v2150
        %v2159 = vrcp.pop %v2153
        %v2160 = vrcp.pop %v2156
        %v2161 = vmul.f32 %v2138, %v2157
        %v2162 = vmul.f32 %v2140, %v2158
        %v2163 = vmul.f32 %v2142, %v2159
        %v2164 = vmul.f32 %v2144, %v2160
        %v2166 = vsel %vm963, %v2161, 0
        %2168 = vmatpush.msra.mxu0 0.0
        %2169 = vmatpush.msra.mxu0 0.0
        %2170 = vmatpush.msra.mxu0 0.0
        %2171 = vmatpush.msra.mxu0 0.0
        %2172 = vmatpush.msra.mxu0 0.0
        %2173 = vmatpush.msra.mxu0 0.0
        %2174 = vmatpush.msra.mxu0 0.0
        %2175 = vmatpush.msra.mxu0 0.0
        %2176 = vmatpush.msra.mxu0 0.0
        %2177 = vmatpush.msra.mxu0 0.0
        %2178 = vmatpush.msra.mxu0 0.0
        %2179 = vmatpush.msra.mxu0 0.0
        %2180 = vmatpush.msra.mxu0 0.0
        %2181 = vmatpush.msra.mxu0 0.0
        %2182 = vmatpush.msra.mxu0 0.0
        %2183 = vmatpush.msra.mxu0 %v1989
        %2184 = vmatmul.f32.gmra.mxu0 %v2166
        %v2185 = vpop.f32.mrf.mxu0
        %v2186 = vadd.f32 0.0, %v2185
        %2187 = vdwg.mxu0
        %v2189 = vsel %vm963, %v2162, 0
        %2191 = vmatpush.msra.mxu0 0.0
        %2192 = vmatpush.msra.mxu0 0.0
        %2193 = vmatpush.msra.mxu0 0.0
        %2194 = vmatpush.msra.mxu0 0.0
        %2195 = vmatpush.msra.mxu0 0.0
        %2196 = vmatpush.msra.mxu0 0.0
        %2197 = vmatpush.msra.mxu0 0.0
        %2198 = vmatpush.msra.mxu0 0.0
        %2199 = vmatpush.msra.mxu0 0.0
        %2200 = vmatpush.msra.mxu0 0.0
        %2201 = vmatpush.msra.mxu0 0.0
        %2202 = vmatpush.msra.mxu0 0.0
        %2203 = vmatpush.msra.mxu0 0.0
        %2204 = vmatpush.msra.mxu0 0.0
        %2205 = vmatpush.msra.mxu0 0.0
        %2206 = vmatpush.msra.mxu0 %v2007
        %2207 = vmatmul.f32.gmra.mxu0 %v2189
        %v2208 = vpop.f32.mrf.mxu0
        %v2209 = vadd.f32 0.0, %v2208
        %2210 = vdwg.mxu0
        %v2212 = vsel %vm963, %v2163, 0
        %2214 = vmatpush.msra.mxu0 0.0
        %2215 = vmatpush.msra.mxu0 0.0
        %2216 = vmatpush.msra.mxu0 0.0
        %2217 = vmatpush.msra.mxu0 0.0
        %2218 = vmatpush.msra.mxu0 0.0
        %2219 = vmatpush.msra.mxu0 0.0
        %2220 = vmatpush.msra.mxu0 0.0
        %2221 = vmatpush.msra.mxu0 0.0
        %2222 = vmatpush.msra.mxu0 0.0
        %2223 = vmatpush.msra.mxu0 0.0
        %2224 = vmatpush.msra.mxu0 0.0
        %2225 = vmatpush.msra.mxu0 0.0
        %2226 = vmatpush.msra.mxu0 0.0
        %2227 = vmatpush.msra.mxu0 0.0
        %2228 = vmatpush.msra.mxu0 0.0
        %2229 = vmatpush.msra.mxu0 %v2010
        %2230 = vmatmul.f32.gmra.mxu0 %v2212
        %v2231 = vpop.f32.mrf.mxu0
        %v2232 = vadd.f32 0.0, %v2231
        %2233 = vdwg.mxu0
        %v2235 = vsel %vm963, %v2164, 0
        %2237 = vmatpush.msra.mxu0 0.0
        %2238 = vmatpush.msra.mxu0 0.0
        %2239 = vmatpush.msra.mxu0 0.0
        %2240 = vmatpush.msra.mxu0 0.0
        %2241 = vmatpush.msra.mxu0 0.0
        %2242 = vmatpush.msra.mxu0 0.0
        %2243 = vmatpush.msra.mxu0 0.0
        %2244 = vmatpush.msra.mxu0 0.0
        %2245 = vmatpush.msra.mxu0 0.0
        %2246 = vmatpush.msra.mxu0 0.0
        %2247 = vmatpush.msra.mxu0 0.0
        %2248 = vmatpush.msra.mxu0 0.0
        %2249 = vmatpush.msra.mxu0 0.0
        %2250 = vmatpush.msra.mxu0 0.0
        %2251 = vmatpush.msra.mxu0 0.0
        %2252 = vmatpush.msra.mxu0 %v2013
        %2253 = vmatmul.f32.gmra.mxu0 %v2235
        %v2254 = vpop.f32.mrf.mxu0
        %v2255 = vadd.f32 0.0, %v2254
        %2256 = vdwg.mxu0
        %2258 = vrot.lane.b32.xlu0 %v2209, 8
        %v2259 = vpop.permute.xlu0 %2258
        %2262 = vrot.lane.b32.xlu0 %v2232, 16
        %v2263 = vpop.permute.xlu0 %2262
        %2266 = vrot.lane.b32.xlu0 %v2255, 24
        %v2267 = vpop.permute.xlu0 %2266
        %v2269 = vsel %vm963, %v2186, %v2259
        %v2270 = vsel %vm1220, %v2269, %v2263
        %v2271 = vsel %vm1222, %v2270, %v2267
        %v2272 = vperm.slane %v1924, 3
        %v2274 = vsel %vm873, %v2271, 0
        %2276 = vmatpush.msra.mxu0 0.0
        %2277 = vmatpush.msra.mxu0 0.0
        %2278 = vmatpush.msra.mxu0 0.0
        %2279 = vmatpush.msra.mxu0 0.0
        %2280 = vmatpush.msra.mxu0 0.0
        %2281 = vmatpush.msra.mxu0 0.0
        %2282 = vmatpush.msra.mxu0 0.0
        %2283 = vmatpush.msra.mxu0 0.0
        %2284 = vmatpush.msra.mxu0 0.0
        %2285 = vmatpush.msra.mxu0 0.0
        %2286 = vmatpush.msra.mxu0 0.0
        %2287 = vmatpush.msra.mxu0 0.0
        %2288 = vmatpush.msra.mxu0 %v1923
        %2289 = vmatpush.msra.mxu0 %v1922
        %2290 = vmatpush.msra.mxu0 %v1921
        %2291 = vmatpush.msra.mxu0 %v1920
        %2292 = vmatmul.f32.gmra.mxu0 %v2274
        %v2293 = vpop.f32.mrf.mxu0
        %v2294 = vadd.f32 %v2272, %v2293
        %2295 = vdwg.mxu0
        %v2296 = vadd.f32 %v2294, %v1905
        %v2297 = vsel %vm873, %v2296, 0.0
        %2298 = vadd.xlane.f32.xlu0 %v2297
        %v2299 = vpop.xlane.xlu0 %2298
        %v2300 = vmul.f32 %v2299, %v1258
        %v2301 = vsub.f32 %v2296, %v2300
        %v2302 = vmul.f32 %v2301, %v2301
        %v2303 = vsel %vm873, %v2302, 0.0
        %2304 = vadd.xlane.f32.xlu0 %v2303
        %v2305 = vpop.xlane.xlu0 %2304
        %v2306 = vmul.f32 %v2305, %v1258
        %v2307 = vadd.f32 %v2306, 1e-05
        %v2308 = vrsqrt.pop %v2307
        %v2309 = vmul.f32 %v2308, %v2307
        %v2310 = vmul.f32 %v2309, %v2308
        %v2311 = vmul.f32 0.5, %v2310
        %v2312 = vsub.f32 1.5, %v2311
        %v2313 = vmul.f32 %v2308, %v2312
        %vm2314 = vweird.f32 %v2307
        %vm2315 = vweird.f32 %v2308
        %vm2316 = vmor %vm2314, %vm2315
        %v2317 = vsel %vm2316, %v2308, %v2313
        %v2318 = vmul.f32 %v2301, %v2317
        %v2319 = vperm.slane %v1906, 0
        %v2320 = vmul.f32 %v2318, %v2319
        %v2321 = vperm.slane %v1907, 0
        %v2322 = vadd.f32 %v2320, %v2321
        %v2323 = vld [vmem:[#allocation5] sm:$0xff]
        %v2324 = vld [vmem:[#allocation5 + $0x8] sm:$0xff]
        %v2325 = vld [vmem:[#allocation5 + $0x10] sm:$0xff]
        %v2326 = vld [vmem:[#allocation5 + $0x18] sm:$0xff]
        %v2327 = vld [vmem:[#allocation5 + $0x20] sm:$0xff]
        %v2328 = vld [vmem:[#allocation5 + $0x28] sm:$0xff]
        %v2329 = vld [vmem:[#allocation5 + $0x30] sm:$0xff]
        %v2330 = vld [vmem:[#allocation5 + $0x38] sm:$0xff]
        %v2331 = vld [vmem:[#allocation5 + $0x40] sm:$0xff]
        %v2332 = vld [vmem:[#allocation5 + $0x48] sm:$0xff]
        %v2333 = vld [vmem:[#allocation5 + $0x50] sm:$0xff]
        %v2334 = vld [vmem:[#allocation5 + $0x58] sm:$0xff]
        %v2335 = vld [vmem:[#allocation5 + $0x60] sm:$0xff]
        %v2336 = vld [vmem:[#allocation5 + $0x68] sm:$0xff]
        %v2337 = vld [vmem:[#allocation5 + $0x70] sm:$0xff]
        %v2338 = vld [vmem:[#allocation5 + $0x78] sm:$0xff]
        %v2339 = vld [vmem:[%s15] sm:$0xf]
        %v2340 = vperm.slane %v2339, 0
        %v2342 = vsel %vm873, %v2322, 0
        %2344 = vmatpush.msra.mxu0 0.0
        %2345 = vmatpush.msra.mxu0 0.0
        %2346 = vmatpush.msra.mxu0 0.0
        %2347 = vmatpush.msra.mxu0 0.0
        %2348 = vmatpush.msra.mxu0 0.0
        %2349 = vmatpush.msra.mxu0 0.0
        %2350 = vmatpush.msra.mxu0 0.0
        %2351 = vmatpush.msra.mxu0 0.0
        %2352 = vmatpush.msra.mxu0 0.0
        %2353 = vmatpush.msra.mxu0 0.0
        %2354 = vmatpush.msra.mxu0 0.0
        %2355 = vmatpush.msra.mxu0 0.0
        %2356 = vmatpush.msra.mxu0 %v2326
        %2357 = vmatpush.msra.mxu0 %v2325
        %2358 = vmatpush.msra.mxu0 %v2324
        %2359 = vmatpush.msra.mxu0 %v2323
        %2360 = vmatmul.f32.gmra.mxu0 %v2342
        %v2361 = vpop.f32.mrf.mxu0
        %v2362 = vadd.f32 %v2340, %v2361
        %2363 = vdwg.mxu0
        %v2364 = vperm.slane %v2339, 1
        %v2366 = vsel %vm873, %v1893, 0
        %2368 = vmatpush.msra.mxu0 0.0
        %2369 = vmatpush.msra.mxu0 0.0
        %2370 = vmatpush.msra.mxu0 0.0
        %2371 = vmatpush.msra.mxu0 0.0
        %2372 = vmatpush.msra.mxu0 0.0
        %2373 = vmatpush.msra.mxu0 0.0
        %2374 = vmatpush.msra.mxu0 0.0
        %2375 = vmatpush.msra.mxu0 0.0
        %2376 = vmatpush.msra.mxu0 0.0
        %2377 = vmatpush.msra.mxu0 0.0
        %2378 = vmatpush.msra.mxu0 0.0
        %2379 = vmatpush.msra.mxu0 0.0
        %2380 = vmatpush.msra.mxu0 %v2330
        %2381 = vmatpush.msra.mxu0 %v2329
        %2382 = vmatpush.msra.mxu0 %v2328
        %2383 = vmatpush.msra.mxu0 %v2327
        %2384 = vmatmul.f32.gmra.mxu0 %v2366
        %v2385 = vpop.f32.mrf.mxu0
        %v2386 = vadd.f32 %v2364, %v2385
        %2387 = vdwg.mxu0
        %v2388 = vperm.slane %v2339, 2
        %2389 = vmatpush.msra.mxu0 0.0
        %2390 = vmatpush.msra.mxu0 0.0
        %2391 = vmatpush.msra.mxu0 0.0
        %2392 = vmatpush.msra.mxu0 0.0
        %2393 = vmatpush.msra.mxu0 0.0
        %2394 = vmatpush.msra.mxu0 0.0
        %2395 = vmatpush.msra.mxu0 0.0
        %2396 = vmatpush.msra.mxu0 0.0
        %2397 = vmatpush.msra.mxu0 0.0
        %2398 = vmatpush.msra.mxu0 0.0
        %2399 = vmatpush.msra.mxu0 0.0
        %2400 = vmatpush.msra.mxu0 0.0
        %2401 = vmatpush.msra.mxu0 %v2334
        %2402 = vmatpush.msra.mxu0 %v2333
        %2403 = vmatpush.msra.mxu0 %v2332
        %2404 = vmatpush.msra.mxu0 %v2331
        %2405 = vmatmul.f32.gmra.mxu0 %v2366
        %v2406 = vpop.f32.mrf.mxu0
        %v2407 = vadd.f32 %v2388, %v2406
        %2408 = vdwg.mxu0
        %2410 = vrot.lane.b32.xlu0 %v2362, 120
        %v2411 = vpop.permute.xlu0 %2410
        %2412 = vrot.lane.b32.xlu0 %v2362, 112
        %v2413 = vpop.permute.xlu0 %2412
        %2414 = vrot.lane.b32.xlu0 %v2362, 104
        %v2415 = vpop.permute.xlu0 %2414
        %2417 = vrot.lane.b32.xlu0 %v2386, 120
        %v2418 = vpop.permute.xlu0 %2417
        %2419 = vrot.lane.b32.xlu0 %v2386, 112
        %v2420 = vpop.permute.xlu0 %2419
        %2421 = vrot.lane.b32.xlu0 %v2386, 104
        %v2422 = vpop.permute.xlu0 %2421
        %2424 = vrot.lane.b32.xlu0 %v2407, 120
        %v2425 = vpop.permute.xlu0 %2424
        %2427 = vrot.lane.b32.xlu0 %v2407, 112
        %v2428 = vpop.permute.xlu0 %2427
        %2430 = vrot.lane.b32.xlu0 %v2407, 104
        %v2431 = vpop.permute.xlu0 %2430
        %v2433 = vsel %vm963, %v2362, 0
        %v2435 = vsel %vm963, %v2386, 0
        %2437 = vmatpush.xpose.msra.mxu0 0.0
        %2438 = vmatpush.xpose.msra.mxu0 0.0
        %2439 = vmatpush.xpose.msra.mxu0 0.0
        %2440 = vmatpush.xpose.msra.mxu0 0.0
        %2441 = vmatpush.xpose.msra.mxu0 0.0
        %2442 = vmatpush.xpose.msra.mxu0 0.0
        %2443 = vmatpush.xpose.msra.mxu0 0.0
        %2444 = vmatpush.xpose.msra.mxu0 0.0
        %2445 = vmatpush.xpose.msra.mxu0 0.0
        %2446 = vmatpush.xpose.msra.mxu0 0.0
        %2447 = vmatpush.xpose.msra.mxu0 0.0
        %2448 = vmatpush.xpose.msra.mxu0 0.0
        %2449 = vmatpush.xpose.msra.mxu0 0.0
        %2450 = vmatpush.xpose.msra.mxu0 0.0
        %2451 = vmatpush.xpose.msra.mxu0 0.0
        %2452 = vmatpush.xpose.msra.mxu0 %v2435
        %2453 = vmatmul.f32.gmra.mxu0 %v2433
        %v2454 = vpop.f32.mrf.mxu0
        %v2455 = vadd.f32 0.0, %v2454
        %2456 = vdwg.mxu0
        %v2457 = vsel %vm963, %v2411, 0
        %v2459 = vsel %vm963, %v2418, 0
        %2461 = vmatpush.xpose.msra.mxu0 0.0
        %2462 = vmatpush.xpose.msra.mxu0 0.0
        %2463 = vmatpush.xpose.msra.mxu0 0.0
        %2464 = vmatpush.xpose.msra.mxu0 0.0
        %2465 = vmatpush.xpose.msra.mxu0 0.0
        %2466 = vmatpush.xpose.msra.mxu0 0.0
        %2467 = vmatpush.xpose.msra.mxu0 0.0
        %2468 = vmatpush.xpose.msra.mxu0 0.0
        %2469 = vmatpush.xpose.msra.mxu0 0.0
        %2470 = vmatpush.xpose.msra.mxu0 0.0
        %2471 = vmatpush.xpose.msra.mxu0 0.0
        %2472 = vmatpush.xpose.msra.mxu0 0.0
        %2473 = vmatpush.xpose.msra.mxu0 0.0
        %2474 = vmatpush.xpose.msra.mxu0 0.0
        %2475 = vmatpush.xpose.msra.mxu0 0.0
        %2476 = vmatpush.xpose.msra.mxu0 %v2459
        %2477 = vmatmul.f32.gmra.mxu0 %v2457
        %v2478 = vpop.f32.mrf.mxu0
        %v2479 = vadd.f32 0.0, %v2478
        %2480 = vdwg.mxu0
        %v2481 = vsel %vm963, %v2413, 0
        %v2483 = vsel %vm963, %v2420, 0
        %2485 = vmatpush.xpose.msra.mxu0 0.0
        %2486 = vmatpush.xpose.msra.mxu0 0.0
        %2487 = vmatpush.xpose.msra.mxu0 0.0
        %2488 = vmatpush.xpose.msra.mxu0 0.0
        %2489 = vmatpush.xpose.msra.mxu0 0.0
        %2490 = vmatpush.xpose.msra.mxu0 0.0
        %2491 = vmatpush.xpose.msra.mxu0 0.0
        %2492 = vmatpush.xpose.msra.mxu0 0.0
        %2493 = vmatpush.xpose.msra.mxu0 0.0
        %2494 = vmatpush.xpose.msra.mxu0 0.0
        %2495 = vmatpush.xpose.msra.mxu0 0.0
        %2496 = vmatpush.xpose.msra.mxu0 0.0
        %2497 = vmatpush.xpose.msra.mxu0 0.0
        %2498 = vmatpush.xpose.msra.mxu0 0.0
        %2499 = vmatpush.xpose.msra.mxu0 0.0
        %2500 = vmatpush.xpose.msra.mxu0 %v2483
        %2501 = vmatmul.f32.gmra.mxu0 %v2481
        %v2502 = vpop.f32.mrf.mxu0
        %v2503 = vadd.f32 0.0, %v2502
        %2504 = vdwg.mxu0
        %v2505 = vsel %vm963, %v2415, 0
        %v2507 = vsel %vm963, %v2422, 0
        %2509 = vmatpush.xpose.msra.mxu0 0.0
        %2510 = vmatpush.xpose.msra.mxu0 0.0
        %2511 = vmatpush.xpose.msra.mxu0 0.0
        %2512 = vmatpush.xpose.msra.mxu0 0.0
        %2513 = vmatpush.xpose.msra.mxu0 0.0
        %2514 = vmatpush.xpose.msra.mxu0 0.0
        %2515 = vmatpush.xpose.msra.mxu0 0.0
        %2516 = vmatpush.xpose.msra.mxu0 0.0
        %2517 = vmatpush.xpose.msra.mxu0 0.0
        %2518 = vmatpush.xpose.msra.mxu0 0.0
        %2519 = vmatpush.xpose.msra.mxu0 0.0
        %2520 = vmatpush.xpose.msra.mxu0 0.0
        %2521 = vmatpush.xpose.msra.mxu0 0.0
        %2522 = vmatpush.xpose.msra.mxu0 0.0
        %2523 = vmatpush.xpose.msra.mxu0 0.0
        %2524 = vmatpush.xpose.msra.mxu0 %v2507
        %2525 = vmatmul.f32.gmra.mxu0 %v2505
        %v2526 = vpop.f32.mrf.mxu0
        %v2527 = vadd.f32 0.0, %v2526
        %2528 = vdwg.mxu0
        %v2529 = vmul.f32 %v2455, 0.35355338
        %v2530 = vmul.f32 %v2479, 0.35355338
        %v2531 = vmul.f32 %v2503, 0.35355338
        %v2532 = vmul.f32 %v2527, 0.35355338
        %v2533 = vsel %vm1066, %v2529, -1e+10
        %v2534 = vsel %vm1066, %v2530, -1e+10
        %v2535 = vsel %vm1066, %v2531, -1e+10
        %v2536 = vsel %vm1066, %v2532, -1e+10
        %v2537 = vsel %vm963, %v2533, -inf
        %2538 = vmax.xlane.f32.xlu0 %v2537
        %v2539 = vpop.xlane.xlu0 %2538
        %v2540 = vsel %vm963, %v2534, -inf
        %2541 = vmax.xlane.f32.xlu0 %v2540
        %v2542 = vpop.xlane.xlu0 %2541
        %v2543 = vsel %vm963, %v2535, -inf
        %2544 = vmax.xlane.f32.xlu0 %v2543
        %v2545 = vpop.xlane.xlu0 %2544
        %v2546 = vsel %vm963, %v2536, -inf
        %2547 = vmax.xlane.f32.xlu0 %v2546
        %v2548 = vpop.xlane.xlu0 %2547
        %v2549 = vsub.f32 %v2533, %v2539
        %v2550 = vsub.f32 %v2534, %v2542
        %v2551 = vsub.f32 %v2535, %v2545
        %v2552 = vsub.f32 %v2536, %v2548
        %v2553 = vmul.f32 %v2549, 1.442695
        %v2554 = vpow.pop %v2553
        %v2555 = vmul.f32 %v2550, 1.442695
        %v2556 = vpow.pop %v2555
        %v2557 = vmul.f32 %v2551, 1.442695
        %v2558 = vpow.pop %v2557
        %v2559 = vmul.f32 %v2552, 1.442695
        %v2560 = vpow.pop %v2559
        %v2561 = vsel %vm963, %v2554, 0.0
        %2562 = vadd.xlane.f32.xlu0 %v2561
        %v2563 = vpop.xlane.xlu0 %2562
        %v2564 = vsel %vm963, %v2556, 0.0
        %2565 = vadd.xlane.f32.xlu0 %v2564
        %v2566 = vpop.xlane.xlu0 %2565
        %v2567 = vsel %vm963, %v2558, 0.0
        %2568 = vadd.xlane.f32.xlu0 %v2567
        %v2569 = vpop.xlane.xlu0 %2568
        %v2570 = vsel %vm963, %v2560, 0.0
        %2571 = vadd.xlane.f32.xlu0 %v2570
        %v2572 = vpop.xlane.xlu0 %2571
        %v2573 = vrcp.pop %v2563
        %v2574 = vrcp.pop %v2566
        %v2575 = vrcp.pop %v2569
        %v2576 = vrcp.pop %v2572
        %v2577 = vmul.f32 %v2554, %v2573
        %v2578 = vmul.f32 %v2556, %v2574
        %v2579 = vmul.f32 %v2558, %v2575
        %v2580 = vmul.f32 %v2560, %v2576
        %v2582 = vsel %vm963, %v2577, 0
        %2584 = vmatpush.msra.mxu0 0.0
        %2585 = vmatpush.msra.mxu0 0.0
        %2586 = vmatpush.msra.mxu0 0.0
        %2587 = vmatpush.msra.mxu0 0.0
        %2588 = vmatpush.msra.mxu0 0.0
        %2589 = vmatpush.msra.mxu0 0.0
        %2590 = vmatpush.msra.mxu0 0.0
        %2591 = vmatpush.msra.mxu0 0.0
        %2592 = vmatpush.msra.mxu0 0.0
        %2593 = vmatpush.msra.mxu0 0.0
        %2594 = vmatpush.msra.mxu0 0.0
        %2595 = vmatpush.msra.mxu0 0.0
        %2596 = vmatpush.msra.mxu0 0.0
        %2597 = vmatpush.msra.mxu0 0.0
        %2598 = vmatpush.msra.mxu0 0.0
        %2599 = vmatpush.msra.mxu0 %v2407
        %2600 = vmatmul.f32.gmra.mxu0 %v2582
        %v2601 = vpop.f32.mrf.mxu0
        %v2602 = vadd.f32 0.0, %v2601
        %2603 = vdwg.mxu0
        %v2605 = vsel %vm963, %v2578, 0
        %2607 = vmatpush.msra.mxu0 0.0
        %2608 = vmatpush.msra.mxu0 0.0
        %2609 = vmatpush.msra.mxu0 0.0
        %2610 = vmatpush.msra.mxu0 0.0
        %2611 = vmatpush.msra.mxu0 0.0
        %2612 = vmatpush.msra.mxu0 0.0
        %2613 = vmatpush.msra.mxu0 0.0
        %2614 = vmatpush.msra.mxu0 0.0
        %2615 = vmatpush.msra.mxu0 0.0
        %2616 = vmatpush.msra.mxu0 0.0
        %2617 = vmatpush.msra.mxu0 0.0
        %2618 = vmatpush.msra.mxu0 0.0
        %2619 = vmatpush.msra.mxu0 0.0
        %2620 = vmatpush.msra.mxu0 0.0
        %2621 = vmatpush.msra.mxu0 0.0
        %2622 = vmatpush.msra.mxu0 %v2425
        %2623 = vmatmul.f32.gmra.mxu0 %v2605
        %v2624 = vpop.f32.mrf.mxu0
        %v2625 = vadd.f32 0.0, %v2624
        %2626 = vdwg.mxu0
        %v2628 = vsel %vm963, %v2579, 0
        %2630 = vmatpush.msra.mxu0 0.0
        %2631 = vmatpush.msra.mxu0 0.0
        %2632 = vmatpush.msra.mxu0 0.0
        %2633 = vmatpush.msra.mxu0 0.0
        %2634 = vmatpush.msra.mxu0 0.0
        %2635 = vmatpush.msra.mxu0 0.0
        %2636 = vmatpush.msra.mxu0 0.0
        %2637 = vmatpush.msra.mxu0 0.0
        %2638 = vmatpush.msra.mxu0 0.0
        %2639 = vmatpush.msra.mxu0 0.0
        %2640 = vmatpush.msra.mxu0 0.0
        %2641 = vmatpush.msra.mxu0 0.0
        %2642 = vmatpush.msra.mxu0 0.0
        %2643 = vmatpush.msra.mxu0 0.0
        %2644 = vmatpush.msra.mxu0 0.0
        %2645 = vmatpush.msra.mxu0 %v2428
        %2646 = vmatmul.f32.gmra.mxu0 %v2628
        %v2647 = vpop.f32.mrf.mxu0
        %v2648 = vadd.f32 0.0, %v2647
        %2649 = vdwg.mxu0
        %v2651 = vsel %vm963, %v2580, 0
        %2653 = vmatpush.msra.mxu0 0.0
        %2654 = vmatpush.msra.mxu0 0.0
        %2655 = vmatpush.msra.mxu0 0.0
        %2656 = vmatpush.msra.mxu0 0.0
        %2657 = vmatpush.msra.mxu0 0.0
        %2658 = vmatpush.msra.mxu0 0.0
        %2659 = vmatpush.msra.mxu0 0.0
        %2660 = vmatpush.msra.mxu0 0.0
        %2661 = vmatpush.msra.mxu0 0.0
        %2662 = vmatpush.msra.mxu0 0.0
        %2663 = vmatpush.msra.mxu0 0.0
        %2664 = vmatpush.msra.mxu0 0.0
        %2665 = vmatpush.msra.mxu0 0.0
        %2666 = vmatpush.msra.mxu0 0.0
        %2667 = vmatpush.msra.mxu0 0.0
        %2668 = vmatpush.msra.mxu0 %v2431
        %2669 = vmatmul.f32.gmra.mxu0 %v2651
        %v2670 = vpop.f32.mrf.mxu0
        %v2671 = vadd.f32 0.0, %v2670
        %2672 = vdwg.mxu0
        %2674 = vrot.lane.b32.xlu0 %v2625, 8
        %v2675 = vpop.permute.xlu0 %2674
        %2678 = vrot.lane.b32.xlu0 %v2648, 16
        %v2679 = vpop.permute.xlu0 %2678
        %2682 = vrot.lane.b32.xlu0 %v2671, 24
        %v2683 = vpop.permute.xlu0 %2682
        %v2685 = vsel %vm963, %v2602, %v2675
        %v2686 = vsel %vm1220, %v2685, %v2679
        %v2687 = vsel %vm1222, %v2686, %v2683
        %v2688 = vperm.slane %v2339, 3
        %v2690 = vsel %vm873, %v2687, 0
        %2692 = vmatpush.msra.mxu0 0.0
        %2693 = vmatpush.msra.mxu0 0.0
        %2694 = vmatpush.msra.mxu0 0.0
        %2695 = vmatpush.msra.mxu0 0.0
        %2696 = vmatpush.msra.mxu0 0.0
        %2697 = vmatpush.msra.mxu0 0.0
        %2698 = vmatpush.msra.mxu0 0.0
        %2699 = vmatpush.msra.mxu0 0.0
        %2700 = vmatpush.msra.mxu0 0.0
        %2701 = vmatpush.msra.mxu0 0.0
        %2702 = vmatpush.msra.mxu0 0.0
        %2703 = vmatpush.msra.mxu0 0.0
        %2704 = vmatpush.msra.mxu0 %v2338
        %2705 = vmatpush.msra.mxu0 %v2337
        %2706 = vmatpush.msra.mxu0 %v2336
        %2707 = vmatpush.msra.mxu0 %v2335
        %2708 = vmatmul.f32.gmra.mxu0 %v2690
        %v2709 = vpop.f32.mrf.mxu0
        %v2710 = vadd.f32 %v2688, %v2709
        %2711 = vdwg.mxu0
        %v2712 = vadd.f32 %v2710, %v2322
        %v2713 = vsel %vm873, %v2712, 0.0
        %2714 = vadd.xlane.f32.xlu0 %v2713
        %v2715 = vpop.xlane.xlu0 %2714
        %v2716 = vmul.f32 %v2715, %v1258
        %v2717 = vsub.f32 %v2712, %v2716
        %v2718 = vmul.f32 %v2717, %v2717
        %v2719 = vsel %vm873, %v2718, 0.0
        %2720 = vadd.xlane.f32.xlu0 %v2719
        %v2721 = vpop.xlane.xlu0 %2720
        %v2722 = vmul.f32 %v2721, %v1258
        %v2723 = vadd.f32 %v2722, 1e-05
        %v2724 = vrsqrt.pop %v2723
        %v2725 = vmul.f32 %v2724, %v2723
        %v2726 = vmul.f32 %v2725, %v2724
        %v2727 = vmul.f32 0.5, %v2726
        %v2728 = vsub.f32 1.5, %v2727
        %v2729 = vmul.f32 %v2724, %v2728
        %vm2730 = vweird.f32 %v2723
        %vm2731 = vweird.f32 %v2724
        %vm2732 = vmor %vm2730, %vm2731
        %v2733 = vsel %vm2732, %v2724, %v2729
        %v2734 = vmul.f32 %v2717, %v2733
        %v2735 = vperm.slane %v1906, 1
        %v2736 = vmul.f32 %v2734, %v2735
        %v2737 = vperm.slane %v1907, 1
        %v2738 = vadd.f32 %v2736, %v2737
        %v2739 = vld [vmem:[%s18] sm:$0xff]
        %v2740 = vld [vmem:[%s18 + $0x8] sm:$0xff]
        %v2741 = vld [vmem:[%s18 + $0x10] sm:$0xff]
        %v2742 = vld [vmem:[%s18 + $0x18] sm:$0xff]
        %v2743 = vld [vmem:[%s19] sm:$0x1]
        %v2744 = vld [vmem:[%s20] sm:$0xff]
        %v2745 = vld [vmem:[%s20 + $0x8] sm:$0xff]
        %v2746 = vld [vmem:[%s20 + $0x10] sm:$0xff]
        %v2747 = vld [vmem:[%s20 + $0x18] sm:$0xff]
        %v2748 = vld [vmem:[%s20 + $0x20] sm:$0xff]
        %v2749 = vld [vmem:[%s20 + $0x28] sm:$0xff]
        %v2750 = vld [vmem:[%s20 + $0x30] sm:$0xff]
        %v2751 = vld [vmem:[%s20 + $0x38] sm:$0xff]
        %v2752 = vld [vmem:[%s21] sm:$0x1]
        %v2754 = vperm.slane %v2743, 0
        %v2757 = vsel %vm873, %v2738, 0
        %2759 = vmatpush.msra.mxu0 0.0
        %2760 = vmatpush.msra.mxu0 0.0
        %2761 = vmatpush.msra.mxu0 0.0
        %2762 = vmatpush.msra.mxu0 0.0
        %2763 = vmatpush.msra.mxu0 0.0
        %2764 = vmatpush.msra.mxu0 0.0
        %2765 = vmatpush.msra.mxu0 0.0
        %2766 = vmatpush.msra.mxu0 0.0
        %2767 = vmatpush.msra.mxu0 0.0
        %2768 = vmatpush.msra.mxu0 0.0
        %2769 = vmatpush.msra.mxu0 0.0
        %2770 = vmatpush.msra.mxu0 0.0
        %2771 = vmatpush.msra.mxu0 %v2742
        %2772 = vmatpush.msra.mxu0 %v2741
        %2773 = vmatpush.msra.mxu0 %v2740
        %2774 = vmatpush.msra.mxu0 %v2739
        %2775 = vmatmul.f32.gmra.mxu0 %v2757
        %v2776 = vpop.f32.mrf.mxu0
        %v2777 = vadd.f32 %v2754, %v2776
        %2778 = vdwg.mxu0
        %v2779 = vmax.f32 %v2777, 0.0
        %v2781 = vperm.slane %v2752, 0
        %v2784 = vsel %vm1326, %v2779, 0
        %2786 = vmatpush.msra.mxu0 0.0
        %2787 = vmatpush.msra.mxu0 0.0
        %2788 = vmatpush.msra.mxu0 0.0
        %2789 = vmatpush.msra.mxu0 0.0
        %2790 = vmatpush.msra.mxu0 0.0
        %2791 = vmatpush.msra.mxu0 0.0
        %2792 = vmatpush.msra.mxu0 0.0
        %2793 = vmatpush.msra.mxu0 0.0
        %2794 = vmatpush.msra.mxu0 %v2751
        %2795 = vmatpush.msra.mxu0 %v2750
        %2796 = vmatpush.msra.mxu0 %v2749
        %2797 = vmatpush.msra.mxu0 %v2748
        %2798 = vmatpush.msra.mxu0 %v2747
        %2799 = vmatpush.msra.mxu0 %v2746
        %2800 = vmatpush.msra.mxu0 %v2745
        %2801 = vmatpush.msra.mxu0 %v2744
        %2802 = vmatmul.f32.gmra.mxu0 %v2784
        %v2803 = vpop.f32.mrf.mxu0
        %v2804 = vadd.f32 %v2781, %v2803
        %2805 = vdwg.mxu0
        %v2806 = vadd.f32 %v2804, %v2738
        %v2807 = vsel %vm873, %v2806, 0.0
        %2808 = vadd.xlane.f32.xlu0 %v2807
        %v2809 = vpop.xlane.xlu0 %2808
        %v2810 = vmul.f32 %v2809, %v1258
        %v2811 = vsub.f32 %v2806, %v2810
        %v2812 = vmul.f32 %v2811, %v2811
        %v2813 = vsel %vm873, %v2812, 0.0
        %2814 = vadd.xlane.f32.xlu0 %v2813
        %v2815 = vpop.xlane.xlu0 %2814
        %v2816 = vmul.f32 %v2815, %v1258
        %v2817 = vadd.f32 %v2816, 1e-05
        %v2818 = vrsqrt.pop %v2817
        %v2819 = vmul.f32 %v2818, %v2817
        %v2820 = vmul.f32 %v2819, %v2818
        %v2821 = vmul.f32 0.5, %v2820
        %v2822 = vsub.f32 1.5, %v2821
        %v2823 = vmul.f32 %v2818, %v2822
        %vm2824 = vweird.f32 %v2817
        %vm2825 = vweird.f32 %v2818
        %vm2826 = vmor %vm2824, %vm2825
        %v2827 = vsel %vm2826, %v2818, %v2823
        %v2828 = vmul.f32 %v2811, %v2827
        %v2829 = vperm.slane %v1906, 2
        %v2830 = vmul.f32 %v2828, %v2829
        %v2831 = vperm.slane %v1907, 2
        %v2832 = vadd.f32 %v2830, %v2831
        %s2833 = scalar_lea.vmem %s16, 4
        %v2834 = vld [vmem:[%s2833] sm:$0x7]
        %s2835 = scalar_lea.vmem %s17, 4
        %v2836 = vld [vmem:[%s2835] sm:$0x7]
        %s2837 = scalar_lea.vmem [#allocation2], 128
        %v2838 = vld [vmem:[%s2837] sm:$0xff]
        %v2839 = vld [vmem:[%s2837 + $0x8] sm:$0xff]
        %v2840 = vld [vmem:[%s2837 + $0x10] sm:$0xff]
        %v2841 = vld [vmem:[%s2837 + $0x18] sm:$0xff]
        %v2842 = vld [vmem:[%s2837 + $0x20] sm:$0xff]
        %v2843 = vld [vmem:[%s2837 + $0x28] sm:$0xff]
        %v2844 = vld [vmem:[%s2837 + $0x30] sm:$0xff]
        %v2845 = vld [vmem:[%s2837 + $0x38] sm:$0xff]
        %v2846 = vld [vmem:[%s2837 + $0x40] sm:$0xff]
        %v2847 = vld [vmem:[%s2837 + $0x48] sm:$0xff]
        %v2848 = vld [vmem:[%s2837 + $0x50] sm:$0xff]
        %v2849 = vld [vmem:[%s2837 + $0x58] sm:$0xff]
        %v2850 = vld [vmem:[%s2837 + $0x60] sm:$0xff]
        %v2851 = vld [vmem:[%s2837 + $0x68] sm:$0xff]
        %v2852 = vld [vmem:[%s2837 + $0x70] sm:$0xff]
        %v2853 = vld [vmem:[%s2837 + $0x78] sm:$0xff]
        %s2854 = scalar_lea.vmem %s13, 4
        %v2855 = vld [vmem:[%s2854] sm:$0xf]
        %v2856 = vperm.slane %v2855, 0
        %v2858 = vsel %vm873, %v2832, 0
        %2860 = vmatpush.msra.mxu0 0.0
        %2861 = vmatpush.msra.mxu0 0.0
        %2862 = vmatpush.msra.mxu0 0.0
        %2863 = vmatpush.msra.mxu0 0.0
        %2864 = vmatpush.msra.mxu0 0.0
        %2865 = vmatpush.msra.mxu0 0.0
        %2866 = vmatpush.msra.mxu0 0.0
        %2867 = vmatpush.msra.mxu0 0.0
        %2868 = vmatpush.msra.mxu0 0.0
        %2869 = vmatpush.msra.mxu0 0.0
        %2870 = vmatpush.msra.mxu0 0.0
        %2871 = vmatpush.msra.mxu0 0.0
        %2872 = vmatpush.msra.mxu0 %v2841
        %2873 = vmatpush.msra.mxu0 %v2840
        %2874 = vmatpush.msra.mxu0 %v2839
        %2875 = vmatpush.msra.mxu0 %v2838
        %2876 = vmatmul.f32.gmra.mxu0 %v2858
        %v2877 = vpop.f32.mrf.mxu0
        %v2878 = vadd.f32 %v2856, %v2877
        %2879 = vdwg.mxu0
        %v2880 = vperm.slane %v2855, 1
        %2881 = vmatpush.msra.mxu0 0.0
        %2882 = vmatpush.msra.mxu0 0.0
        %2883 = vmatpush.msra.mxu0 0.0
        %2884 = vmatpush.msra.mxu0 0.0
        %2885 = vmatpush.msra.mxu0 0.0
        %2886 = vmatpush.msra.mxu0 0.0
        %2887 = vmatpush.msra.mxu0 0.0
        %2888 = vmatpush.msra.mxu0 0.0
        %2889 = vmatpush.msra.mxu0 0.0
        %2890 = vmatpush.msra.mxu0 0.0
        %2891 = vmatpush.msra.mxu0 0.0
        %2892 = vmatpush.msra.mxu0 0.0
        %2893 = vmatpush.msra.mxu0 %v2845
        %2894 = vmatpush.msra.mxu0 %v2844
        %2895 = vmatpush.msra.mxu0 %v2843
        %2896 = vmatpush.msra.mxu0 %v2842
        %2897 = vmatmul.f32.gmra.mxu0 %v2858
        %v2898 = vpop.f32.mrf.mxu0
        %v2899 = vadd.f32 %v2880, %v2898
        %2900 = vdwg.mxu0
        %v2901 = vperm.slane %v2855, 2
        %2902 = vmatpush.msra.mxu0 0.0
        %2903 = vmatpush.msra.mxu0 0.0
        %2904 = vmatpush.msra.mxu0 0.0
        %2905 = vmatpush.msra.mxu0 0.0
        %2906 = vmatpush.msra.mxu0 0.0
        %2907 = vmatpush.msra.mxu0 0.0
        %2908 = vmatpush.msra.mxu0 0.0
        %2909 = vmatpush.msra.mxu0 0.0
        %2910 = vmatpush.msra.mxu0 0.0
        %2911 = vmatpush.msra.mxu0 0.0
        %2912 = vmatpush.msra.mxu0 0.0
        %2913 = vmatpush.msra.mxu0 0.0
        %2914 = vmatpush.msra.mxu0 %v2849
        %2915 = vmatpush.msra.mxu0 %v2848
        %2916 = vmatpush.msra.mxu0 %v2847
        %2917 = vmatpush.msra.mxu0 %v2846
        %2918 = vmatmul.f32.gmra.mxu0 %v2858
        %v2919 = vpop.f32.mrf.mxu0
        %v2920 = vadd.f32 %v2901, %v2919
        %2921 = vdwg.mxu0
        %2923 = vrot.lane.b32.xlu0 %v2878, 120
        %v2924 = vpop.permute.xlu0 %2923
        %2925 = vrot.lane.b32.xlu0 %v2878, 112
        %v2926 = vpop.permute.xlu0 %2925
        %2927 = vrot.lane.b32.xlu0 %v2878, 104
        %v2928 = vpop.permute.xlu0 %2927
        %2930 = vrot.lane.b32.xlu0 %v2899, 120
        %v2931 = vpop.permute.xlu0 %2930
        %2932 = vrot.lane.b32.xlu0 %v2899, 112
        %v2933 = vpop.permute.xlu0 %2932
        %2934 = vrot.lane.b32.xlu0 %v2899, 104
        %v2935 = vpop.permute.xlu0 %2934
        %2937 = vrot.lane.b32.xlu0 %v2920, 120
        %v2938 = vpop.permute.xlu0 %2937
        %2940 = vrot.lane.b32.xlu0 %v2920, 112
        %v2941 = vpop.permute.xlu0 %2940
        %2943 = vrot.lane.b32.xlu0 %v2920, 104
        %v2944 = vpop.permute.xlu0 %2943
        %v2946 = vsel %vm963, %v2878, 0
        %v2948 = vsel %vm963, %v2899, 0
        %2950 = vmatpush.xpose.msra.mxu0 0.0
        %2951 = vmatpush.xpose.msra.mxu0 0.0
        %2952 = vmatpush.xpose.msra.mxu0 0.0
        %2953 = vmatpush.xpose.msra.mxu0 0.0
        %2954 = vmatpush.xpose.msra.mxu0 0.0
        %2955 = vmatpush.xpose.msra.mxu0 0.0
        %2956 = vmatpush.xpose.msra.mxu0 0.0
        %2957 = vmatpush.xpose.msra.mxu0 0.0
        %2958 = vmatpush.xpose.msra.mxu0 0.0
        %2959 = vmatpush.xpose.msra.mxu0 0.0
        %2960 = vmatpush.xpose.msra.mxu0 0.0
        %2961 = vmatpush.xpose.msra.mxu0 0.0
        %2962 = vmatpush.xpose.msra.mxu0 0.0
        %2963 = vmatpush.xpose.msra.mxu0 0.0
        %2964 = vmatpush.xpose.msra.mxu0 0.0
        %2965 = vmatpush.xpose.msra.mxu0 %v2948
        %2966 = vmatmul.f32.gmra.mxu0 %v2946
        %v2967 = vpop.f32.mrf.mxu0
        %v2968 = vadd.f32 0.0, %v2967
        %2969 = vdwg.mxu0
        %v2970 = vsel %vm963, %v2924, 0
        %v2972 = vsel %vm963, %v2931, 0
        %2974 = vmatpush.xpose.msra.mxu0 0.0
        %2975 = vmatpush.xpose.msra.mxu0 0.0
        %2976 = vmatpush.xpose.msra.mxu0 0.0
        %2977 = vmatpush.xpose.msra.mxu0 0.0
        %2978 = vmatpush.xpose.msra.mxu0 0.0
        %2979 = vmatpush.xpose.msra.mxu0 0.0
        %2980 = vmatpush.xpose.msra.mxu0 0.0
        %2981 = vmatpush.xpose.msra.mxu0 0.0
        %2982 = vmatpush.xpose.msra.mxu0 0.0
        %2983 = vmatpush.xpose.msra.mxu0 0.0
        %2984 = vmatpush.xpose.msra.mxu0 0.0
        %2985 = vmatpush.xpose.msra.mxu0 0.0
        %2986 = vmatpush.xpose.msra.mxu0 0.0
        %2987 = vmatpush.xpose.msra.mxu0 0.0
        %2988 = vmatpush.xpose.msra.mxu0 0.0
        %2989 = vmatpush.xpose.msra.mxu0 %v2972
        %2990 = vmatmul.f32.gmra.mxu0 %v2970
        %v2991 = vpop.f32.mrf.mxu0
        %v2992 = vadd.f32 0.0, %v2991
        %2993 = vdwg.mxu0
        %v2994 = vsel %vm963, %v2926, 0
        %v2996 = vsel %vm963, %v2933, 0
        %2998 = vmatpush.xpose.msra.mxu0 0.0
        %2999 = vmatpush.xpose.msra.mxu0 0.0
        %3000 = vmatpush.xpose.msra.mxu0 0.0
        %3001 = vmatpush.xpose.msra.mxu0 0.0
        %3002 = vmatpush.xpose.msra.mxu0 0.0
        %3003 = vmatpush.xpose.msra.mxu0 0.0
        %3004 = vmatpush.xpose.msra.mxu0 0.0
        %3005 = vmatpush.xpose.msra.mxu0 0.0
        %3006 = vmatpush.xpose.msra.mxu0 0.0
        %3007 = vmatpush.xpose.msra.mxu0 0.0
        %3008 = vmatpush.xpose.msra.mxu0 0.0
        %3009 = vmatpush.xpose.msra.mxu0 0.0
        %3010 = vmatpush.xpose.msra.mxu0 0.0
        %3011 = vmatpush.xpose.msra.mxu0 0.0
        %3012 = vmatpush.xpose.msra.mxu0 0.0
        %3013 = vmatpush.xpose.msra.mxu0 %v2996
        %3014 = vmatmul.f32.gmra.mxu0 %v2994
        %v3015 = vpop.f32.mrf.mxu0
        %v3016 = vadd.f32 0.0, %v3015
        %3017 = vdwg.mxu0
        %v3018 = vsel %vm963, %v2928, 0
        %v3020 = vsel %vm963, %v2935, 0
        %3022 = vmatpush.xpose.msra.mxu0 0.0
        %3023 = vmatpush.xpose.msra.mxu0 0.0
        %3024 = vmatpush.xpose.msra.mxu0 0.0
        %3025 = vmatpush.xpose.msra.mxu0 0.0
        %3026 = vmatpush.xpose.msra.mxu0 0.0
        %3027 = vmatpush.xpose.msra.mxu0 0.0
        %3028 = vmatpush.xpose.msra.mxu0 0.0
        %3029 = vmatpush.xpose.msra.mxu0 0.0
        %3030 = vmatpush.xpose.msra.mxu0 0.0
        %3031 = vmatpush.xpose.msra.mxu0 0.0
        %3032 = vmatpush.xpose.msra.mxu0 0.0
        %3033 = vmatpush.xpose.msra.mxu0 0.0
        %3034 = vmatpush.xpose.msra.mxu0 0.0
        %3035 = vmatpush.xpose.msra.mxu0 0.0
        %3036 = vmatpush.xpose.msra.mxu0 0.0
        %3037 = vmatpush.xpose.msra.mxu0 %v3020
        %3038 = vmatmul.f32.gmra.mxu0 %v3018
        %v3039 = vpop.f32.mrf.mxu0
        %v3040 = vadd.f32 0.0, %v3039
        %3041 = vdwg.mxu0
        %v3042 = vmul.f32 %v2968, 0.35355338
        %v3043 = vmul.f32 %v2992, 0.35355338
        %v3044 = vmul.f32 %v3016, 0.35355338
        %v3045 = vmul.f32 %v3040, 0.35355338
        %v3046 = vsel %vm2116, %v3042, -1e+10
        %v3047 = vsel %vm2116, %v3043, -1e+10
        %v3048 = vsel %vm2116, %v3044, -1e+10
        %v3049 = vsel %vm2116, %v3045, -1e+10
        %v3050 = vsel %vm963, %v3046, -inf
        %3051 = vmax.xlane.f32.xlu0 %v3050
        %v3052 = vpop.xlane.xlu0 %3051
        %v3053 = vsel %vm963, %v3047, -inf
        %3054 = vmax.xlane.f32.xlu0 %v3053
        %v3055 = vpop.xlane.xlu0 %3054
        %v3056 = vsel %vm963, %v3048, -inf
        %3057 = vmax.xlane.f32.xlu0 %v3056
        %v3058 = vpop.xlane.xlu0 %3057
        %v3059 = vsel %vm963, %v3049, -inf
        %3060 = vmax.xlane.f32.xlu0 %v3059
        %v3061 = vpop.xlane.xlu0 %3060
        %v3062 = vsub.f32 %v3046, %v3052
        %v3063 = vsub.f32 %v3047, %v3055
        %v3064 = vsub.f32 %v3048, %v3058
        %v3065 = vsub.f32 %v3049, %v3061
        %v3066 = vmul.f32 %v3062, 1.442695
        %v3067 = vpow.pop %v3066
        %v3068 = vmul.f32 %v3063, 1.442695
        %v3069 = vpow.pop %v3068
        %v3070 = vmul.f32 %v3064, 1.442695
        %v3071 = vpow.pop %v3070
        %v3072 = vmul.f32 %v3065, 1.442695
        %v3073 = vpow.pop %v3072
        %v3074 = vsel %vm963, %v3067, 0.0
        %3075 = vadd.xlane.f32.xlu0 %v3074
        %v3076 = vpop.xlane.xlu0 %3075
        %v3077 = vsel %vm963, %v3069, 0.0
        %3078 = vadd.xlane.f32.xlu0 %v3077
        %v3079 = vpop.xlane.xlu0 %3078
        %v3080 = vsel %vm963, %v3071, 0.0
        %3081 = vadd.xlane.f32.xlu0 %v3080
        %v3082 = vpop.xlane.xlu0 %3081
        %v3083 = vsel %vm963, %v3073, 0.0
        %3084 = vadd.xlane.f32.xlu0 %v3083
        %v3085 = vpop.xlane.xlu0 %3084
        %v3086 = vrcp.pop %v3076
        %v3087 = vrcp.pop %v3079
        %v3088 = vrcp.pop %v3082
        %v3089 = vrcp.pop %v3085
        %v3090 = vmul.f32 %v3067, %v3086
        %v3091 = vmul.f32 %v3069, %v3087
        %v3092 = vmul.f32 %v3071, %v3088
        %v3093 = vmul.f32 %v3073, %v3089
        %v3095 = vsel %vm963, %v3090, 0
        %3097 = vmatpush.msra.mxu0 0.0
        %3098 = vmatpush.msra.mxu0 0.0
        %3099 = vmatpush.msra.mxu0 0.0
        %3100 = vmatpush.msra.mxu0 0.0
        %3101 = vmatpush.msra.mxu0 0.0
        %3102 = vmatpush.msra.mxu0 0.0
        %3103 = vmatpush.msra.mxu0 0.0
        %3104 = vmatpush.msra.mxu0 0.0
        %3105 = vmatpush.msra.mxu0 0.0
        %3106 = vmatpush.msra.mxu0 0.0
        %3107 = vmatpush.msra.mxu0 0.0
        %3108 = vmatpush.msra.mxu0 0.0
        %3109 = vmatpush.msra.mxu0 0.0
        %3110 = vmatpush.msra.mxu0 0.0
        %3111 = vmatpush.msra.mxu0 0.0
        %3112 = vmatpush.msra.mxu0 %v2920
        %3113 = vmatmul.f32.gmra.mxu0 %v3095
        %v3114 = vpop.f32.mrf.mxu0
        %v3115 = vadd.f32 0.0, %v3114
        %3116 = vdwg.mxu0
        %v3118 = vsel %vm963, %v3091, 0
        %3120 = vmatpush.msra.mxu0 0.0
        %3121 = vmatpush.msra.mxu0 0.0
        %3122 = vmatpush.msra.mxu0 0.0
        %3123 = vmatpush.msra.mxu0 0.0
        %3124 = vmatpush.msra.mxu0 0.0
        %3125 = vmatpush.msra.mxu0 0.0
        %3126 = vmatpush.msra.mxu0 0.0
        %3127 = vmatpush.msra.mxu0 0.0
        %3128 = vmatpush.msra.mxu0 0.0
        %3129 = vmatpush.msra.mxu0 0.0
        %3130 = vmatpush.msra.mxu0 0.0
        %3131 = vmatpush.msra.mxu0 0.0
        %3132 = vmatpush.msra.mxu0 0.0
        %3133 = vmatpush.msra.mxu0 0.0
        %3134 = vmatpush.msra.mxu0 0.0
        %3135 = vmatpush.msra.mxu0 %v2938
        %3136 = vmatmul.f32.gmra.mxu0 %v3118
        %v3137 = vpop.f32.mrf.mxu0
        %v3138 = vadd.f32 0.0, %v3137
        %3139 = vdwg.mxu0
        %v3141 = vsel %vm963, %v3092, 0
        %3143 = vmatpush.msra.mxu0 0.0
        %3144 = vmatpush.msra.mxu0 0.0
        %3145 = vmatpush.msra.mxu0 0.0
        %3146 = vmatpush.msra.mxu0 0.0
        %3147 = vmatpush.msra.mxu0 0.0
        %3148 = vmatpush.msra.mxu0 0.0
        %3149 = vmatpush.msra.mxu0 0.0
        %3150 = vmatpush.msra.mxu0 0.0
        %3151 = vmatpush.msra.mxu0 0.0
        %3152 = vmatpush.msra.mxu0 0.0
        %3153 = vmatpush.msra.mxu0 0.0
        %3154 = vmatpush.msra.mxu0 0.0
        %3155 = vmatpush.msra.mxu0 0.0
        %3156 = vmatpush.msra.mxu0 0.0
        %3157 = vmatpush.msra.mxu0 0.0
        %3158 = vmatpush.msra.mxu0 %v2941
        %3159 = vmatmul.f32.gmra.mxu0 %v3141
        %v3160 = vpop.f32.mrf.mxu0
        %v3161 = vadd.f32 0.0, %v3160
        %3162 = vdwg.mxu0
        %v3164 = vsel %vm963, %v3093, 0
        %3166 = vmatpush.msra.mxu0 0.0
        %3167 = vmatpush.msra.mxu0 0.0
        %3168 = vmatpush.msra.mxu0 0.0
        %3169 = vmatpush.msra.mxu0 0.0
        %3170 = vmatpush.msra.mxu0 0.0
        %3171 = vmatpush.msra.mxu0 0.0
        %3172 = vmatpush.msra.mxu0 0.0
        %3173 = vmatpush.msra.mxu0 0.0
        %3174 = vmatpush.msra.mxu0 0.0
        %3175 = vmatpush.msra.mxu0 0.0
        %3176 = vmatpush.msra.mxu0 0.0
        %3177 = vmatpush.msra.mxu0 0.0
        %3178 = vmatpush.msra.mxu0 0.0
        %3179 = vmatpush.msra.mxu0 0.0
        %3180 = vmatpush.msra.mxu0 0.0
        %3181 = vmatpush.msra.mxu0 %v2944
        %3182 = vmatmul.f32.gmra.mxu0 %v3164
        %v3183 = vpop.f32.mrf.mxu0
        %v3184 = vadd.f32 0.0, %v3183
        %3185 = vdwg.mxu0
        %3187 = vrot.lane.b32.xlu0 %v3138, 8
        %v3188 = vpop.permute.xlu0 %3187
        %3191 = vrot.lane.b32.xlu0 %v3161, 16
        %v3192 = vpop.permute.xlu0 %3191
        %3195 = vrot.lane.b32.xlu0 %v3184, 24
        %v3196 = vpop.permute.xlu0 %3195
        %v3198 = vsel %vm963, %v3115, %v3188
        %v3199 = vsel %vm1220, %v3198, %v3192
        %v3200 = vsel %vm1222, %v3199, %v3196
        %v3201 = vperm.slane %v2855, 3
        %v3203 = vsel %vm873, %v3200, 0
        %3205 = vmatpush.msra.mxu0 0.0
        %3206 = vmatpush.msra.mxu0 0.0
        %3207 = vmatpush.msra.mxu0 0.0
        %3208 = vmatpush.msra.mxu0 0.0
        %3209 = vmatpush.msra.mxu0 0.0
        %3210 = vmatpush.msra.mxu0 0.0
        %3211 = vmatpush.msra.mxu0 0.0
        %3212 = vmatpush.msra.mxu0 0.0
        %3213 = vmatpush.msra.mxu0 0.0
        %3214 = vmatpush.msra.mxu0 0.0
        %3215 = vmatpush.msra.mxu0 0.0
        %3216 = vmatpush.msra.mxu0 0.0
        %3217 = vmatpush.msra.mxu0 %v2853
        %3218 = vmatpush.msra.mxu0 %v2852
        %3219 = vmatpush.msra.mxu0 %v2851
        %3220 = vmatpush.msra.mxu0 %v2850
        %3221 = vmatmul.f32.gmra.mxu0 %v3203
        %v3222 = vpop.f32.mrf.mxu0
        %v3223 = vadd.f32 %v3201, %v3222
        %3224 = vdwg.mxu0
        %v3225 = vadd.f32 %v3223, %v2832
        %v3226 = vsel %vm873, %v3225, 0.0
        %3227 = vadd.xlane.f32.xlu0 %v3226
        %v3228 = vpop.xlane.xlu0 %3227
        %v3229 = vmul.f32 %v3228, %v1258
        %v3230 = vsub.f32 %v3225, %v3229
        %v3231 = vmul.f32 %v3230, %v3230
        %v3232 = vsel %vm873, %v3231, 0.0
        %3233 = vadd.xlane.f32.xlu0 %v3232
        %v3234 = vpop.xlane.xlu0 %3233
        %v3235 = vmul.f32 %v3234, %v1258
        %v3236 = vadd.f32 %v3235, 1e-05
        %v3237 = vrsqrt.pop %v3236
        %v3238 = vmul.f32 %v3237, %v3236
        %v3239 = vmul.f32 %v3238, %v3237
        %v3240 = vmul.f32 0.5, %v3239
        %v3241 = vsub.f32 1.5, %v3240
        %v3242 = vmul.f32 %v3237, %v3241
        %vm3243 = vweird.f32 %v3236
        %vm3244 = vweird.f32 %v3237
        %vm3245 = vmor %vm3243, %vm3244
        %v3246 = vsel %vm3245, %v3237, %v3242
        %v3247 = vmul.f32 %v3230, %v3246
        %v3248 = vperm.slane %v2834, 0
        %v3249 = vmul.f32 %v3247, %v3248
        %v3250 = vperm.slane %v2836, 0
        %v3251 = vadd.f32 %v3249, %v3250
        %s3252 = scalar_lea.vmem [#allocation5], 128
        %v3253 = vld [vmem:[%s3252] sm:$0xff]
        %v3254 = vld [vmem:[%s3252 + $0x8] sm:$0xff]
        %v3255 = vld [vmem:[%s3252 + $0x10] sm:$0xff]
        %v3256 = vld [vmem:[%s3252 + $0x18] sm:$0xff]
        %v3257 = vld [vmem:[%s3252 + $0x20] sm:$0xff]
        %v3258 = vld [vmem:[%s3252 + $0x28] sm:$0xff]
        %v3259 = vld [vmem:[%s3252 + $0x30] sm:$0xff]
        %v3260 = vld [vmem:[%s3252 + $0x38] sm:$0xff]
        %v3261 = vld [vmem:[%s3252 + $0x40] sm:$0xff]
        %v3262 = vld [vmem:[%s3252 + $0x48] sm:$0xff]
        %v3263 = vld [vmem:[%s3252 + $0x50] sm:$0xff]
        %v3264 = vld [vmem:[%s3252 + $0x58] sm:$0xff]
        %v3265 = vld [vmem:[%s3252 + $0x60] sm:$0xff]
        %v3266 = vld [vmem:[%s3252 + $0x68] sm:$0xff]
        %v3267 = vld [vmem:[%s3252 + $0x70] sm:$0xff]
        %v3268 = vld [vmem:[%s3252 + $0x78] sm:$0xff]
        %s3269 = scalar_lea.vmem %s15, 4
        %v3270 = vld [vmem:[%s3269] sm:$0xf]
        %v3271 = vperm.slane %v3270, 0
        %v3273 = vsel %vm873, %v3251, 0
        %3275 = vmatpush.msra.mxu0 0.0
        %3276 = vmatpush.msra.mxu0 0.0
        %3277 = vmatpush.msra.mxu0 0.0
        %3278 = vmatpush.msra.mxu0 0.0
        %3279 = vmatpush.msra.mxu0 0.0
        %3280 = vmatpush.msra.mxu0 0.0
        %3281 = vmatpush.msra.mxu0 0.0
        %3282 = vmatpush.msra.mxu0 0.0
        %3283 = vmatpush.msra.mxu0 0.0
        %3284 = vmatpush.msra.mxu0 0.0
        %3285 = vmatpush.msra.mxu0 0.0
        %3286 = vmatpush.msra.mxu0 0.0
        %3287 = vmatpush.msra.mxu0 %v3256
        %3288 = vmatpush.msra.mxu0 %v3255
        %3289 = vmatpush.msra.mxu0 %v3254
        %3290 = vmatpush.msra.mxu0 %v3253
        %3291 = vmatmul.f32.gmra.mxu0 %v3273
        %v3292 = vpop.f32.mrf.mxu0
        %v3293 = vadd.f32 %v3271, %v3292
        %3294 = vdwg.mxu0
        %v3295 = vperm.slane %v3270, 1
        %3296 = vmatpush.msra.mxu0 0.0
        %3297 = vmatpush.msra.mxu0 0.0
        %3298 = vmatpush.msra.mxu0 0.0
        %3299 = vmatpush.msra.mxu0 0.0
        %3300 = vmatpush.msra.mxu0 0.0
        %3301 = vmatpush.msra.mxu0 0.0
        %3302 = vmatpush.msra.mxu0 0.0
        %3303 = vmatpush.msra.mxu0 0.0
        %3304 = vmatpush.msra.mxu0 0.0
        %3305 = vmatpush.msra.mxu0 0.0
        %3306 = vmatpush.msra.mxu0 0.0
        %3307 = vmatpush.msra.mxu0 0.0
        %3308 = vmatpush.msra.mxu0 %v3260
        %3309 = vmatpush.msra.mxu0 %v3259
        %3310 = vmatpush.msra.mxu0 %v3258
        %3311 = vmatpush.msra.mxu0 %v3257
        %3312 = vmatmul.f32.gmra.mxu0 %v2366
        %v3313 = vpop.f32.mrf.mxu0
        %v3314 = vadd.f32 %v3295, %v3313
        %3315 = vdwg.mxu0
        %v3316 = vperm.slane %v3270, 2
        %3317 = vmatpush.msra.mxu0 0.0
        %3318 = vmatpush.msra.mxu0 0.0
        %3319 = vmatpush.msra.mxu0 0.0
        %3320 = vmatpush.msra.mxu0 0.0
        %3321 = vmatpush.msra.mxu0 0.0
        %3322 = vmatpush.msra.mxu0 0.0
        %3323 = vmatpush.msra.mxu0 0.0
        %3324 = vmatpush.msra.mxu0 0.0
        %3325 = vmatpush.msra.mxu0 0.0
        %3326 = vmatpush.msra.mxu0 0.0
        %3327 = vmatpush.msra.mxu0 0.0
        %3328 = vmatpush.msra.mxu0 0.0
        %3329 = vmatpush.msra.mxu0 %v3264
        %3330 = vmatpush.msra.mxu0 %v3263
        %3331 = vmatpush.msra.mxu0 %v3262
        %3332 = vmatpush.msra.mxu0 %v3261
        %3333 = vmatmul.f32.gmra.mxu0 %v2366
        %v3334 = vpop.f32.mrf.mxu0
        %v3335 = vadd.f32 %v3316, %v3334
        %3336 = vdwg.mxu0
        %3338 = vrot.lane.b32.xlu0 %v3293, 120
        %v3339 = vpop.permute.xlu0 %3338
        %3340 = vrot.lane.b32.xlu0 %v3293, 112
        %v3341 = vpop.permute.xlu0 %3340
        %3342 = vrot.lane.b32.xlu0 %v3293, 104
        %v3343 = vpop.permute.xlu0 %3342
        %3345 = vrot.lane.b32.xlu0 %v3314, 120
        %v3346 = vpop.permute.xlu0 %3345
        %3347 = vrot.lane.b32.xlu0 %v3314, 112
        %v3348 = vpop.permute.xlu0 %3347
        %3349 = vrot.lane.b32.xlu0 %v3314, 104
        %v3350 = vpop.permute.xlu0 %3349
        %3352 = vrot.lane.b32.xlu0 %v3335, 120
        %v3353 = vpop.permute.xlu0 %3352
        %3355 = vrot.lane.b32.xlu0 %v3335, 112
        %v3356 = vpop.permute.xlu0 %3355
        %3358 = vrot.lane.b32.xlu0 %v3335, 104
        %v3359 = vpop.permute.xlu0 %3358
        %v3361 = vsel %vm963, %v3293, 0
        %v3363 = vsel %vm963, %v3314, 0
        %3365 = vmatpush.xpose.msra.mxu0 0.0
        %3366 = vmatpush.xpose.msra.mxu0 0.0
        %3367 = vmatpush.xpose.msra.mxu0 0.0
        %3368 = vmatpush.xpose.msra.mxu0 0.0
        %3369 = vmatpush.xpose.msra.mxu0 0.0
        %3370 = vmatpush.xpose.msra.mxu0 0.0
        %3371 = vmatpush.xpose.msra.mxu0 0.0
        %3372 = vmatpush.xpose.msra.mxu0 0.0
        %3373 = vmatpush.xpose.msra.mxu0 0.0
        %3374 = vmatpush.xpose.msra.mxu0 0.0
        %3375 = vmatpush.xpose.msra.mxu0 0.0
        %3376 = vmatpush.xpose.msra.mxu0 0.0
        %3377 = vmatpush.xpose.msra.mxu0 0.0
        %3378 = vmatpush.xpose.msra.mxu0 0.0
        %3379 = vmatpush.xpose.msra.mxu0 0.0
        %3380 = vmatpush.xpose.msra.mxu0 %v3363
        %3381 = vmatmul.f32.gmra.mxu0 %v3361
        %v3382 = vpop.f32.mrf.mxu0
        %v3383 = vadd.f32 0.0, %v3382
        %3384 = vdwg.mxu0
        %v3385 = vsel %vm963, %v3339, 0
        %v3387 = vsel %vm963, %v3346, 0
        %3389 = vmatpush.xpose.msra.mxu0 0.0
        %3390 = vmatpush.xpose.msra.mxu0 0.0
        %3391 = vmatpush.xpose.msra.mxu0 0.0
        %3392 = vmatpush.xpose.msra.mxu0 0.0
        %3393 = vmatpush.xpose.msra.mxu0 0.0
        %3394 = vmatpush.xpose.msra.mxu0 0.0
        %3395 = vmatpush.xpose.msra.mxu0 0.0
        %3396 = vmatpush.xpose.msra.mxu0 0.0
        %3397 = vmatpush.xpose.msra.mxu0 0.0
        %3398 = vmatpush.xpose.msra.mxu0 0.0
        %3399 = vmatpush.xpose.msra.mxu0 0.0
        %3400 = vmatpush.xpose.msra.mxu0 0.0
        %3401 = vmatpush.xpose.msra.mxu0 0.0
        %3402 = vmatpush.xpose.msra.mxu0 0.0
        %3403 = vmatpush.xpose.msra.mxu0 0.0
        %3404 = vmatpush.xpose.msra.mxu0 %v3387
        %3405 = vmatmul.f32.gmra.mxu0 %v3385
        %v3406 = vpop.f32.mrf.mxu0
        %v3407 = vadd.f32 0.0, %v3406
        %3408 = vdwg.mxu0
        %v3409 = vsel %vm963, %v3341, 0
        %v3411 = vsel %vm963, %v3348, 0
        %3413 = vmatpush.xpose.msra.mxu0 0.0
        %3414 = vmatpush.xpose.msra.mxu0 0.0
        %3415 = vmatpush.xpose.msra.mxu0 0.0
        %3416 = vmatpush.xpose.msra.mxu0 0.0
        %3417 = vmatpush.xpose.msra.mxu0 0.0
        %3418 = vmatpush.xpose.msra.mxu0 0.0
        %3419 = vmatpush.xpose.msra.mxu0 0.0
        %3420 = vmatpush.xpose.msra.mxu0 0.0
        %3421 = vmatpush.xpose.msra.mxu0 0.0
        %3422 = vmatpush.xpose.msra.mxu0 0.0
        %3423 = vmatpush.xpose.msra.mxu0 0.0
        %3424 = vmatpush.xpose.msra.mxu0 0.0
        %3425 = vmatpush.xpose.msra.mxu0 0.0
        %3426 = vmatpush.xpose.msra.mxu0 0.0
        %3427 = vmatpush.xpose.msra.mxu0 0.0
        %3428 = vmatpush.xpose.msra.mxu0 %v3411
        %3429 = vmatmul.f32.gmra.mxu0 %v3409
        %v3430 = vpop.f32.mrf.mxu0
        %v3431 = vadd.f32 0.0, %v3430
        %3432 = vdwg.mxu0
        %v3433 = vsel %vm963, %v3343, 0
        %v3435 = vsel %vm963, %v3350, 0
        %3437 = vmatpush.xpose.msra.mxu0 0.0
        %3438 = vmatpush.xpose.msra.mxu0 0.0
        %3439 = vmatpush.xpose.msra.mxu0 0.0
        %3440 = vmatpush.xpose.msra.mxu0 0.0
        %3441 = vmatpush.xpose.msra.mxu0 0.0
        %3442 = vmatpush.xpose.msra.mxu0 0.0
        %3443 = vmatpush.xpose.msra.mxu0 0.0
        %3444 = vmatpush.xpose.msra.mxu0 0.0
        %3445 = vmatpush.xpose.msra.mxu0 0.0
        %3446 = vmatpush.xpose.msra.mxu0 0.0
        %3447 = vmatpush.xpose.msra.mxu0 0.0
        %3448 = vmatpush.xpose.msra.mxu0 0.0
        %3449 = vmatpush.xpose.msra.mxu0 0.0
        %3450 = vmatpush.xpose.msra.mxu0 0.0
        %3451 = vmatpush.xpose.msra.mxu0 0.0
        %3452 = vmatpush.xpose.msra.mxu0 %v3435
        %3453 = vmatmul.f32.gmra.mxu0 %v3433
        %v3454 = vpop.f32.mrf.mxu0
        %v3455 = vadd.f32 0.0, %v3454
        %3456 = vdwg.mxu0
        %v3457 = vmul.f32 %v3383, 0.35355338
        %v3458 = vmul.f32 %v3407, 0.35355338
        %v3459 = vmul.f32 %v3431, 0.35355338
        %v3460 = vmul.f32 %v3455, 0.35355338
        %v3461 = vsel %vm1066, %v3457, -1e+10
        %v3462 = vsel %vm1066, %v3458, -1e+10
        %v3463 = vsel %vm1066, %v3459, -1e+10
        %v3464 = vsel %vm1066, %v3460, -1e+10
        %v3465 = vsel %vm963, %v3461, -inf
        %3466 = vmax.xlane.f32.xlu0 %v3465
        %v3467 = vpop.xlane.xlu0 %3466
        %v3468 = vsel %vm963, %v3462, -inf
        %3469 = vmax.xlane.f32.xlu0 %v3468
        %v3470 = vpop.xlane.xlu0 %3469
        %v3471 = vsel %vm963, %v3463, -inf
        %3472 = vmax.xlane.f32.xlu0 %v3471
        %v3473 = vpop.xlane.xlu0 %3472
        %v3474 = vsel %vm963, %v3464, -inf
        %3475 = vmax.xlane.f32.xlu0 %v3474
        %v3476 = vpop.xlane.xlu0 %3475
        %v3477 = vsub.f32 %v3461, %v3467
        %v3478 = vsub.f32 %v3462, %v3470
        %v3479 = vsub.f32 %v3463, %v3473
        %v3480 = vsub.f32 %v3464, %v3476
        %v3481 = vmul.f32 %v3477, 1.442695
        %v3482 = vpow.pop %v3481
        %v3483 = vmul.f32 %v3478, 1.442695
        %v3484 = vpow.pop %v3483
        %v3485 = vmul.f32 %v3479, 1.442695
        %v3486 = vpow.pop %v3485
        %v3487 = vmul.f32 %v3480, 1.442695
        %v3488 = vpow.pop %v3487
        %v3489 = vsel %vm963, %v3482, 0.0
        %3490 = vadd.xlane.f32.xlu0 %v3489
        %v3491 = vpop.xlane.xlu0 %3490
        %v3492 = vsel %vm963, %v3484, 0.0
        %3493 = vadd.xlane.f32.xlu0 %v3492
        %v3494 = vpop.xlane.xlu0 %3493
        %v3495 = vsel %vm963, %v3486, 0.0
        %3496 = vadd.xlane.f32.xlu0 %v3495
        %v3497 = vpop.xlane.xlu0 %3496
        %v3498 = vsel %vm963, %v3488, 0.0
        %3499 = vadd.xlane.f32.xlu0 %v3498
        %v3500 = vpop.xlane.xlu0 %3499
        %v3501 = vrcp.pop %v3491
        %v3502 = vrcp.pop %v3494
        %v3503 = vrcp.pop %v3497
        %v3504 = vrcp.pop %v3500
        %v3505 = vmul.f32 %v3482, %v3501
        %v3506 = vmul.f32 %v3484, %v3502
        %v3507 = vmul.f32 %v3486, %v3503
        %v3508 = vmul.f32 %v3488, %v3504
        %v3510 = vsel %vm963, %v3505, 0
        %3512 = vmatpush.msra.mxu0 0.0
        %3513 = vmatpush.msra.mxu0 0.0
        %3514 = vmatpush.msra.mxu0 0.0
        %3515 = vmatpush.msra.mxu0 0.0
        %3516 = vmatpush.msra.mxu0 0.0
        %3517 = vmatpush.msra.mxu0 0.0
        %3518 = vmatpush.msra.mxu0 0.0
        %3519 = vmatpush.msra.mxu0 0.0
        %3520 = vmatpush.msra.mxu0 0.0
        %3521 = vmatpush.msra.mxu0 0.0
        %3522 = vmatpush.msra.mxu0 0.0
        %3523 = vmatpush.msra.mxu0 0.0
        %3524 = vmatpush.msra.mxu0 0.0
        %3525 = vmatpush.msra.mxu0 0.0
        %3526 = vmatpush.msra.mxu0 0.0
        %3527 = vmatpush.msra.mxu0 %v3335
        %3528 = vmatmul.f32.gmra.mxu0 %v3510
        %v3529 = vpop.f32.mrf.mxu0
        %v3530 = vadd.f32 0.0, %v3529
        %3531 = vdwg.mxu0
        %v3533 = vsel %vm963, %v3506, 0
        %3535 = vmatpush.msra.mxu0 0.0
        %3536 = vmatpush.msra.mxu0 0.0
        %3537 = vmatpush.msra.mxu0 0.0
        %3538 = vmatpush.msra.mxu0 0.0
        %3539 = vmatpush.msra.mxu0 0.0
        %3540 = vmatpush.msra.mxu0 0.0
        %3541 = vmatpush.msra.mxu0 0.0
        %3542 = vmatpush.msra.mxu0 0.0
        %3543 = vmatpush.msra.mxu0 0.0
        %3544 = vmatpush.msra.mxu0 0.0
        %3545 = vmatpush.msra.mxu0 0.0
        %3546 = vmatpush.msra.mxu0 0.0
        %3547 = vmatpush.msra.mxu0 0.0
        %3548 = vmatpush.msra.mxu0 0.0
        %3549 = vmatpush.msra.mxu0 0.0
        %3550 = vmatpush.msra.mxu0 %v3353
        %3551 = vmatmul.f32.gmra.mxu0 %v3533
        %v3552 = vpop.f32.mrf.mxu0
        %v3553 = vadd.f32 0.0, %v3552
        %3554 = vdwg.mxu0
        %v3556 = vsel %vm963, %v3507, 0
        %3558 = vmatpush.msra.mxu0 0.0
        %3559 = vmatpush.msra.mxu0 0.0
        %3560 = vmatpush.msra.mxu0 0.0
        %3561 = vmatpush.msra.mxu0 0.0
        %3562 = vmatpush.msra.mxu0 0.0
        %3563 = vmatpush.msra.mxu0 0.0
        %3564 = vmatpush.msra.mxu0 0.0
        %3565 = vmatpush.msra.mxu0 0.0
        %3566 = vmatpush.msra.mxu0 0.0
        %3567 = vmatpush.msra.mxu0 0.0
        %3568 = vmatpush.msra.mxu0 0.0
        %3569 = vmatpush.msra.mxu0 0.0
        %3570 = vmatpush.msra.mxu0 0.0
        %3571 = vmatpush.msra.mxu0 0.0
        %3572 = vmatpush.msra.mxu0 0.0
        %3573 = vmatpush.msra.mxu0 %v3356
        %3574 = vmatmul.f32.gmra.mxu0 %v3556
        %v3575 = vpop.f32.mrf.mxu0
        %v3576 = vadd.f32 0.0, %v3575
        %3577 = vdwg.mxu0
        %v3579 = vsel %vm963, %v3508, 0
        %3581 = vmatpush.msra.mxu0 0.0
        %3582 = vmatpush.msra.mxu0 0.0
        %3583 = vmatpush.msra.mxu0 0.0
        %3584 = vmatpush.msra.mxu0 0.0
        %3585 = vmatpush.msra.mxu0 0.0
        %3586 = vmatpush.msra.mxu0 0.0
        %3587 = vmatpush.msra.mxu0 0.0
        %3588 = vmatpush.msra.mxu0 0.0
        %3589 = vmatpush.msra.mxu0 0.0
        %3590 = vmatpush.msra.mxu0 0.0
        %3591 = vmatpush.msra.mxu0 0.0
        %3592 = vmatpush.msra.mxu0 0.0
        %3593 = vmatpush.msra.mxu0 0.0
        %3594 = vmatpush.msra.mxu0 0.0
        %3595 = vmatpush.msra.mxu0 0.0
        %3596 = vmatpush.msra.mxu0 %v3359
        %3597 = vmatmul.f32.gmra.mxu0 %v3579
        %v3598 = vpop.f32.mrf.mxu0
        %v3599 = vadd.f32 0.0, %v3598
        %3600 = vdwg.mxu0
        %3602 = vrot.lane.b32.xlu0 %v3553, 8
        %v3603 = vpop.permute.xlu0 %3602
        %3606 = vrot.lane.b32.xlu0 %v3576, 16
        %v3607 = vpop.permute.xlu0 %3606
        %3610 = vrot.lane.b32.xlu0 %v3599, 24
        %v3611 = vpop.permute.xlu0 %3610
        %v3613 = vsel %vm963, %v3530, %v3603
        %v3614 = vsel %vm1220, %v3613, %v3607
        %v3615 = vsel %vm1222, %v3614, %v3611
        %v3616 = vperm.slane %v3270, 3
        %v3618 = vsel %vm873, %v3615, 0
        %3620 = vmatpush.msra.mxu0 0.0
        %3621 = vmatpush.msra.mxu0 0.0
        %3622 = vmatpush.msra.mxu0 0.0
        %3623 = vmatpush.msra.mxu0 0.0
        %3624 = vmatpush.msra.mxu0 0.0
        %3625 = vmatpush.msra.mxu0 0.0
        %3626 = vmatpush.msra.mxu0 0.0
        %3627 = vmatpush.msra.mxu0 0.0
        %3628 = vmatpush.msra.mxu0 0.0
        %3629 = vmatpush.msra.mxu0 0.0
        %3630 = vmatpush.msra.mxu0 0.0
        %3631 = vmatpush.msra.mxu0 0.0
        %3632 = vmatpush.msra.mxu0 %v3268
        %3633 = vmatpush.msra.mxu0 %v3267
        %3634 = vmatpush.msra.mxu0 %v3266
        %3635 = vmatpush.msra.mxu0 %v3265
        %3636 = vmatmul.f32.gmra.mxu0 %v3618
        %v3637 = vpop.f32.mrf.mxu0
        %v3638 = vadd.f32 %v3616, %v3637
        %3639 = vdwg.mxu0
        %v3640 = vadd.f32 %v3638, %v3251
        %v3641 = vsel %vm873, %v3640, 0.0
        %3642 = vadd.xlane.f32.xlu0 %v3641
        %v3643 = vpop.xlane.xlu0 %3642
        %v3644 = vmul.f32 %v3643, %v1258
        %v3645 = vsub.f32 %v3640, %v3644
        %v3646 = vmul.f32 %v3645, %v3645
        %v3647 = vsel %vm873, %v3646, 0.0
        %3648 = vadd.xlane.f32.xlu0 %v3647
        %v3649 = vpop.xlane.xlu0 %3648
        %v3650 = vmul.f32 %v3649, %v1258
        %v3651 = vadd.f32 %v3650, 1e-05
        %v3652 = vrsqrt.pop %v3651
        %v3653 = vmul.f32 %v3652, %v3651
        %v3654 = vmul.f32 %v3653, %v3652
        %v3655 = vmul.f32 0.5, %v3654
        %v3656 = vsub.f32 1.5, %v3655
        %v3657 = vmul.f32 %v3652, %v3656
        %vm3658 = vweird.f32 %v3651
        %vm3659 = vweird.f32 %v3652
        %vm3660 = vmor %vm3658, %vm3659
        %v3661 = vsel %vm3660, %v3652, %v3657
        %v3662 = vmul.f32 %v3645, %v3661
        %v3663 = vperm.slane %v2834, 1
        %v3664 = vmul.f32 %v3662, %v3663
        %v3665 = vperm.slane %v2836, 1
        %v3666 = vadd.f32 %v3664, %v3665
        %s3667 = scalar_lea.vmem %s18, 32
        %v3668 = vld [vmem:[%s3667] sm:$0xff]
        %v3669 = vld [vmem:[%s3667 + $0x8] sm:$0xff]
        %v3670 = vld [vmem:[%s3667 + $0x10] sm:$0xff]
        %v3671 = vld [vmem:[%s3667 + $0x18] sm:$0xff]
        %s3672 = scalar_lea.vmem %s19, 1
        %v3673 = vld [vmem:[%s3672] sm:$0x1]
        %s3674 = scalar_lea.vmem %s20, 64
        %v3675 = vld [vmem:[%s3674] sm:$0xff]
        %v3676 = vld [vmem:[%s3674 + $0x8] sm:$0xff]
        %v3677 = vld [vmem:[%s3674 + $0x10] sm:$0xff]
        %v3678 = vld [vmem:[%s3674 + $0x18] sm:$0xff]
        %v3679 = vld [vmem:[%s3674 + $0x20] sm:$0xff]
        %v3680 = vld [vmem:[%s3674 + $0x28] sm:$0xff]
        %v3681 = vld [vmem:[%s3674 + $0x30] sm:$0xff]
        %v3682 = vld [vmem:[%s3674 + $0x38] sm:$0xff]
        %s3683 = scalar_lea.vmem %s21, 1
        %v3684 = vld [vmem:[%s3683] sm:$0x1]
        %v3686 = vperm.slane %v3673, 0
        %v3689 = vsel %vm873, %v3666, 0
        %3691 = vmatpush.msra.mxu0 0.0
        %3692 = vmatpush.msra.mxu0 0.0
        %3693 = vmatpush.msra.mxu0 0.0
        %3694 = vmatpush.msra.mxu0 0.0
        %3695 = vmatpush.msra.mxu0 0.0
        %3696 = vmatpush.msra.mxu0 0.0
        %3697 = vmatpush.msra.mxu0 0.0
        %3698 = vmatpush.msra.mxu0 0.0
        %3699 = vmatpush.msra.mxu0 0.0
        %3700 = vmatpush.msra.mxu0 0.0
        %3701 = vmatpush.msra.mxu0 0.0
        %3702 = vmatpush.msra.mxu0 0.0
        %3703 = vmatpush.msra.mxu0 %v3671
        %3704 = vmatpush.msra.mxu0 %v3670
        %3705 = vmatpush.msra.mxu0 %v3669
        %3706 = vmatpush.msra.mxu0 %v3668
        %3707 = vmatmul.f32.gmra.mxu0 %v3689
        %v3708 = vpop.f32.mrf.mxu0
        %v3709 = vadd.f32 %v3686, %v3708
        %3710 = vdwg.mxu0
        %v3711 = vmax.f32 %v3709, 0.0
        %v3713 = vperm.slane %v3684, 0
        %v3716 = vsel %vm1326, %v3711, 0
        %3718 = vmatpush.msra.mxu0 0.0
        %3719 = vmatpush.msra.mxu0 0.0
        %3720 = vmatpush.msra.mxu0 0.0
        %3721 = vmatpush.msra.mxu0 0.0
        %3722 = vmatpush.msra.mxu0 0.0
        %3723 = vmatpush.msra.mxu0 0.0
        %3724 = vmatpush.msra.mxu0 0.0
        %3725 = vmatpush.msra.mxu0 0.0
        %3726 = vmatpush.msra.mxu0 %v3682
        %3727 = vmatpush.msra.mxu0 %v3681
        %3728 = vmatpush.msra.mxu0 %v3680
        %3729 = vmatpush.msra.mxu0 %v3679
        %3730 = vmatpush.msra.mxu0 %v3678
        %3731 = vmatpush.msra.mxu0 %v3677
        %3732 = vmatpush.msra.mxu0 %v3676
        %3733 = vmatpush.msra.mxu0 %v3675
        %3734 = vmatmul.f32.gmra.mxu0 %v3716
        %v3735 = vpop.f32.mrf.mxu0
        %v3736 = vadd.f32 %v3713, %v3735
        %3737 = vdwg.mxu0
        %v3738 = vadd.f32 %v3736, %v3666
        %v3739 = vsel %vm873, %v3738, 0.0
        %3740 = vadd.xlane.f32.xlu0 %v3739
        %v3741 = vpop.xlane.xlu0 %3740
        %v3742 = vmul.f32 %v3741, %v1258
        %v3743 = vsub.f32 %v3738, %v3742
        %v3744 = vmul.f32 %v3743, %v3743
        %v3745 = vsel %vm873, %v3744, 0.0
        %3746 = vadd.xlane.f32.xlu0 %v3745
        %v3747 = vpop.xlane.xlu0 %3746
        %v3748 = vmul.f32 %v3747, %v1258
        %v3749 = vadd.f32 %v3748, 1e-05
        %v3750 = vrsqrt.pop %v3749
        %v3751 = vmul.f32 %v3750, %v3749
        %v3752 = vmul.f32 %v3751, %v3750
        %v3753 = vmul.f32 0.5, %v3752
        %v3754 = vsub.f32 1.5, %v3753
        %v3755 = vmul.f32 %v3750, %v3754
        %vm3756 = vweird.f32 %v3749
        %vm3757 = vweird.f32 %v3750
        %vm3758 = vmor %vm3756, %vm3757
        %v3759 = vsel %vm3758, %v3750, %v3755
        %v3760 = vmul.f32 %v3743, %v3759
        %v3761 = vperm.slane %v2834, 2
        %v3762 = vmul.f32 %v3760, %v3761
        %v3763 = vperm.slane %v2836, 2
        %v3764 = vadd.f32 %v3762, %v3763
        %v3765 = vld [vmem:[%s22] sm:$0xff]
        %v3766 = vld [vmem:[%s22 + $0x8] sm:$0xff]
        %v3767 = vld [vmem:[%s22 + $0x10] sm:$0xff]
        %v3768 = vld [vmem:[%s22 + $0x18] sm:$0xff]
        %v3769 = vld [vmem:[%s23] sm:$0x1]
        %v3771 = vperm.slane %v3769, 0
        %v3774 = vsel %vm873, %v3764, 0
        %3776 = vmatpush.msra.mxu0 0.0
        %3777 = vmatpush.msra.mxu0 0.0
        %3778 = vmatpush.msra.mxu0 0.0
        %3779 = vmatpush.msra.mxu0 0.0
        %3780 = vmatpush.msra.mxu0 0.0
        %3781 = vmatpush.msra.mxu0 0.0
        %3782 = vmatpush.msra.mxu0 0.0
        %3783 = vmatpush.msra.mxu0 0.0
        %3784 = vmatpush.msra.mxu0 0.0
        %3785 = vmatpush.msra.mxu0 0.0
        %3786 = vmatpush.msra.mxu0 0.0
        %3787 = vmatpush.msra.mxu0 0.0
        %3788 = vmatpush.msra.mxu0 %v3768
        %3789 = vmatpush.msra.mxu0 %v3767
        %3790 = vmatpush.msra.mxu0 %v3766
        %3791 = vmatpush.msra.mxu0 %v3765
        %3792 = vmatmul.f32.gmra.mxu0 %v3774
        %v3793 = vpop.f32.mrf.mxu0
        %v3794 = vadd.f32 %v3771, %v3793
        %3795 = vdwg.mxu0
        %3796 = vst.msk [vmem:[%s828] sm:$0xff] %vm1326, %v3794
        %3797 = vst.msk [vmem:[%s835] sm:$0xff] %vm963, %v3505
        %3798 = vst.msk [vmem:[%s835 + $0x8] sm:$0xff] %vm963, %v3506
        %3799 = vst.msk [vmem:[%s835 + $0x10] sm:$0xff] %vm963, %v3507
        %3800 = vst.msk [vmem:[%s835 + $0x18] sm:$0xff] %vm963, %v3508
        %s3801 = sand.u32 %s577, 1
        %s3802 = scalar_lea.sflag [#allocation4], %s3801
        %s3803 = sand.u32 %s577, 1
        %s3804 = smul.addr %s3803, 8
        %s3805 = scalar_lea.vmem [#allocation7], %s3804
        %s3806 = sand.u32 %s603, 1
        %s3807 = scalar_lea.sflag [#allocation9], %s3806
        %s3808 = sand.u32 %s603, 1
        %s3809 = smul.addr %s3808, 32
        %s3810 = scalar_lea.vmem [#allocation8], %s3809
        // Predicated region
        $region125: #{seq2seq_forward.1} parent=115 // pred_check
          %p3811 = pneg %p587
        $region126: #{seq2seq_forward.1} parent=115 // pred_check_branch
          %3813 = sbr.rel (%p3811) target = $region128
        $region127: #{seq2seq_forward.1} parent=115 // pred_region
          %3815 = vsyncadd %s3802, 0
          %s3816 = smul.addr %s45, 8
          %s3817 = scalar_lea.hbm %s24, %s3816
          %s3819 = sshll.u32 %s3805, 4
          %s3820 = int_to_ptr.vmem [resolvable:$true] %s3819
          %s3821 = sshll.u32 %s3817, 4
          %s3822 = int_to_ptr.hbm [resolvable:$true] %s3821
          %3824 = dma.vmem_to_hbm [thread:$0]  %s3820, 128, %s3822, %s3802
        $region128: #{seq2seq_forward.1} parent=115 // pred_fallthru
          _
        // Predicated region
        $region129: #{seq2seq_forward.1} parent=115 // pred_check
          %p3825 = pneg %p613
        $region130: #{seq2seq_forward.1} parent=115 // pred_check_branch
          %3827 = sbr.rel (%p3825) target = $region132
        $region131: #{seq2seq_forward.1} parent=115 // pred_region
          %3829 = vsyncadd %s3807, 0
          %s3830 = smul.addr %s45, 4
          %s3831 = smul.addr %s3830, 8
          %s3832 = scalar_lea.hbm %s25, %s3831
          %s3833 = sshll.u32 %s3810, 4
          %s3834 = int_to_ptr.vmem [resolvable:$true] %s3833
          %s3835 = sshll.u32 %s3832, 4
          %s3836 = int_to_ptr.hbm [resolvable:$true] %s3835
          %3841 = dma.vmem_to_hbm [thread:$0]  %s3834, 512, %s3836, %s3807, 128, 128, 8
        $region132: #{seq2seq_forward.1} parent=115 // pred_fallthru
          _
      $region116: #{seq2seq_forward.1} parent=5 // pred_fallthru
        _
      %p3842 = scmp.le.s32.totalorder 2, %s40
      // Predicated region
      $region133: #{seq2seq_forward.1} parent=5 // pred_check
        %p3843 = pneg %p3842
      $region134: #{seq2seq_forward.1} parent=5 // pred_check_branch
        %3845 = sbr.rel (%p3843) target = $region136
      $region135: #{seq2seq_forward.1} parent=5 // pred_region
        %s3846 = ssub.s32 %s40, 2
        // Predicated region
        $region137: #{seq2seq_forward.1} parent=135 // pred_check
          %p3847 = pneg %p593
        $region138: #{seq2seq_forward.1} parent=135 // pred_check_branch
          %3849 = sbr.rel (%p3847) target = $region140
        $region139: #{seq2seq_forward.1} parent=135 // pred_region
          %s3850 = sand.u32 %s578, 1
          %s3851 = scalar_lea.sflag [#allocation4], %s3850
          %s3852 = sand.u32 %s578, 1
          %s3853 = smul.addr %s3852, 8
          %s3854 = scalar_lea.vmem [#allocation7], %s3853
          %3856 = dma.done %s3851, 128
        $region140: #{seq2seq_forward.1} parent=135 // pred_fallthru
          _
        // Predicated region
        $region141: #{seq2seq_forward.1} parent=135 // pred_check
          %p3857 = pneg %p619
        $region142: #{seq2seq_forward.1} parent=135 // pred_check_branch
          %3859 = sbr.rel (%p3857) target = $region144
        $region143: #{seq2seq_forward.1} parent=135 // pred_region
          %s3860 = sand.u32 %s604, 1
          %s3861 = scalar_lea.sflag [#allocation9], %s3860
          %s3862 = sand.u32 %s604, 1
          %s3863 = smul.addr %s3862, 32
          %s3864 = scalar_lea.vmem [#allocation8], %s3863
          %3866 = dma.done %s3861, 512
        $region144: #{seq2seq_forward.1} parent=135 // pred_fallthru
          _
      $region136: #{seq2seq_forward.1} parent=5 // pred_fallthru
        _
    $region6: #{seq2seq_forward.1} parent=1 // loop_footer
      %s44 = sadd.s32 1, %s40
    $region7: #{seq2seq_forward.1} parent=1 // loop_footer_branch
      %39 = sbr.rel target = $region3
    $region8: #{seq2seq_forward.1} parent=1 // loop_exit
      _
    %3867 = vsyncpa [#allocation3], 1
    %s3868 = scalar_lea.sflag [#allocation3], 1
    %3869 = vsyncpa %s3868, 1
    %3870 = vsyncpa [#allocation6], 1
    %3871 = vsyncpa [#allocation4], 1
    %s3872 = scalar_lea.sflag [#allocation4], 1
    %3873 = vsyncpa %s3872, 1
    %3874 = vsyncpa [#allocation9], 1
    %s3875 = scalar_lea.sflag [#allocation9], 1
    %3876 = vsyncpa %s3875, 1

</llo_original>
